<compile_context>
chip_gen: v7x
topology: tpu7x:2x2x1
jax: 0.10.0
libtpu: 0.0.40
codegen_flags: <defaults>
</compile_context>

<pallas_src>
import math
import functools

import jax
import jax.numpy as jnp
from jax import lax
from jax.experimental import pallas as pl
from jax.experimental.pallas import tpu as pltpu


def _attn_kernel(x_ref, wq_ref, bq_ref, wkv_ref, bkv_ref, wp_ref, bp_ref,
                 tw_ref, mask_ref, o_ref, q_scr, kv_scr, acc_ref,
                 *, n_head, compute_dtype, approx_recip):
    T, C = o_ref.shape
    D = C // n_head

    # ---- in-kernel time_shift: cat([ZeroPad2d((0,0,1,0))(x)[:,:T,:C//2], x[:,:,C//2:]]) --
    x = x_ref[...]                                            # (T, C) input dtype
    rolled = pltpu.roll(x, 1, axis=0)                         # row t <- row t-1 (XLU)
    row = lax.broadcasted_iota(jnp.int32, (T, C), 0)
    col = lax.broadcasted_iota(jnp.int32, (T, C), 1)
    shifted = jnp.where(row > 0, rolled, 0.0)                 # zero row 0 (ZeroPad2d)
    xs = jnp.where(col < (C // 2), shifted, x).astype(compute_dtype)

    # ---- Q projection, row-major (T, C); 1/sqrt(D) already folded into wq/bq ----------
    q = jnp.dot(xs, wq_ref[...], preferred_element_type=jnp.float32) + bq_ref[...]
    q_scr[...] = q.astype(compute_dtype)

    # ---- K,V projections, transposed (2C, T): NT matmul, heads become sublane slices ---
    kv = lax.dot_general(wkv_ref[...], xs, (((1,), (1,)), ((), ())),
                         preferred_element_type=jnp.float32) + bkv_ref[...]
    kv_scr[...] = kv.astype(compute_dtype)

    # ---- per-head attention; output projection accumulated full-lane into acc_ref ------
    for h in range(n_head):
        qh = q_scr[:, h * D:(h + 1) * D]               # (T, D)  (lane-offset read only)
        kh = kv_scr[h * D:(h + 1) * D, :]              # (D, T)  sublane-aligned slice
        vh = kv_scr[C + h * D:C + (h + 1) * D, :]      # (D, T)  sublane-aligned slice

        s = jnp.dot(qh, kh, preferred_element_type=jnp.float32)   # (T, T), scale folded
        s = s + mask_ref[...]                                     # additive causal bias

        m = jnp.max(s, axis=-1, keepdims=True)
        e = jnp.exp(s - m)
        inv = pl.reciprocal(jnp.sum(e, axis=-1, keepdims=True), approx=approx_recip)

        p = (e * tw_ref[h]).astype(compute_dtype)                 # one (T,T) multiply
        yh = lax.dot_general(p, vh, (((1,), (1,)), ((), ())),     # (T, D), NT pattern
                             preferred_element_type=jnp.float32)
        yh = (yh * inv).astype(compute_dtype)                     # deferred 1/sum, (T,D)

        ph = jnp.dot(yh, wp_ref[h], preferred_element_type=jnp.float32)  # (T, C)
        if h == 0:
            acc_ref[...] = ph
        else:
            acc_ref[...] += ph

    o_ref[...] = (acc_ref[...] + bp_ref[...]).astype(o_ref.dtype)


def prepare_attention_params(params, n_head, seq_len, *, compute_dtype=jnp.bfloat16):
    """Hoisted, once-per-weight-update preparation of fused / transposed operands."""
    C = params["wq"].shape[0]
    D = C // n_head
    scale = 1.0 / math.sqrt(D)

    wq = (params["wq"] * scale).astype(compute_dtype)                      # (C, C)
    bq = (params["bq"] * scale).reshape(1, C).astype(jnp.float32)          # (1, C)
    wkv_t = jnp.concatenate([params["wk"].T, params["wv"].T],
                            axis=0).astype(compute_dtype)                  # (2C, C)
    bkv = jnp.concatenate([params["bk"], params["bv"]],
                          axis=1).reshape(2 * C, 1).astype(jnp.float32)    # (2C, 1)
    wp_r = params["wp"].reshape(n_head, D, C).astype(compute_dtype)        # (H, D, C)
    bp = params["bp"].reshape(1, C).astype(jnp.float32)                    # (1, C)
    tw = params["time_weight"][:, :seq_len, :seq_len].astype(compute_dtype)  # (H, T, T)

    idx = jnp.arange(seq_len)
    mask = jnp.where(idx[None, :] <= idx[:, None], 0.0, -1e30).astype(compute_dtype)

    return dict(wq=wq, bq=bq, wkv_t=wkv_t, bkv=bkv, wp_r=wp_r, bp=bp, tw=tw, mask=mask)


def _vmem_limit_bytes(T, C, n_head, x_dtype, compute_dtype):
    f32, cb, xb = 4, jnp.dtype(compute_dtype).itemsize, jnp.dtype(x_dtype).itemsize
    pad = lambda r, c, it: ((r + 7) // 8 * 8) * ((c + 127) // 128 * 128) * it
    D = C // n_head
    need = 0
    need += 2 * pad(T, C, xb) + 2 * pad(T, C, xb)                     # x / out blocks
    need += 2 * pad(C, C, cb) + 2 * pad(1, C, f32)                    # wq, bq
    need += 2 * pad(2 * C, C, cb) + 2 * pad(2 * C, 1, f32)            # wkv_t, bkv
    need += 2 * n_head * pad(D, C, cb) + 2 * pad(1, C, f32)           # wp_r, bp
    need += 2 * n_head * pad(T, T, cb) + 2 * pad(T, T, cb)            # time_weight, mask
    need += pad(T, C, cb) + pad(2 * C, T, cb) + pad(T, C, f32)        # scratch
    try:
        cap = pltpu.get_tpu_info().vmem_capacity_bytes                # per-generation cap
    except Exception:
        cap = 64 * 1024 * 1024
    return int(min(0.75 * cap, max(32 * 1024 * 1024, 2 * need)))


def causal_self_attention(x, prep, n_head, *, compute_dtype=jnp.bfloat16):
    """x: (B, T, C). prep: output of prepare_attention_params. Returns (B, T, C)."""
    B, T, C = x.shape
    assert C % n_head == 0
    D = C // n_head

    kern = functools.partial(_attn_kernel, n_head=n_head, compute_dtype=compute_dtype,
                             approx_recip=(compute_dtype != jnp.float32))
    const2 = lambda b: (0, 0)
    const3 = lambda b: (0, 0, 0)

    # NOTE: with tiny B the (B,) grid barely pipelines; constant operands are only
    # DMA'd once (index map is constant) and on v7x the "parallel" axis shards over TCs.
    return pl.pallas_call(
        kern,
        out_shape=jax.ShapeDtypeStruct((B, T, C), x.dtype),
        grid_spec=pltpu.PrefetchScalarGridSpec(
            num_scalar_prefetch=0,
            grid=(B,),
            in_specs=[
                pl.BlockSpec((None, T, C), lambda b: (b, 0, 0)),   # raw x (shift in-kernel)
                pl.BlockSpec((C, C), const2),                      # Wq (scale folded)
                pl.BlockSpec((1, C), const2),                      # bq (scale folded)
                pl.BlockSpec((2 * C, C), const2),                  # [Wk;Wv] transposed
                pl.BlockSpec((2 * C, 1), const2),                  # [bk;bv] column
                pl.BlockSpec((n_head, D, C), const3),              # Wproj, head-major
                pl.BlockSpec((1, C), const2),                      # bproj
                pl.BlockSpec((n_head, T, T), const3),              # time_weight
                pl.BlockSpec((T, T), const2),                      # additive causal bias
            ],
            out_specs=pl.BlockSpec((None, T, C), lambda b: (b, 0, 0)),
            scratch_shapes=[
                pltpu.VMEM((T, C), compute_dtype),       # Q (row-major)
                pltpu.VMEM((2 * C, T), compute_dtype),   # K|V (transposed)
                pltpu.VMEM((T, C), jnp.float32),         # output-projection accumulator
            ],
        ),
        compiler_params=pltpu.CompilerParams(
            dimension_semantics=("parallel",),
            vmem_limit_bytes=_vmem_limit_bytes(T, C, n_head, x.dtype, compute_dtype)),
    )(x, prep["wq"], prep["bq"], prep["wkv_t"], prep["bkv"],
      prep["wp_r"], prep["bp"], prep["tw"], prep["mask"])


# --------------------------- pure-JAX reference -------------------------------------
def reference(x, params, n_head):
    B, T, C = x.shape
    D = C // n_head
    x_shift = jnp.pad(x, ((0, 0), (1, 0), (0, 0)))[:, :T, :]
    xs = jnp.concatenate([x_shift[:, :, :C // 2], x[:, :, C // 2:]], axis=2)
    q = xs @ params["wq"] + params["bq"]
    k = xs @ params["wk"] + params["bk"]
    v = xs @ params["wv"] + params["bv"]
    q = q.reshape(B, T, n_head, D).transpose(0, 2, 1, 3)
    k = k.reshape(B, T, n_head, D).transpose(0, 2, 1, 3)
    v = v.reshape(B, T, n_head, D).transpose(0, 2, 1, 3)
    att = jnp.einsum("bhqd,bhkd->bhqk", q, k) / math.sqrt(D)
    mask = jnp.tril(jnp.ones((T, T), dtype=bool))
    att = jnp.where(mask[None, None], att, -jnp.inf)
    att = jax.nn.softmax(att, axis=-1)
    att = att * params["time_weight"][None, :, :T, :T]
    y = jnp.einsum("bhqk,bhkd->bhqd", att, v)
    y = y.transpose(0, 2, 1, 3).reshape(B, T, C)
    return y @ params["wp"] + params["bp"]


if __name__ == "__main__":
    # T equals the model block_size (128 per the spec); C a multiple of 128 so all tiles
    # are lane-dense (unmasked vector stores).
    B, T, C = 2, 128, 128
    n_head = 4
    block_size = 128  # time_weight is (H, block_size, block_size)

    key = jax.random.PRNGKey(0)
    ks = jax.random.split(key, 6)

    # Deterministic init mirroring GPT._init_weights: linear weights ~ N(0, 0.02),
    # biases zero.  Weights stored transposed ([in, out]) so the math is x @ W.
    params = {
        "wq": 0.02 * jax.random.normal(ks[0], (C, C), jnp.float32),
        "wk": 0.02 * jax.random.normal(ks[1], (C, C), jnp.float32),
        "wv": 0.02 * jax.random.normal(ks[2], (C, C), jnp.float32),
        "wp": 0.02 * jax.random.normal(ks[3], (C, C), jnp.float32),
        "bq": jnp.zeros((1, C), jnp.float32),
        "bk": jnp.zeros((1, C), jnp.float32),
        "bv": jnp.zeros((1, C), jnp.float32),
        "bp": jnp.zeros((1, C), jnp.float32),
        # module inits time_weight to ones; perturb so the term is exercised
        "time_weight": 1.0 + 0.1 * jax.random.normal(
            ks[4], (n_head, block_size, block_size), jnp.float32),
    }

    x = jax.random.normal(ks[5], (B, T, C), jnp.float32)

    ref = reference(x, params, n_head)

    # Exact-semantics path (f32 MXU operands, exact reciprocal): tight tolerance.
    prep_f32 = prepare_attention_params(params, n_head, T, compute_dtype=jnp.float32)
    out_f32 = jax.block_until_ready(
        causal_self_attention(x, prep_f32, n_head, compute_dtype=jnp.float32))
    assert out_f32.shape == (B, T, C)
    assert jnp.allclose(out_f32, ref, atol=1e-3, rtol=1e-3), "f32-path mismatch vs reference"

    # Fast path (bf16 MXU operands / time_weight, f32 softmax & accumulation).
    prep_bf16 = prepare_attention_params(params, n_head, T, compute_dtype=jnp.bfloat16)
    out_bf16 = jax.block_until_ready(
        causal_self_attention(x, prep_bf16, n_head, compute_dtype=jnp.bfloat16))
    assert out_bf16.shape == (B, T, C)
    assert jnp.allclose(out_bf16, ref, atol=3e-2, rtol=3e-2), "bf16-path mismatch vs reference"

    print("KERNEL_OK")
</pallas_src>

<mosaic_0001>
module attributes {stable_mosaic.version = 11 : i64} {
  func.func @_attn_kernel(%arg0: i32, %arg1: memref<1x128x128xf32, #tpu.memory_space<vmem>>, %arg2: memref<128x128xf32, #tpu.memory_space<vmem>>, %arg3: memref<1x128xf32, #tpu.memory_space<vmem>>, %arg4: memref<256x128xf32, #tpu.memory_space<vmem>>, %arg5: memref<256x1xf32, #tpu.memory_space<vmem>>, %arg6: memref<4x32x128xf32, #tpu.memory_space<vmem>>, %arg7: memref<1x128xf32, #tpu.memory_space<vmem>>, %arg8: memref<4x128x128xf32, #tpu.memory_space<vmem>>, %arg9: memref<128x128xf32, #tpu.memory_space<vmem>>, %arg10: memref<1x128x128xf32, #tpu.memory_space<vmem>>, %arg11: memref<128x128xf32, #tpu.memory_space<vmem>>, %arg12: memref<256x128xf32, #tpu.memory_space<vmem>>, %arg13: memref<128x128xf32, #tpu.memory_space<vmem>>) attributes {dimension_semantics = [#tpu.dimension_semantics<parallel>], iteration_bounds = array<i64: 2>, scalar_prefetch = 0 : i64, scratch_operands = 3 : i64, tpu.core_type = #tpu.core_type<tc>, window_params = [{transform_indices = @transform_0, window_bounds = array<i64: 1, 128, 128>}, {pipeline_mode = #tpu.pipeline_mode<synchronous>, transform_indices = @transform_1, window_bounds = array<i64: 128, 128>}, {pipeline_mode = #tpu.pipeline_mode<synchronous>, transform_indices = @transform_2, window_bounds = array<i64: 1, 128>}, {pipeline_mode = #tpu.pipeline_mode<synchronous>, transform_indices = @transform_3, window_bounds = array<i64: 256, 128>}, {pipeline_mode = #tpu.pipeline_mode<synchronous>, transform_indices = @transform_4, window_bounds = array<i64: 256, 1>}, {pipeline_mode = #tpu.pipeline_mode<synchronous>, transform_indices = @transform_5, window_bounds = array<i64: 4, 32, 128>}, {pipeline_mode = #tpu.pipeline_mode<synchronous>, transform_indices = @transform_6, window_bounds = array<i64: 1, 128>}, {pipeline_mode = #tpu.pipeline_mode<synchronous>, transform_indices = @transform_7, window_bounds = array<i64: 4, 128, 128>}, {pipeline_mode = #tpu.pipeline_mode<synchronous>, transform_indices = @transform_8, window_bounds = array<i64: 128, 128>}, {transform_indices = @transform_9, window_bounds = array<i64: 1, 128, 128>}]} {
    %c0 = arith.constant 0 : index
    %c0_0 = arith.constant 0 : index
    %c0_1 = arith.constant 0 : index
    %0 = vector.load %arg1[%c0, %c0_0, %c0_1] : memref<1x128x128xf32, #tpu.memory_space<vmem>>, vector<1x128x128xf32>
    %1 = vector.shape_cast %0 : vector<1x128x128xf32> to vector<128x128xf32>
    %c1_i32 = arith.constant 1 : i32
    %2 = tpu.dynamic_rotate %1 by %c1_i32 dim 0 : vector<128x128xf32>, i32 -> vector<128x128xf32>
    %3 = tpu.iota {dimensions = array<i32: 0>} : vector<128x128xi32>
    %4 = tpu.iota {dimensions = array<i32: 1>} : vector<128x128xi32>
    %c0_i32 = arith.constant 0 : i32
    %5 = vector.broadcast %c0_i32 : i32 to vector<128x128xi32>
    %6 = arith.cmpi sgt, %3, %5 : vector<128x128xi32>
    %cst = arith.constant 0.000000e+00 : f32
    %7 = vector.broadcast %cst : f32 to vector<128x128xf32>
    %8 = arith.select %6, %2, %7 : vector<128x128xi1>, vector<128x128xf32>
    %c64_i32 = arith.constant 64 : i32
    %9 = vector.broadcast %c64_i32 : i32 to vector<128x128xi32>
    %10 = arith.cmpi slt, %4, %9 : vector<128x128xi32>
    %11 = arith.select %10, %8, %1 : vector<128x128xi1>, vector<128x128xf32>
    %c0_2 = arith.constant 0 : index
    %c0_3 = arith.constant 0 : index
    %12 = vector.load %arg2[%c0_2, %c0_3] : memref<128x128xf32, #tpu.memory_space<vmem>>, vector<128x128xf32>
    %cst_4 = arith.constant dense<0.000000e+00> : vector<128x128xf32>
    %13 = tpu.matmul %11, %12, %cst_4 {dimension_numbers = #tpu.dot_dimension_numbers<[1], [0], [0], [1], [0, 0, 1, 1], [], []>} : vector<128x128xf32>, vector<128x128xf32>, vector<128x128xf32> -> vector<128x128xf32>
    %c0_5 = arith.constant 0 : index
    %c0_6 = arith.constant 0 : index
    %14 = vector.load %arg3[%c0_5, %c0_6] : memref<1x128xf32, #tpu.memory_space<vmem>>, vector<1x128xf32>
    %15 = vector.broadcast %14 : vector<1x128xf32> to vector<128x128xf32>
    %16 = arith.addf %13, %15 : vector<128x128xf32>
    %c0_7 = arith.constant 0 : index
    %c0_8 = arith.constant 0 : index
    %17 = vector.load %arg11[%c0_7, %c0_8] : memref<128x128xf32, #tpu.memory_space<vmem>>, vector<128x128xf32>
    tpu.vector_store %arg11[%c0_7, %c0_8], %16 {strides = array<i32>} : memref<128x128xf32, #tpu.memory_space<vmem>>, vector<128x128xf32>,
    %c0_9 = arith.constant 0 : index
    %c0_10 = arith.constant 0 : index
    %18 = vector.load %arg4[%c0_9, %c0_10] : memref<256x128xf32, #tpu.memory_space<vmem>>, vector<256x128xf32>
    %cst_11 = arith.constant dense<0.000000e+00> : vector<256x128xf32>
    %19 = tpu.matmul %18, %11, %cst_11 {dimension_numbers = #tpu.dot_dimension_numbers<[1], [1], [0], [0], [0, 0, 1, 0], [], []>} : vector<256x128xf32>, vector<128x128xf32>, vector<256x128xf32> -> vector<256x128xf32>
    %c0_12 = arith.constant 0 : index
    %c0_13 = arith.constant 0 : index
    %20 = vector.load %arg5[%c0_12, %c0_13] : memref<256x1xf32, #tpu.memory_space<vmem>>, vector<256x1xf32>
    %21 = vector.broadcast %20 : vector<256x1xf32> to vector<256x128xf32>
    %22 = arith.addf %19, %21 : vector<256x128xf32>
    %c0_14 = arith.constant 0 : index
    %c0_15 = arith.constant 0 : index
    %23 = vector.load %arg12[%c0_14, %c0_15] : memref<256x128xf32, #tpu.memory_space<vmem>>, vector<256x128xf32>
    tpu.vector_store %arg12[%c0_14, %c0_15], %22 {strides = array<i32>} : memref<256x128xf32, #tpu.memory_space<vmem>>, vector<256x128xf32>,
    %c0_16 = arith.constant 0 : index
    %c0_17 = arith.constant 0 : index
    %24 = vector.load %arg11[%c0_16, %c0_17] : memref<128x128xf32, #tpu.memory_space<vmem>>, vector<128x32xf32>
    %c0_18 = arith.constant 0 : index
    %c0_19 = arith.constant 0 : index
    %25 = vector.load %arg12[%c0_18, %c0_19] : memref<256x128xf32, #tpu.memory_space<vmem>>, vector<32x128xf32>
    %c128 = arith.constant 128 : index
    %c0_20 = arith.constant 0 : index
    %26 = vector.load %arg12[%c128, %c0_20] : memref<256x128xf32, #tpu.memory_space<vmem>>, vector<32x128xf32>
    %cst_21 = arith.constant dense<0.000000e+00> : vector<128x128xf32>
    %27 = tpu.matmul %24, %25, %cst_21 {dimension_numbers = #tpu.dot_dimension_numbers<[1], [0], [0], [1], [0, 0, 1, 1], [], []>} : vector<128x32xf32>, vector<32x128xf32>, vector<128x128xf32> -> vector<128x128xf32>
    %c0_22 = arith.constant 0 : index
    %c0_23 = arith.constant 0 : index
    %28 = vector.load %arg9[%c0_22, %c0_23] : memref<128x128xf32, #tpu.memory_space<vmem>>, vector<128x128xf32>
    %29 = arith.addf %27, %28 : vector<128x128xf32>
    %cst_24 = arith.constant dense<0xFF800000> : vector<128xf32>
    %30 = vector.multi_reduction <maximumf>, %29, %cst_24 [1] : vector<128x128xf32> to vector<128xf32>
    %31 = vector.shape_cast %30 : vector<128xf32> to vector<128x1xf32>
    %32 = vector.broadcast %31 : vector<128x1xf32> to vector<128x128xf32>
    %33 = arith.subf %29, %32 : vector<128x128xf32>
    %34 = math.exp %33 : vector<128x128xf32>
    %cst_25 = arith.constant dense<0.000000e+00> : vector<128xf32>
    %35 = vector.multi_reduction <add>, %34, %cst_25 [1] : vector<128x128xf32> to vector<128xf32>
    %36 = vector.shape_cast %35 : vector<128xf32> to vector<128x1xf32>
    %37 = tpu.reciprocal %36 : vector<128x1xf32> -> vector<128x1xf32>
    %c0_26 = arith.constant 0 : index
    %c0_27 = arith.constant 0 : index
    %c0_28 = arith.constant 0 : index
    %38 = vector.load %arg8[%c0_26, %c0_27, %c0_28] : memref<4x128x128xf32, #tpu.memory_space<vmem>>, vector<1x128x128xf32>
    %39 = vector.shape_cast %38 : vector<1x128x128xf32> to vector<128x128xf32>
    %40 = arith.mulf %34, %39 : vector<128x128xf32>
    %cst_29 = arith.constant dense<0.000000e+00> : vector<128x32xf32>
    %41 = tpu.matmul %40, %26, %cst_29 {dimension_numbers = #tpu.dot_dimension_numbers<[1], [1], [0], [0], [0, 0, 1, 0], [], []>} : vector<128x128xf32>, vector<32x128xf32>, vector<128x32xf32> -> vector<128x32xf32>
    %42 = vector.broadcast %37 : vector<128x1xf32> to vector<128x32xf32>
    %43 = arith.mulf %41, %42 : vector<128x32xf32>
    %c0_30 = arith.constant 0 : index
    %c0_31 = arith.constant 0 : index
    %c0_32 = arith.constant 0 : index
    %44 = vector.load %arg6[%c0_30, %c0_31, %c0_32] : memref<4x32x128xf32, #tpu.memory_space<vmem>>, vector<1x32x128xf32>
    %45 = vector.shape_cast %44 : vector<1x32x128xf32> to vector<32x128xf32>
    %cst_33 = arith.constant dense<0.000000e+00> : vector<128x128xf32>
    %46 = tpu.matmul %43, %45, %cst_33 {dimension_numbers = #tpu.dot_dimension_numbers<[1], [0], [0], [1], [0, 0, 1, 1], [], []>} : vector<128x32xf32>, vector<32x128xf32>, vector<128x128xf32> -> vector<128x128xf32>
    %c0_34 = arith.constant 0 : index
    %c0_35 = arith.constant 0 : index
    %47 = vector.load %arg13[%c0_34, %c0_35] : memref<128x128xf32, #tpu.memory_space<vmem>>, vector<128x128xf32>
    tpu.vector_store %arg13[%c0_34, %c0_35], %46 {strides = array<i32>} : memref<128x128xf32, #tpu.memory_space<vmem>>, vector<128x128xf32>,
    %c0_36 = arith.constant 0 : index
    %c32 = arith.constant 32 : index
    %48 = vector.load %arg11[%c0_36, %c32] : memref<128x128xf32, #tpu.memory_space<vmem>>, vector<128x32xf32>
    %c32_37 = arith.constant 32 : index
    %c0_38 = arith.constant 0 : index
    %49 = vector.load %arg12[%c32_37, %c0_38] : memref<256x128xf32, #tpu.memory_space<vmem>>, vector<32x128xf32>
    %c160 = arith.constant 160 : index
    %c0_39 = arith.constant 0 : index
    %50 = vector.load %arg12[%c160, %c0_39] : memref<256x128xf32, #tpu.memory_space<vmem>>, vector<32x128xf32>
    %cst_40 = arith.constant dense<0.000000e+00> : vector<128x128xf32>
    %51 = tpu.matmul %48, %49, %cst_40 {dimension_numbers = #tpu.dot_dimension_numbers<[1], [0], [0], [1], [0, 0, 1, 1], [], []>} : vector<128x32xf32>, vector<32x128xf32>, vector<128x128xf32> -> vector<128x128xf32>
    %c0_41 = arith.constant 0 : index
    %c0_42 = arith.constant 0 : index
    %52 = vector.load %arg9[%c0_41, %c0_42] : memref<128x128xf32, #tpu.memory_space<vmem>>, vector<128x128xf32>
    %53 = arith.addf %51, %52 : vector<128x128xf32>
    %cst_43 = arith.constant dense<0xFF800000> : vector<128xf32>
    %54 = vector.multi_reduction <maximumf>, %53, %cst_43 [1] : vector<128x128xf32> to vector<128xf32>
    %55 = vector.shape_cast %54 : vector<128xf32> to vector<128x1xf32>
    %56 = vector.broadcast %55 : vector<128x1xf32> to vector<128x128xf32>
    %57 = arith.subf %53, %56 : vector<128x128xf32>
    %58 = math.exp %57 : vector<128x128xf32>
    %cst_44 = arith.constant dense<0.000000e+00> : vector<128xf32>
    %59 = vector.multi_reduction <add>, %58, %cst_44 [1] : vector<128x128xf32> to vector<128xf32>
    %60 = vector.shape_cast %59 : vector<128xf32> to vector<128x1xf32>
    %61 = tpu.reciprocal %60 : vector<128x1xf32> -> vector<128x1xf32>
    %c1 = arith.constant 1 : index
    %c0_45 = arith.constant 0 : index
    %c0_46 = arith.constant 0 : index
    %62 = vector.load %arg8[%c1, %c0_45, %c0_46] : memref<4x128x128xf32, #tpu.memory_space<vmem>>, vector<1x128x128xf32>
    %63 = vector.shape_cast %62 : vector<1x128x128xf32> to vector<128x128xf32>
    %64 = arith.mulf %58, %63 : vector<128x128xf32>
    %cst_47 = arith.constant dense<0.000000e+00> : vector<128x32xf32>
    %65 = tpu.matmul %64, %50, %cst_47 {dimension_numbers = #tpu.dot_dimension_numbers<[1], [1], [0], [0], [0, 0, 1, 0], [], []>} : vector<128x128xf32>, vector<32x128xf32>, vector<128x32xf32> -> vector<128x32xf32>
    %66 = vector.broadcast %61 : vector<128x1xf32> to vector<128x32xf32>
    %67 = arith.mulf %65, %66 : vector<128x32xf32>
    %c1_48 = arith.constant 1 : index
    %c0_49 = arith.constant 0 : index
    %c0_50 = arith.constant 0 : index
    %68 = vector.load %arg6[%c1_48, %c0_49, %c0_50] : memref<4x32x128xf32, #tpu.memory_space<vmem>>, vector<1x32x128xf32>
    %69 = vector.shape_cast %68 : vector<1x32x128xf32> to vector<32x128xf32>
    %cst_51 = arith.constant dense<0.000000e+00> : vector<128x128xf32>
    %70 = tpu.matmul %67, %69, %cst_51 {dimension_numbers = #tpu.dot_dimension_numbers<[1], [0], [0], [1], [0, 0, 1, 1], [], []>} : vector<128x32xf32>, vector<32x128xf32>, vector<128x128xf32> -> vector<128x128xf32>
    %c0_52 = arith.constant 0 : index
    %c0_53 = arith.constant 0 : index
    %71 = vector.load %arg13[%c0_52, %c0_53] : memref<128x128xf32, #tpu.memory_space<vmem>>, vector<128x128xf32>
    %72 = arith.addf %71, %70 : vector<128x128xf32>
    %c0_54 = arith.constant 0 : index
    %c0_55 = arith.constant 0 : index
    %73 = vector.load %arg13[%c0_54, %c0_55] : memref<128x128xf32, #tpu.memory_space<vmem>>, vector<128x128xf32>
    tpu.vector_store %arg13[%c0_54, %c0_55], %72 {strides = array<i32>} : memref<128x128xf32, #tpu.memory_space<vmem>>, vector<128x128xf32>,
    %c0_56 = arith.constant 0 : index
    %c64 = arith.constant 64 : index
    %74 = vector.load %arg11[%c0_56, %c64] : memref<128x128xf32, #tpu.memory_space<vmem>>, vector<128x32xf32>
    %c64_57 = arith.constant 64 : index
    %c0_58 = arith.constant 0 : index
    %75 = vector.load %arg12[%c64_57, %c0_58] : memref<256x128xf32, #tpu.memory_space<vmem>>, vector<32x128xf32>
    %c192 = arith.constant 192 : index
    %c0_59 = arith.constant 0 : index
    %76 = vector.load %arg12[%c192, %c0_59] : memref<256x128xf32, #tpu.memory_space<vmem>>, vector<32x128xf32>
    %cst_60 = arith.constant dense<0.000000e+00> : vector<128x128xf32>
    %77 = tpu.matmul %74, %75, %cst_60 {dimension_numbers = #tpu.dot_dimension_numbers<[1], [0], [0], [1], [0, 0, 1, 1], [], []>} : vector<128x32xf32>, vector<32x128xf32>, vector<128x128xf32> -> vector<128x128xf32>
    %c0_61 = arith.constant 0 : index
    %c0_62 = arith.constant 0 : index
    %78 = vector.load %arg9[%c0_61, %c0_62] : memref<128x128xf32, #tpu.memory_space<vmem>>, vector<128x128xf32>
    %79 = arith.addf %77, %78 : vector<128x128xf32>
    %cst_63 = arith.constant dense<0xFF800000> : vector<128xf32>
    %80 = vector.multi_reduction <maximumf>, %79, %cst_63 [1] : vector<128x128xf32> to vector<128xf32>
    %81 = vector.shape_cast %80 : vector<128xf32> to vector<128x1xf32>
    %82 = vector.broadcast %81 : vector<128x1xf32> to vector<128x128xf32>
    %83 = arith.subf %79, %82 : vector<128x128xf32>
    %84 = math.exp %83 : vector<128x128xf32>
    %cst_64 = arith.constant dense<0.000000e+00> : vector<128xf32>
    %85 = vector.multi_reduction <add>, %84, %cst_64 [1] : vector<128x128xf32> to vector<128xf32>
    %86 = vector.shape_cast %85 : vector<128xf32> to vector<128x1xf32>
    %87 = tpu.reciprocal %86 : vector<128x1xf32> -> vector<128x1xf32>
    %c2 = arith.constant 2 : index
    %c0_65 = arith.constant 0 : index
    %c0_66 = arith.constant 0 : index
    %88 = vector.load %arg8[%c2, %c0_65, %c0_66] : memref<4x128x128xf32, #tpu.memory_space<vmem>>, vector<1x128x128xf32>
    %89 = vector.shape_cast %88 : vector<1x128x128xf32> to vector<128x128xf32>
    %90 = arith.mulf %84, %89 : vector<128x128xf32>
    %cst_67 = arith.constant dense<0.000000e+00> : vector<128x32xf32>
    %91 = tpu.matmul %90, %76, %cst_67 {dimension_numbers = #tpu.dot_dimension_numbers<[1], [1], [0], [0], [0, 0, 1, 0], [], []>} : vector<128x128xf32>, vector<32x128xf32>, vector<128x32xf32> -> vector<128x32xf32>
    %92 = vector.broadcast %87 : vector<128x1xf32> to vector<128x32xf32>
    %93 = arith.mulf %91, %92 : vector<128x32xf32>
    %c2_68 = arith.constant 2 : index
    %c0_69 = arith.constant 0 : index
    %c0_70 = arith.constant 0 : index
    %94 = vector.load %arg6[%c2_68, %c0_69, %c0_70] : memref<4x32x128xf32, #tpu.memory_space<vmem>>, vector<1x32x128xf32>
    %95 = vector.shape_cast %94 : vector<1x32x128xf32> to vector<32x128xf32>
    %cst_71 = arith.constant dense<0.000000e+00> : vector<128x128xf32>
    %96 = tpu.matmul %93, %95, %cst_71 {dimension_numbers = #tpu.dot_dimension_numbers<[1], [0], [0], [1], [0, 0, 1, 1], [], []>} : vector<128x32xf32>, vector<32x128xf32>, vector<128x128xf32> -> vector<128x128xf32>
    %c0_72 = arith.constant 0 : index
    %c0_73 = arith.constant 0 : index
    %97 = vector.load %arg13[%c0_72, %c0_73] : memref<128x128xf32, #tpu.memory_space<vmem>>, vector<128x128xf32>
    %98 = arith.addf %97, %96 : vector<128x128xf32>
    %c0_74 = arith.constant 0 : index
    %c0_75 = arith.constant 0 : index
    %99 = vector.load %arg13[%c0_74, %c0_75] : memref<128x128xf32, #tpu.memory_space<vmem>>, vector<128x128xf32>
    tpu.vector_store %arg13[%c0_74, %c0_75], %98 {strides = array<i32>} : memref<128x128xf32, #tpu.memory_space<vmem>>, vector<128x128xf32>,
    %c0_76 = arith.constant 0 : index
    %c96 = arith.constant 96 : index
    %100 = vector.load %arg11[%c0_76, %c96] : memref<128x128xf32, #tpu.memory_space<vmem>>, vector<128x32xf32>
    %c96_77 = arith.constant 96 : index
    %c0_78 = arith.constant 0 : index
    %101 = vector.load %arg12[%c96_77, %c0_78] : memref<256x128xf32, #tpu.memory_space<vmem>>, vector<32x128xf32>
    %c224 = arith.constant 224 : index
    %c0_79 = arith.constant 0 : index
    %102 = vector.load %arg12[%c224, %c0_79] : memref<256x128xf32, #tpu.memory_space<vmem>>, vector<32x128xf32>
    %cst_80 = arith.constant dense<0.000000e+00> : vector<128x128xf32>
    %103 = tpu.matmul %100, %101, %cst_80 {dimension_numbers = #tpu.dot_dimension_numbers<[1], [0], [0], [1], [0, 0, 1, 1], [], []>} : vector<128x32xf32>, vector<32x128xf32>, vector<128x128xf32> -> vector<128x128xf32>
    %c0_81 = arith.constant 0 : index
    %c0_82 = arith.constant 0 : index
    %104 = vector.load %arg9[%c0_81, %c0_82] : memref<128x128xf32, #tpu.memory_space<vmem>>, vector<128x128xf32>
    %105 = arith.addf %103, %104 : vector<128x128xf32>
    %cst_83 = arith.constant dense<0xFF800000> : vector<128xf32>
    %106 = vector.multi_reduction <maximumf>, %105, %cst_83 [1] : vector<128x128xf32> to vector<128xf32>
    %107 = vector.shape_cast %106 : vector<128xf32> to vector<128x1xf32>
    %108 = vector.broadcast %107 : vector<128x1xf32> to vector<128x128xf32>
    %109 = arith.subf %105, %108 : vector<128x128xf32>
    %110 = math.exp %109 : vector<128x128xf32>
    %cst_84 = arith.constant dense<0.000000e+00> : vector<128xf32>
    %111 = vector.multi_reduction <add>, %110, %cst_84 [1] : vector<128x128xf32> to vector<128xf32>
    %112 = vector.shape_cast %111 : vector<128xf32> to vector<128x1xf32>
    %113 = tpu.reciprocal %112 : vector<128x1xf32> -> vector<128x1xf32>
    %c3 = arith.constant 3 : index
    %c0_85 = arith.constant 0 : index
    %c0_86 = arith.constant 0 : index
    %114 = vector.load %arg8[%c3, %c0_85, %c0_86] : memref<4x128x128xf32, #tpu.memory_space<vmem>>, vector<1x128x128xf32>
    %115 = vector.shape_cast %114 : vector<1x128x128xf32> to vector<128x128xf32>
    %116 = arith.mulf %110, %115 : vector<128x128xf32>
    %cst_87 = arith.constant dense<0.000000e+00> : vector<128x32xf32>
    %117 = tpu.matmul %116, %102, %cst_87 {dimension_numbers = #tpu.dot_dimension_numbers<[1], [1], [0], [0], [0, 0, 1, 0], [], []>} : vector<128x128xf32>, vector<32x128xf32>, vector<128x32xf32> -> vector<128x32xf32>
    %118 = vector.broadcast %113 : vector<128x1xf32> to vector<128x32xf32>
    %119 = arith.mulf %117, %118 : vector<128x32xf32>
    %c3_88 = arith.constant 3 : index
    %c0_89 = arith.constant 0 : index
    %c0_90 = arith.constant 0 : index
    %120 = vector.load %arg6[%c3_88, %c0_89, %c0_90] : memref<4x32x128xf32, #tpu.memory_space<vmem>>, vector<1x32x128xf32>
    %121 = vector.shape_cast %120 : vector<1x32x128xf32> to vector<32x128xf32>
    %cst_91 = arith.constant dense<0.000000e+00> : vector<128x128xf32>
    %122 = tpu.matmul %119, %121, %cst_91 {dimension_numbers = #tpu.dot_dimension_numbers<[1], [0], [0], [1], [0, 0, 1, 1], [], []>} : vector<128x32xf32>, vector<32x128xf32>, vector<128x128xf32> -> vector<128x128xf32>
    %c0_92 = arith.constant 0 : index
    %c0_93 = arith.constant 0 : index
    %123 = vector.load %arg13[%c0_92, %c0_93] : memref<128x128xf32, #tpu.memory_space<vmem>>, vector<128x128xf32>
    %124 = arith.addf %123, %122 : vector<128x128xf32>
    %c0_94 = arith.constant 0 : index
    %c0_95 = arith.constant 0 : index
    %125 = vector.load %arg13[%c0_94, %c0_95] : memref<128x128xf32, #tpu.memory_space<vmem>>, vector<128x128xf32>
    tpu.vector_store %arg13[%c0_94, %c0_95], %124 {strides = array<i32>} : memref<128x128xf32, #tpu.memory_space<vmem>>, vector<128x128xf32>,
    %c0_96 = arith.constant 0 : index
    %c0_97 = arith.constant 0 : index
    %126 = vector.load %arg13[%c0_96, %c0_97] : memref<128x128xf32, #tpu.memory_space<vmem>>, vector<128x128xf32>
    %c0_98 = arith.constant 0 : index
    %c0_99 = arith.constant 0 : index
    %127 = vector.load %arg7[%c0_98, %c0_99] : memref<1x128xf32, #tpu.memory_space<vmem>>, vector<1x128xf32>
    %128 = vector.broadcast %127 : vector<1x128xf32> to vector<128x128xf32>
    %129 = arith.addf %126, %128 : vector<128x128xf32>
    %c0_100 = arith.constant 0 : index
    %c0_101 = arith.constant 0 : index
    %c0_102 = arith.constant 0 : index
    %130 = vector.load %arg10[%c0_100, %c0_101, %c0_102] : memref<1x128x128xf32, #tpu.memory_space<vmem>>, vector<1x128x128xf32>
    %131 = vector.shape_cast %130 : vector<1x128x128xf32> to vector<128x128xf32>
    %132 = vector.shape_cast %129 : vector<128x128xf32> to vector<1x128x128xf32>
    tpu.vector_store %arg10[%c0_100, %c0_101, %c0_102], %132 {strides = array<i32>} : memref<1x128x128xf32, #tpu.memory_space<vmem>>, vector<1x128x128xf32>,
    return
  }
  func.func @transform_0(%arg0: i32) -> (i32, i32, i32) {
    %c0_i32 = arith.constant 0 : i32
    %c0_i32_0 = arith.constant 0 : i32
    %c0_i32_1 = arith.constant 0 : i32
    return %arg0, %c0_i32, %c0_i32_0 : i32, i32, i32
  }
  func.func @transform_1(%arg0: i32) -> (i32, i32) {
    %c0_i32 = arith.constant 0 : i32
    %c0_i32_0 = arith.constant 0 : i32
    %c0_i32_1 = arith.constant 0 : i32
    return %c0_i32, %c0_i32_0 : i32, i32
  }
  func.func @transform_2(%arg0: i32) -> (i32, i32) {
    %c0_i32 = arith.constant 0 : i32
    %c0_i32_0 = arith.constant 0 : i32
    %c0_i32_1 = arith.constant 0 : i32
    return %c0_i32, %c0_i32_0 : i32, i32
  }
  func.func @transform_3(%arg0: i32) -> (i32, i32) {
    %c0_i32 = arith.constant 0 : i32
    %c0_i32_0 = arith.constant 0 : i32
    %c0_i32_1 = arith.constant 0 : i32
    return %c0_i32, %c0_i32_0 : i32, i32
  }
  func.func @transform_4(%arg0: i32) -> (i32, i32) {
    %c0_i32 = arith.constant 0 : i32
    %c0_i32_0 = arith.constant 0 : i32
    %c0_i32_1 = arith.constant 0 : i32
    return %c0_i32, %c0_i32_0 : i32, i32
  }
  func.func @transform_5(%arg0: i32) -> (i32, i32, i32) {
    %c0_i32 = arith.constant 0 : i32
    %c0_i32_0 = arith.constant 0 : i32
    %c0_i32_1 = arith.constant 0 : i32
    %c0_i32_2 = arith.constant 0 : i32
    return %c0_i32, %c0_i32_0, %c0_i32_1 : i32, i32, i32
  }
  func.func @transform_6(%arg0: i32) -> (i32, i32) {
    %c0_i32 = arith.constant 0 : i32
    %c0_i32_0 = arith.constant 0 : i32
    %c0_i32_1 = arith.constant 0 : i32
    return %c0_i32, %c0_i32_0 : i32, i32
  }
  func.func @transform_7(%arg0: i32) -> (i32, i32, i32) {
    %c0_i32 = arith.constant 0 : i32
    %c0_i32_0 = arith.constant 0 : i32
    %c0_i32_1 = arith.constant 0 : i32
    %c0_i32_2 = arith.constant 0 : i32
    return %c0_i32, %c0_i32_0, %c0_i32_1 : i32, i32, i32
  }
  func.func @transform_8(%arg0: i32) -> (i32, i32) {
    %c0_i32 = arith.constant 0 : i32
    %c0_i32_0 = arith.constant 0 : i32
    %c0_i32_1 = arith.constant 0 : i32
    return %c0_i32, %c0_i32_0 : i32, i32
  }
  func.func @transform_9(%arg0: i32) -> (i32, i32, i32) {
    %c0_i32 = arith.constant 0 : i32
    %c0_i32_0 = arith.constant 0 : i32
    %c0_i32_1 = arith.constant 0 : i32
    return %arg0, %c0_i32, %c0_i32_0 : i32, i32, i32
  }
}

</mosaic_0001>

<llo_original>
// kernel: tpu_custom_call.1
$region0: #{tpu_custom_call.1}
  #allocation0 [shape = 'u32[]', space=smem, size = 0x4, offset = 0x4, fixed_abs, tag = 'smem constant byte address 0x4 - core index']
  #allocation1 [shape = 'u32[144,128]{1,0:T(1,128)}', space=vmem, size = 0x12000, scoped, tag = 'internal scratch']
  #allocation2 [shape = 'f32[128,128]{1,0:T(8,128)}', space=vmem, size = 0x10000, scoped, tag = 'scratch operand']
  #allocation3 [shape = 'f32[256,128]{1,0:T(8,128)}', space=vmem, size = 0x20000, scoped, tag = 'scratch operand']
  #allocation4 [shape = 'f32[128,128]{1,0:T(8,128)}', space=vmem, size = 0x10000, scoped, tag = 'scratch operand']
  %s0 = inlined_call_operand.vmem [shape: f32[2,128,128], index: 0, kind: input, shape index: {}]
  %s1 = inlined_call_operand.hbm [shape: f32[128,128], index: 1, kind: input, shape index: {}]
  %s2 = inlined_call_operand.vmem [shape: f32[1,128], index: 2, kind: input, shape index: {}]
  %s3 = inlined_call_operand.hbm [shape: f32[256,128], index: 3, kind: input, shape index: {}]
  %s4 = inlined_call_operand.vmem [shape: f32[256,1], index: 4, kind: input, shape index: {}]
  %s5 = inlined_call_operand.hbm [shape: f32[4,32,128], index: 5, kind: input, shape index: {}]
  %s6 = inlined_call_operand.vmem [shape: f32[1,128], index: 6, kind: input, shape index: {}]
  %s7 = inlined_call_operand.hbm [shape: f32[4,128,128], index: 7, kind: input, shape index: {}]
  %s8 = inlined_call_operand.hbm [shape: f32[128,128], index: 8, kind: input, shape index: {}]
  %s9 = inlined_call_operand.hbm [shape: f32[2,128,128], index: 9, kind: output, shape index: {}]
  %s10 = sld [smem:[#allocation0]]
  $region89: #{tpu_custom_call.1} parent=0
    _
  %s12 = ssub.s32 1, %s10
  %s13 = scalar_select 0, %s12, %s10
  $region1: #{tpu_custom_call.1} parent=0
    #allocation5 [shape = 'u8[65536]{0}', space=vmem, size = 0x10000, scoped, tag = 'input window, operand 1, single buffered']
    #allocation6 [shape = 's32[2]{0}', space=sflag, size = 0x8, scoped, tag = 'scoped memory for tpu_custom_call.1']
    #allocation7 [shape = 's32[2]{0}', space=sflag, size = 0x8, scoped, tag = 'scoped memory for tpu_custom_call.1']
    #allocation8 [shape = 'u8[131072]{0}', space=vmem, size = 0x20000, scoped, tag = 'input window, operand 3, single buffered']
    #allocation9 [shape = 's32[1]{0}', space=sflag, size = 0x4, scoped, tag = 'scoped memory for tpu_custom_call.1']
    #allocation10 [shape = 'u8[65536]{0}', space=vmem, size = 0x10000, scoped, tag = 'input window, operand 5, single buffered']
    #allocation11 [shape = 'u8[262144]{0}', space=vmem, size = 0x40000, scoped, tag = 'input window, operand 7, single buffered']
    #allocation12 [shape = 's32[1]{0}', space=sflag, size = 0x4, scoped, tag = 'scoped memory for tpu_custom_call.1']
    #allocation13 [shape = 'u8[65536]{0}', space=vmem, size = 0x10000, scoped, tag = 'input window, operand 8, single buffered']
    #allocation14 [shape = 'u8[131072]{0}', space=vmem, size = 0x20000, scoped, tag = 'output window, operand 0']
    %14 = vsyncpa [#allocation6], 0
    %15 = vsyncpa [#allocation9], 0
    %16 = vsyncpa [#allocation12], 0
    %17 = vsyncpa [#allocation7], 0
    %s18 = scalar_lea.sflag [#allocation7], 1
    %19 = vsyncpa %s18, 0
    loop: start=0, step=1, limit=4
    $region2: #{tpu_custom_call.1} parent=1 // loop_pre_header
      _
    $region3: #{tpu_custom_call.1} parent=1 // loop_header
      %s21 = sphi 0, %s25
      %p22 = scmp.ge.s32.totalorder %s21, 4
      %s31 = sphi 0, %s33
      %s34 = sphi 0, %s31
      %s35 = sphi 0, %s34
      %s51 = sphi 0, %s35
      %s55 = sphi 0, %s55
      %s57 = sphi 0, %s55
      %s58 = sphi 0, %s57
      %s72 = sphi 0, %s58
      %s76 = sphi 0, %s76
      %s78 = sphi 0, %s76
      %s79 = sphi 0, %s78
      %s93 = sphi 0, %s79
      %s97 = sphi 0, %s97
      %s99 = sphi 0, %s97
      %s100 = sphi 0, %s99
      %s114 = sphi 0, %s100
      %s118 = sphi 0, %s118
      %s120 = sphi 0, %s118
      %s121 = sphi 0, %s120
      %s135 = sphi 0, %s121
      %s139 = sphi 0, %s139
      %s141 = sphi 0, %s139
      %s142 = sphi 0, %s141
      %s156 = sphi 0, %s142
      %s160 = sphi 0, %s160
      %s162 = sphi 0, %s160
      %s163 = sphi 0, %s162
      %s177 = sphi 0, %s163
      %s181 = sphi 0, %s181
      %s183 = sphi 0, %s181
      %s184 = sphi 0, %s183
      %s198 = sphi 0, %s184
      %s202 = sphi 0, %s202
      %s204 = sphi 0, %s202
      %s205 = sphi 0, %s204
      %s219 = sphi 0, %s205
      %s225 = sphi 0, %s227
      %s228 = sphi 0, %s225
      %s229 = sphi 0, %s228
      %s245 = sphi 0, %s229
    $region4: #{tpu_custom_call.1} parent=1 // loop_header_branch
      %24 = sbr.rel (%p22) target = $region8
    $region5: #{tpu_custom_call.1} parent=1 // loop_body
      %s26 = ssub.s32 %s21, 1
      %s27 = ssub.s32 %s21, 2
      %s28 = sadd.s32 %s21, 1
      %s29 = ssub.s32 %s21, %s28
      %p30 = scmp.eq.s32.totalorder %s29, 0
      %s32 = sadd.s32 %s31, 1
      %s33 = scalar_select %p30, %s31, %s32
      %p36 = pneg %p30
      %p37 = scmp.eq.s32.totalorder %s21, 1
      %p38 = por %p36, %p37
      %p39 = scmp.ne.s32.totalorder %s31, %s34
      %p40 = scmp.eq.s32.totalorder %s21, 0
      %p41 = por %p39, %p40
      %p42 = scmp.ne.s32.totalorder %s31, %s34
      %p43 = scmp.eq.s32.totalorder %s26, 1
      %p44 = por %p42, %p43
      %p45 = scmp.ne.s32.totalorder %s34, %s35
      %p46 = scmp.eq.s32.totalorder %s26, 0
      %p47 = por %p45, %p46
      %p48 = scmp.ne.s32.totalorder %s34, %s35
      %p49 = scmp.eq.s32.totalorder %s27, 1
      %p50 = por %p48, %p49
      %p52 = scmp.ne.s32.totalorder %s35, %s51
      %p53 = scmp.eq.s32.totalorder %s27, 0
      %p54 = por %p52, %p53
      %s56 = sadd.s32 %s55, 1
      %p59 = scmp.eq.s32.totalorder %s21, 1
      %p60 = scmp.ne.s32.totalorder %s55, %s57
      %p61 = scmp.eq.s32.totalorder %s21, 0
      %p62 = por %p60, %p61
      %p63 = scmp.ne.s32.totalorder %s55, %s57
      %p64 = scmp.eq.s32.totalorder %s26, 1
      %p65 = por %p63, %p64
      %p66 = scmp.ne.s32.totalorder %s57, %s58
      %p67 = scmp.eq.s32.totalorder %s26, 0
      %p68 = por %p66, %p67
      %p69 = scmp.ne.s32.totalorder %s57, %s58
      %p70 = scmp.eq.s32.totalorder %s27, 1
      %p71 = por %p69, %p70
      %p73 = scmp.ne.s32.totalorder %s58, %s72
      %p74 = scmp.eq.s32.totalorder %s27, 0
      %p75 = por %p73, %p74
      %s77 = sadd.s32 %s76, 1
      %p80 = scmp.eq.s32.totalorder %s21, 1
      %p81 = scmp.ne.s32.totalorder %s76, %s78
      %p82 = scmp.eq.s32.totalorder %s21, 0
      %p83 = por %p81, %p82
      %p84 = scmp.ne.s32.totalorder %s76, %s78
      %p85 = scmp.eq.s32.totalorder %s26, 1
      %p86 = por %p84, %p85
      %p87 = scmp.ne.s32.totalorder %s78, %s79
      %p88 = scmp.eq.s32.totalorder %s26, 0
      %p89 = por %p87, %p88
      %p90 = scmp.ne.s32.totalorder %s78, %s79
      %p91 = scmp.eq.s32.totalorder %s27, 1
      %p92 = por %p90, %p91
      %p94 = scmp.ne.s32.totalorder %s79, %s93
      %p95 = scmp.eq.s32.totalorder %s27, 0
      %p96 = por %p94, %p95
      %s98 = sadd.s32 %s97, 1
      %p101 = scmp.eq.s32.totalorder %s21, 1
      %p102 = scmp.ne.s32.totalorder %s97, %s99
      %p103 = scmp.eq.s32.totalorder %s21, 0
      %p104 = por %p102, %p103
      %p105 = scmp.ne.s32.totalorder %s97, %s99
      %p106 = scmp.eq.s32.totalorder %s26, 1
      %p107 = por %p105, %p106
      %p108 = scmp.ne.s32.totalorder %s99, %s100
      %p109 = scmp.eq.s32.totalorder %s26, 0
      %p110 = por %p108, %p109
      %p111 = scmp.ne.s32.totalorder %s99, %s100
      %p112 = scmp.eq.s32.totalorder %s27, 1
      %p113 = por %p111, %p112
      %p115 = scmp.ne.s32.totalorder %s100, %s114
      %p116 = scmp.eq.s32.totalorder %s27, 0
      %p117 = por %p115, %p116
      %s119 = sadd.s32 %s118, 1
      %p122 = scmp.eq.s32.totalorder %s21, 1
      %p123 = scmp.ne.s32.totalorder %s118, %s120
      %p124 = scmp.eq.s32.totalorder %s21, 0
      %p125 = por %p123, %p124
      %p126 = scmp.ne.s32.totalorder %s118, %s120
      %p127 = scmp.eq.s32.totalorder %s26, 1
      %p128 = por %p126, %p127
      %p129 = scmp.ne.s32.totalorder %s120, %s121
      %p130 = scmp.eq.s32.totalorder %s26, 0
      %p131 = por %p129, %p130
      %p132 = scmp.ne.s32.totalorder %s120, %s121
      %p133 = scmp.eq.s32.totalorder %s27, 1
      %p134 = por %p132, %p133
      %p136 = scmp.ne.s32.totalorder %s121, %s135
      %p137 = scmp.eq.s32.totalorder %s27, 0
      %p138 = por %p136, %p137
      %s140 = sadd.s32 %s139, 1
      %p143 = scmp.eq.s32.totalorder %s21, 1
      %p144 = scmp.ne.s32.totalorder %s139, %s141
      %p145 = scmp.eq.s32.totalorder %s21, 0
      %p146 = por %p144, %p145
      %p147 = scmp.ne.s32.totalorder %s139, %s141
      %p148 = scmp.eq.s32.totalorder %s26, 1
      %p149 = por %p147, %p148
      %p150 = scmp.ne.s32.totalorder %s141, %s142
      %p151 = scmp.eq.s32.totalorder %s26, 0
      %p152 = por %p150, %p151
      %p153 = scmp.ne.s32.totalorder %s141, %s142
      %p154 = scmp.eq.s32.totalorder %s27, 1
      %p155 = por %p153, %p154
      %p157 = scmp.ne.s32.totalorder %s142, %s156
      %p158 = scmp.eq.s32.totalorder %s27, 0
      %p159 = por %p157, %p158
      %s161 = sadd.s32 %s160, 1
      %p164 = scmp.eq.s32.totalorder %s21, 1
      %p165 = scmp.ne.s32.totalorder %s160, %s162
      %p166 = scmp.eq.s32.totalorder %s21, 0
      %p167 = por %p165, %p166
      %p168 = scmp.ne.s32.totalorder %s160, %s162
      %p169 = scmp.eq.s32.totalorder %s26, 1
      %p170 = por %p168, %p169
      %p171 = scmp.ne.s32.totalorder %s162, %s163
      %p172 = scmp.eq.s32.totalorder %s26, 0
      %p173 = por %p171, %p172
      %p174 = scmp.ne.s32.totalorder %s162, %s163
      %p175 = scmp.eq.s32.totalorder %s27, 1
      %p176 = por %p174, %p175
      %p178 = scmp.ne.s32.totalorder %s163, %s177
      %p179 = scmp.eq.s32.totalorder %s27, 0
      %p180 = por %p178, %p179
      %s182 = sadd.s32 %s181, 1
      %p185 = scmp.eq.s32.totalorder %s21, 1
      %p186 = scmp.ne.s32.totalorder %s181, %s183
      %p187 = scmp.eq.s32.totalorder %s21, 0
      %p188 = por %p186, %p187
      %p189 = scmp.ne.s32.totalorder %s181, %s183
      %p190 = scmp.eq.s32.totalorder %s26, 1
      %p191 = por %p189, %p190
      %p192 = scmp.ne.s32.totalorder %s183, %s184
      %p193 = scmp.eq.s32.totalorder %s26, 0
      %p194 = por %p192, %p193
      %p195 = scmp.ne.s32.totalorder %s183, %s184
      %p196 = scmp.eq.s32.totalorder %s27, 1
      %p197 = por %p195, %p196
      %p199 = scmp.ne.s32.totalorder %s184, %s198
      %p200 = scmp.eq.s32.totalorder %s27, 0
      %p201 = por %p199, %p200
      %s203 = sadd.s32 %s202, 1
      %p206 = scmp.eq.s32.totalorder %s21, 1
      %p207 = scmp.ne.s32.totalorder %s202, %s204
      %p208 = scmp.eq.s32.totalorder %s21, 0
      %p209 = por %p207, %p208
      %p210 = scmp.ne.s32.totalorder %s202, %s204
      %p211 = scmp.eq.s32.totalorder %s26, 1
      %p212 = por %p210, %p211
      %p213 = scmp.ne.s32.totalorder %s204, %s205
      %p214 = scmp.eq.s32.totalorder %s26, 0
      %p215 = por %p213, %p214
      %p216 = scmp.ne.s32.totalorder %s204, %s205
      %p217 = scmp.eq.s32.totalorder %s27, 1
      %p218 = por %p216, %p217
      %p220 = scmp.ne.s32.totalorder %s205, %s219
      %p221 = scmp.eq.s32.totalorder %s27, 0
      %p222 = por %p220, %p221
      %s223 = ssub.s32 %s21, %s28
      %p224 = scmp.eq.s32.totalorder %s223, 0
      %s226 = sadd.s32 %s225, 1
      %s227 = scalar_select %p224, %s225, %s226
      %p230 = pneg %p224
      %p231 = scmp.eq.s32.totalorder %s21, 1
      %p232 = por %p230, %p231
      %p233 = scmp.ne.s32.totalorder %s225, %s228
      %p234 = scmp.eq.s32.totalorder %s21, 0
      %p235 = por %p233, %p234
      %p236 = scmp.ne.s32.totalorder %s225, %s228
      %p237 = scmp.eq.s32.totalorder %s26, 1
      %p238 = por %p236, %p237
      %p239 = scmp.ne.s32.totalorder %s228, %s229
      %p240 = scmp.eq.s32.totalorder %s26, 0
      %p241 = por %p239, %p240
      %p242 = scmp.ne.s32.totalorder %s228, %s229
      %p243 = scmp.eq.s32.totalorder %s27, 1
      %p244 = por %p242, %p243
      %p246 = scmp.ne.s32.totalorder %s229, %s245
      %p247 = scmp.eq.s32.totalorder %s27, 0
      %p248 = por %p246, %p247
      %p249 = scmp.le.s32.totalorder 1, %s21
      %p250 = scmp.lt.s32.totalorder %s21, 3
      %p251 = pnand %p249, %p250
      %p252 = pneg %p251
      // Predicated region
      $region9: #{tpu_custom_call.1} parent=5 // pred_check
        _
      $region10: #{tpu_custom_call.1} parent=5 // pred_check_branch
        %254 = sbr.rel (%p251) target = $region12
      $region11: #{tpu_custom_call.1} parent=5 // pred_region
        %s255 = ssub.s32 %s21, 1
        // Predicated region
        $region13: #{tpu_custom_call.1} parent=11 // pred_check
          %p256 = pneg %p68
        $region14: #{tpu_custom_call.1} parent=11 // pred_check_branch
          %258 = sbr.rel (%p256) target = $region16
        $region15: #{tpu_custom_call.1} parent=11 // pred_region
          %s260 = ssub.s32 2048, 2048
          %261 = vsyncadd [#allocation6], %s260
          %s262 = sshll.u32 [#allocation5], 4
          %s263 = int_to_ptr.vmem [resolvable:$true] %s262
          %268 = dma.hbm_to_vmem [thread:$0]  %s1, 2048, %s263, [#allocation6], 128, 128, 8
        $region16: #{tpu_custom_call.1} parent=11 // pred_fallthru
          _
        // Predicated region
        $region17: #{tpu_custom_call.1} parent=11 // pred_check
          %p269 = pneg %p89
        $region18: #{tpu_custom_call.1} parent=11 // pred_check_branch
          %271 = sbr.rel (%p269) target = $region20
        $region19: #{tpu_custom_call.1} parent=11 // pred_region
          _
        $region20: #{tpu_custom_call.1} parent=11 // pred_fallthru
          _
        // Predicated region
        $region21: #{tpu_custom_call.1} parent=11 // pred_check
          %p272 = pneg %p110
        $region22: #{tpu_custom_call.1} parent=11 // pred_check_branch
          %274 = sbr.rel (%p272) target = $region24
        $region23: #{tpu_custom_call.1} parent=11 // pred_region
          %s276 = ssub.s32 4096, 4096
          %277 = vsyncadd [#allocation9], %s276
          %s278 = sshll.u32 [#allocation8], 4
          %s279 = int_to_ptr.vmem [resolvable:$true] %s278
          %284 = dma.hbm_to_vmem [thread:$0]  %s3, 4096, %s279, [#allocation9], 128, 128, 8
        $region24: #{tpu_custom_call.1} parent=11 // pred_fallthru
          _
        // Predicated region
        $region25: #{tpu_custom_call.1} parent=11 // pred_check
          %p285 = pneg %p131
        $region26: #{tpu_custom_call.1} parent=11 // pred_check_branch
          %287 = sbr.rel (%p285) target = $region28
        $region27: #{tpu_custom_call.1} parent=11 // pred_region
          _
        $region28: #{tpu_custom_call.1} parent=11 // pred_fallthru
          _
        // Predicated region
        $region29: #{tpu_custom_call.1} parent=11 // pred_check
          %p288 = pneg %p152
        $region30: #{tpu_custom_call.1} parent=11 // pred_check_branch
          %290 = sbr.rel (%p288) target = $region32
        $region31: #{tpu_custom_call.1} parent=11 // pred_region
          %s292 = ssub.s32 2048, 2048
          %293 = vsyncadd [#allocation9], %s292
          %s294 = sshll.u32 [#allocation10], 4
          %s295 = int_to_ptr.vmem [resolvable:$true] %s294
          %300 = dma.hbm_to_vmem [thread:$0]  %s5, 2048, %s295, [#allocation9], 128, 128, 8
        $region32: #{tpu_custom_call.1} parent=11 // pred_fallthru
          _
        // Predicated region
        $region33: #{tpu_custom_call.1} parent=11 // pred_check
          %p301 = pneg %p173
        $region34: #{tpu_custom_call.1} parent=11 // pred_check_branch
          %303 = sbr.rel (%p301) target = $region36
        $region35: #{tpu_custom_call.1} parent=11 // pred_region
          _
        $region36: #{tpu_custom_call.1} parent=11 // pred_fallthru
          _
        // Predicated region
        $region37: #{tpu_custom_call.1} parent=11 // pred_check
          %p304 = pneg %p194
        $region38: #{tpu_custom_call.1} parent=11 // pred_check_branch
          %306 = sbr.rel (%p304) target = $region40
        $region39: #{tpu_custom_call.1} parent=11 // pred_region
          %s308 = ssub.s32 8192, 8192
          %309 = vsyncadd [#allocation12], %s308
          %s310 = sshll.u32 [#allocation11], 4
          %s311 = int_to_ptr.vmem [resolvable:$true] %s310
          %316 = dma.hbm_to_vmem [thread:$0]  %s7, 8192, %s311, [#allocation12], 128, 128, 8
        $region40: #{tpu_custom_call.1} parent=11 // pred_fallthru
          _
        // Predicated region
        $region41: #{tpu_custom_call.1} parent=11 // pred_check
          %p317 = pneg %p215
        $region42: #{tpu_custom_call.1} parent=11 // pred_check_branch
          %319 = sbr.rel (%p317) target = $region44
        $region43: #{tpu_custom_call.1} parent=11 // pred_region
          %s321 = ssub.s32 2048, 2048
          %322 = vsyncadd [#allocation12], %s321
          %s323 = sshll.u32 [#allocation13], 4
          %s324 = int_to_ptr.vmem [resolvable:$true] %s323
          %329 = dma.hbm_to_vmem [thread:$0]  %s8, 2048, %s324, [#allocation12], 128, 128, 8
        $region44: #{tpu_custom_call.1} parent=11 // pred_fallthru
          _
      $region12: #{tpu_custom_call.1} parent=5 // pred_fallthru
        _
      %p330 = scmp.lt.s32.totalorder %s21, 2
      // Predicated region
      $region45: #{tpu_custom_call.1} parent=5 // pred_check
        %p331 = pneg %p330
      $region46: #{tpu_custom_call.1} parent=5 // pred_check_branch
        %333 = sbr.rel (%p331) target = $region48
      $region47: #{tpu_custom_call.1} parent=5 // pred_region
        // Predicated region
        $region49: #{tpu_custom_call.1} parent=47 // pred_check
          %p334 = pneg %p41
        $region50: #{tpu_custom_call.1} parent=47 // pred_check_branch
          %336 = sbr.rel (%p334) target = $region52
        $region51: #{tpu_custom_call.1} parent=47 // pred_region
          %p337 = scmp.lt.s32.totalorder %s21, 1
          %s338 = scalar_select %p337, %s21, 1
          %s339 = smul.addr %s338, 16
          %s340 = smul.addr %s339, 8
          %s341 = scalar_lea.vmem %s0, %s340
        $region52: #{tpu_custom_call.1} parent=47 // pred_fallthru
          _
      $region48: #{tpu_custom_call.1} parent=5 // pred_fallthru
        _
      %p342 = scmp.le.s32.totalorder 1, %s21
      %p343 = scmp.lt.s32.totalorder %s21, 3
      %p344 = pnand %p342, %p343
      %p345 = pneg %p344
      // Predicated region
      $region53: #{tpu_custom_call.1} parent=5 // pred_check
        _
      $region54: #{tpu_custom_call.1} parent=5 // pred_check_branch
        %347 = sbr.rel (%p344) target = $region56
      $region55: #{tpu_custom_call.1} parent=5 // pred_region
        %s348 = ssub.s32 %s21, 1
        // Predicated region
        $region57: #{tpu_custom_call.1} parent=55 // pred_check
          %p349 = pneg %p68
        $region58: #{tpu_custom_call.1} parent=55 // pred_check_branch
          %351 = sbr.rel (%p349) target = $region60
        $region59: #{tpu_custom_call.1} parent=55 // pred_region
          %352 = dma.done [#allocation6], 2048
        $region60: #{tpu_custom_call.1} parent=55 // pred_fallthru
          _
        // Predicated region
        $region61: #{tpu_custom_call.1} parent=55 // pred_check
          %p353 = pneg %p110
        $region62: #{tpu_custom_call.1} parent=55 // pred_check_branch
          %355 = sbr.rel (%p353) target = $region64
        $region63: #{tpu_custom_call.1} parent=55 // pred_region
          %356 = dma.done [#allocation9], 4096
        $region64: #{tpu_custom_call.1} parent=55 // pred_fallthru
          _
        // Predicated region
        $region65: #{tpu_custom_call.1} parent=55 // pred_check
          %p357 = pneg %p152
        $region66: #{tpu_custom_call.1} parent=55 // pred_check_branch
          %359 = sbr.rel (%p357) target = $region68
        $region67: #{tpu_custom_call.1} parent=55 // pred_region
          %360 = dma.done [#allocation9], 2048
        $region68: #{tpu_custom_call.1} parent=55 // pred_fallthru
          _
        // Predicated region
        $region69: #{tpu_custom_call.1} parent=55 // pred_check
          %p361 = pneg %p194
        $region70: #{tpu_custom_call.1} parent=55 // pred_check_branch
          %363 = sbr.rel (%p361) target = $region72
        $region71: #{tpu_custom_call.1} parent=55 // pred_region
          %364 = dma.done [#allocation12], 8192
        $region72: #{tpu_custom_call.1} parent=55 // pred_fallthru
          _
        // Predicated region
        $region73: #{tpu_custom_call.1} parent=55 // pred_check
          %p365 = pneg %p215
        $region74: #{tpu_custom_call.1} parent=55 // pred_check_branch
          %367 = sbr.rel (%p365) target = $region76
        $region75: #{tpu_custom_call.1} parent=55 // pred_region
          %368 = dma.done [#allocation12], 2048
        $region76: #{tpu_custom_call.1} parent=55 // pred_fallthru
          _
        %p369 = scmp.lt.s32.totalorder %s26, 1
        %s370 = scalar_select %p369, %s26, 1
        %s371 = smul.addr %s370, 16
        %s372 = smul.addr %s371, 8
        %s373 = scalar_lea.vmem %s0, %s372
        %p374 = pneg %p47
        %p375 = pneg %p44
        %p376 = pneg %p68
        %p377 = pneg %p65
        %p378 = pneg %p89
        %p379 = pneg %p86
        %p380 = pneg %p110
        %p381 = pneg %p107
        %p382 = pneg %p131
        %p383 = pneg %p128
        %p384 = pneg %p152
        %p385 = pneg %p149
        %p386 = pneg %p173
        %p387 = pneg %p170
        %p388 = pneg %p194
        %p389 = pneg %p191
        %p390 = pneg %p215
        %p391 = pneg %p212
        %p392 = pneg %p241
        %p393 = pneg %p238
        %s394 = sand.u32 %s228, 1
        %s395 = scalar_lea.sflag [#allocation7], %s394
        %s396 = sand.u32 %s228, 1
        %s397 = smul.addr %s396, 128
        %s398 = scalar_lea.vmem [#allocation14], %s397
        %p399 = scmp.lt.s32.totalorder %s26, 1
        %s400 = scalar_select %p399, %s26, 1
        %s401 = smul.addr %s400, 16
        %s402 = smul.addr %s401, 8
        %s403 = scalar_lea.vmem %s0, %s402
        %v404 = vld [vmem:[%s403] sm:$0xff]
        %v405 = vld [vmem:[%s403 + $0x8] sm:$0xff]
        %v406 = vld [vmem:[%s403 + $0x10] sm:$0xff]
        %v407 = vld [vmem:[%s403 + $0x18] sm:$0xff]
        %v408 = vld [vmem:[%s403 + $0x20] sm:$0xff]
        %v409 = vld [vmem:[%s403 + $0x28] sm:$0xff]
        %v410 = vld [vmem:[%s403 + $0x30] sm:$0xff]
        %v411 = vld [vmem:[%s403 + $0x38] sm:$0xff]
        %v412 = vld [vmem:[%s403 + $0x40] sm:$0xff]
        %v413 = vld [vmem:[%s403 + $0x48] sm:$0xff]
        %v414 = vld [vmem:[%s403 + $0x50] sm:$0xff]
        %v415 = vld [vmem:[%s403 + $0x58] sm:$0xff]
        %v416 = vld [vmem:[%s403 + $0x60] sm:$0xff]
        %v417 = vld [vmem:[%s403 + $0x68] sm:$0xff]
        %v418 = vld [vmem:[%s403 + $0x70] sm:$0xff]
        %v419 = vld [vmem:[%s403 + $0x78] sm:$0xff]
        %v420 = vrot.slane %v404, 7
        %v421 = vrot.slane %v405, 7
        %v422 = vrot.slane %v406, 7
        %v423 = vrot.slane %v407, 7
        %v424 = vrot.slane %v408, 7
        %v425 = vrot.slane %v409, 7
        %v426 = vrot.slane %v410, 7
        %v427 = vrot.slane %v411, 7
        %v428 = vrot.slane %v412, 7
        %v429 = vrot.slane %v413, 7
        %v430 = vrot.slane %v414, 7
        %v431 = vrot.slane %v415, 7
        %v432 = vrot.slane %v416, 7
        %v433 = vrot.slane %v417, 7
        %v434 = vrot.slane %v418, 7
        %v435 = vrot.slane %v419, 7
        %v436 = vlaneseq
        %v437 = vshrl.u32 %v436, 7
        %vm438 = vcmp.lt.s32.totalorder %v437, 1
        %v439 = vsel %vm438, %v434, %v435
        %v440 = vsel %vm438, %v433, %v434
        %v441 = vsel %vm438, %v432, %v433
        %v442 = vsel %vm438, %v431, %v432
        %v443 = vsel %vm438, %v430, %v431
        %v444 = vsel %vm438, %v429, %v430
        %v445 = vsel %vm438, %v428, %v429
        %v446 = vsel %vm438, %v427, %v428
        %v447 = vsel %vm438, %v426, %v427
        %v448 = vsel %vm438, %v425, %v426
        %v449 = vsel %vm438, %v424, %v425
        %v450 = vsel %vm438, %v423, %v424
        %v451 = vsel %vm438, %v422, %v423
        %v452 = vsel %vm438, %v421, %v422
        %v453 = vsel %vm438, %v420, %v421
        %v454 = vsel %vm438, %v435, %v420
        %v455 = vadd.s32 %v437, 8
        %v456 = vadd.s32 %v437, 16
        %v457 = vadd.s32 %v437, 24
        %v458 = vadd.s32 %v437, 32
        %v459 = vadd.s32 %v437, 40
        %v460 = vadd.s32 %v437, 48
        %v461 = vadd.s32 %v437, 56
        %v462 = vadd.s32 %v437, 64
        %v463 = vadd.s32 %v437, 72
        %v464 = vadd.s32 %v437, 80
        %v465 = vadd.s32 %v437, 88
        %v466 = vadd.s32 %v437, 96
        %v467 = vadd.s32 %v437, 104
        %v468 = vadd.s32 %v437, 112
        %v469 = vadd.s32 %v437, 120
        %v470 = vlaneseq
        %v471 = vand.u32 %v470, 127
        %vm472 = vcmp.gt.s32.totalorder %v437, 0
        %vm473 = vcmp.gt.s32.totalorder %v455, 0
        %vm474 = vcmp.gt.s32.totalorder %v456, 0
        %vm475 = vcmp.gt.s32.totalorder %v457, 0
        %vm476 = vcmp.gt.s32.totalorder %v458, 0
        %vm477 = vcmp.gt.s32.totalorder %v459, 0
        %vm478 = vcmp.gt.s32.totalorder %v460, 0
        %vm479 = vcmp.gt.s32.totalorder %v461, 0
        %vm480 = vcmp.gt.s32.totalorder %v462, 0
        %vm481 = vcmp.gt.s32.totalorder %v463, 0
        %vm482 = vcmp.gt.s32.totalorder %v464, 0
        %vm483 = vcmp.gt.s32.totalorder %v465, 0
        %vm484 = vcmp.gt.s32.totalorder %v466, 0
        %vm485 = vcmp.gt.s32.totalorder %v467, 0
        %vm486 = vcmp.gt.s32.totalorder %v468, 0
        %vm487 = vcmp.gt.s32.totalorder %v469, 0
        %v488 = vsel %vm472, %v454, 0.0
        %v489 = vsel %vm473, %v453, 0.0
        %v490 = vsel %vm474, %v452, 0.0
        %v491 = vsel %vm475, %v451, 0.0
        %v492 = vsel %vm476, %v450, 0.0
        %v493 = vsel %vm477, %v449, 0.0
        %v494 = vsel %vm478, %v448, 0.0
        %v495 = vsel %vm479, %v447, 0.0
        %v496 = vsel %vm480, %v446, 0.0
        %v497 = vsel %vm481, %v445, 0.0
        %v498 = vsel %vm482, %v444, 0.0
        %v499 = vsel %vm483, %v443, 0.0
        %v500 = vsel %vm484, %v442, 0.0
        %v501 = vsel %vm485, %v441, 0.0
        %v502 = vsel %vm486, %v440, 0.0
        %v503 = vsel %vm487, %v439, 0.0
        %vm504 = vcmp.lt.s32.totalorder %v471, 64
        %v505 = vsel %vm504, %v488, %v404
        %v506 = vsel %vm504, %v489, %v405
        %v507 = vsel %vm504, %v490, %v406
        %v508 = vsel %vm504, %v491, %v407
        %v509 = vsel %vm504, %v492, %v408
        %v510 = vsel %vm504, %v493, %v409
        %v511 = vsel %vm504, %v494, %v410
        %v512 = vsel %vm504, %v495, %v411
        %v513 = vsel %vm504, %v496, %v412
        %v514 = vsel %vm504, %v497, %v413
        %v515 = vsel %vm504, %v498, %v414
        %v516 = vsel %vm504, %v499, %v415
        %v517 = vsel %vm504, %v500, %v416
        %v518 = vsel %vm504, %v501, %v417
        %v519 = vsel %vm504, %v502, %v418
        %v520 = vsel %vm504, %v503, %v419
        %v521 = vld [vmem:[#allocation5] sm:$0xff]
        %v522 = vld [vmem:[#allocation5 + $0x8] sm:$0xff]
        %v523 = vld [vmem:[#allocation5 + $0x10] sm:$0xff]
        %v524 = vld [vmem:[#allocation5 + $0x18] sm:$0xff]
        %v525 = vld [vmem:[#allocation5 + $0x20] sm:$0xff]
        %v526 = vld [vmem:[#allocation5 + $0x28] sm:$0xff]
        %v527 = vld [vmem:[#allocation5 + $0x30] sm:$0xff]
        %v528 = vld [vmem:[#allocation5 + $0x38] sm:$0xff]
        %v529 = vld [vmem:[#allocation5 + $0x40] sm:$0xff]
        %v530 = vld [vmem:[#allocation5 + $0x48] sm:$0xff]
        %v531 = vld [vmem:[#allocation5 + $0x50] sm:$0xff]
        %v532 = vld [vmem:[#allocation5 + $0x58] sm:$0xff]
        %v533 = vld [vmem:[#allocation5 + $0x60] sm:$0xff]
        %v534 = vld [vmem:[#allocation5 + $0x68] sm:$0xff]
        %v535 = vld [vmem:[#allocation5 + $0x70] sm:$0xff]
        %v536 = vld [vmem:[#allocation5 + $0x78] sm:$0xff]
        %v537 = vld [vmem:[%s2] sm:$0x1]
        %v539 = vlaneseq
        %v540 = vshrl.u32 %v539, 7
        %v541 = vsub.s32 0, %v540
        %v542 = vrot.slane %v537, %v541
        %544 = vmatprep.subr.mxu0 0.0
        %545 = vmatpush1.msra.mxu0 %v521
        %546 = vmatprep.subr.mxu0 0.0
        %547 = vmatpush1.msra.mxu0 %v522
        %548 = vmatprep.subr.mxu0 0.0
        %549 = vmatpush1.msra.mxu0 %v523
        %550 = vmatprep.subr.mxu0 0.0
        %551 = vmatpush1.msra.mxu0 %v524
        %552 = vmatprep.subr.mxu0 0.0
        %553 = vmatpush1.msra.mxu0 %v525
        %554 = vmatprep.subr.mxu0 0.0
        %555 = vmatpush1.msra.mxu0 %v526
        %556 = vmatprep.subr.mxu0 0.0
        %557 = vmatpush1.msra.mxu0 %v527
        %558 = vmatprep.subr.mxu0 0.0
        %559 = vmatpush1.msra.mxu0 %v528
        %560 = vmatprep.subr.mxu0 0.0
        %561 = vmatpush1.msra.mxu0 %v529
        %562 = vmatprep.subr.mxu0 0.0
        %563 = vmatpush1.msra.mxu0 %v530
        %564 = vmatprep.subr.mxu0 0.0
        %565 = vmatpush1.msra.mxu0 %v531
        %566 = vmatprep.subr.mxu0 0.0
        %567 = vmatpush1.msra.mxu0 %v532
        %568 = vmatprep.subr.mxu0 0.0
        %569 = vmatpush1.msra.mxu0 %v533
        %570 = vmatprep.subr.mxu0 0.0
        %571 = vmatpush1.msra.mxu0 %v534
        %572 = vmatprep.subr.mxu0 0.0
        %573 = vmatpush1.msra.mxu0 %v535
        %574 = vmatprep.subr.mxu0 0.0
        %575 = vmatpush1.msra.mxu0 %v536
        %576 = vmatprep.subr.mxu0 0.0
        %577 = vmatpush1.msra.mxu0 0.0
        %578 = vmatprep.subr.mxu0 0.0
        %579 = vmatpush1.msra.mxu0 0.0
        %580 = vmatprep.subr.mxu0 0.0
        %581 = vmatpush1.msra.mxu0 0.0
        %582 = vmatprep.subr.mxu0 0.0
        %583 = vmatpush1.msra.mxu0 0.0
        %584 = vmatprep.subr.mxu0 0.0
        %585 = vmatpush1.msra.mxu0 0.0
        %586 = vmatprep.subr.mxu0 0.0
        %587 = vmatpush1.msra.mxu0 0.0
        %588 = vmatprep.subr.mxu0 0.0
        %589 = vmatpush1.msra.mxu0 0.0
        %590 = vmatprep.subr.mxu0 0.0
        %591 = vmatpush1.msra.mxu0 0.0
        %592 = vmatprep.subr.mxu0 0.0
        %593 = vmatpush1.msra.mxu0 0.0
        %594 = vmatprep.subr.mxu0 0.0
        %595 = vmatpush1.msra.mxu0 0.0
        %596 = vmatprep.subr.mxu0 0.0
        %597 = vmatpush1.msra.mxu0 0.0
        %598 = vmatprep.subr.mxu0 0.0
        %599 = vmatpush1.msra.mxu0 0.0
        %600 = vmatprep.subr.mxu0 0.0
        %601 = vmatpush1.msra.mxu0 0.0
        %602 = vmatprep.subr.mxu0 0.0
        %603 = vmatpush1.msra.mxu0 0.0
        %604 = vmatprep.subr.mxu0 0.0
        %605 = vmatpush1.msra.mxu0 0.0
        %606 = vmatprep.subr.mxu0 0.0
        %607 = vmatpush1.msra.mxu0 0.0
        %608 = vmatprep.mubr.f32.mxu0 0.0
        %609 = vmatmul.mubr.f32.gmra.mrb[0].mxu0 %v505
        %v610 = vpop.f32.mrb[0].mxu0
        %v611 = vadd.f32 %v542, %v610
        %v612 = vpop.f32.mrb[0].mxu0
        %613 = vmatprep.mubr.f32.mxu0 0.0
        %614 = vmatmul.mubr.f32.gmra.mrb[0].mxu0 %v506
        %v615 = vpop.f32.mrb[0].mxu0
        %v616 = vadd.f32 %v542, %v615
        %v617 = vpop.f32.mrb[0].mxu0
        %618 = vmatprep.mubr.f32.mxu0 0.0
        %619 = vmatmul.mubr.f32.gmra.mrb[0].mxu0 %v507
        %v620 = vpop.f32.mrb[0].mxu0
        %v621 = vadd.f32 %v542, %v620
        %v622 = vpop.f32.mrb[0].mxu0
        %623 = vmatprep.mubr.f32.mxu0 0.0
        %624 = vmatmul.mubr.f32.gmra.mrb[0].mxu0 %v508
        %v625 = vpop.f32.mrb[0].mxu0
        %v626 = vadd.f32 %v542, %v625
        %v627 = vpop.f32.mrb[0].mxu0
        %628 = vmatprep.mubr.f32.mxu0 0.0
        %629 = vmatmul.mubr.f32.gmra.mrb[0].mxu0 %v509
        %v630 = vpop.f32.mrb[0].mxu0
        %v631 = vadd.f32 %v542, %v630
        %v632 = vpop.f32.mrb[0].mxu0
        %633 = vmatprep.mubr.f32.mxu0 0.0
        %634 = vmatmul.mubr.f32.gmra.mrb[0].mxu0 %v510
        %v635 = vpop.f32.mrb[0].mxu0
        %v636 = vadd.f32 %v542, %v635
        %v637 = vpop.f32.mrb[0].mxu0
        %638 = vmatprep.mubr.f32.mxu0 0.0
        %639 = vmatmul.mubr.f32.gmra.mrb[0].mxu0 %v511
        %v640 = vpop.f32.mrb[0].mxu0
        %v641 = vadd.f32 %v542, %v640
        %v642 = vpop.f32.mrb[0].mxu0
        %643 = vmatprep.mubr.f32.mxu0 0.0
        %644 = vmatmul.mubr.f32.gmra.mrb[0].mxu0 %v512
        %v645 = vpop.f32.mrb[0].mxu0
        %v646 = vadd.f32 %v542, %v645
        %v647 = vpop.f32.mrb[0].mxu0
        %648 = vmatprep.mubr.f32.mxu0 0.0
        %649 = vmatmul.mubr.f32.gmra.mrb[0].mxu0 %v513
        %v650 = vpop.f32.mrb[0].mxu0
        %v651 = vadd.f32 %v542, %v650
        %v652 = vpop.f32.mrb[0].mxu0
        %653 = vmatprep.mubr.f32.mxu0 0.0
        %654 = vmatmul.mubr.f32.gmra.mrb[0].mxu0 %v514
        %v655 = vpop.f32.mrb[0].mxu0
        %v656 = vadd.f32 %v542, %v655
        %v657 = vpop.f32.mrb[0].mxu0
        %658 = vmatprep.mubr.f32.mxu0 0.0
        %659 = vmatmul.mubr.f32.gmra.mrb[0].mxu0 %v515
        %v660 = vpop.f32.mrb[0].mxu0
        %v661 = vadd.f32 %v542, %v660
        %v662 = vpop.f32.mrb[0].mxu0
        %663 = vmatprep.mubr.f32.mxu0 0.0
        %664 = vmatmul.mubr.f32.gmra.mrb[0].mxu0 %v516
        %v665 = vpop.f32.mrb[0].mxu0
        %v666 = vadd.f32 %v542, %v665
        %v667 = vpop.f32.mrb[0].mxu0
        %668 = vmatprep.mubr.f32.mxu0 0.0
        %669 = vmatmul.mubr.f32.gmra.mrb[0].mxu0 %v517
        %v670 = vpop.f32.mrb[0].mxu0
        %v671 = vadd.f32 %v542, %v670
        %v672 = vpop.f32.mrb[0].mxu0
        %673 = vmatprep.mubr.f32.mxu0 0.0
        %674 = vmatmul.mubr.f32.gmra.mrb[0].mxu0 %v518
        %v675 = vpop.f32.mrb[0].mxu0
        %v676 = vadd.f32 %v542, %v675
        %v677 = vpop.f32.mrb[0].mxu0
        %678 = vmatprep.mubr.f32.mxu0 0.0
        %679 = vmatmul.mubr.f32.gmra.mrb[0].mxu0 %v519
        %v680 = vpop.f32.mrb[0].mxu0
        %v681 = vadd.f32 %v542, %v680
        %v682 = vpop.f32.mrb[0].mxu0
        %683 = vmatprep.mubr.f32.mxu0 0.0
        %684 = vmatmul.mubr.f32.gmra.mrb[0].mxu0 %v520
        %v685 = vpop.f32.mrb[0].mxu0
        %v686 = vadd.f32 %v542, %v685
        %v687 = vpop.f32.mrb[0].mxu0
        %688 = vdwg.mxu0
        %689 = vst [vmem:[#allocation2] sm:$0xff] %v611
        %690 = vst [vmem:[#allocation2 + $0x8] sm:$0xff] %v616
        %691 = vst [vmem:[#allocation2 + $0x10] sm:$0xff] %v621
        %692 = vst [vmem:[#allocation2 + $0x18] sm:$0xff] %v626
        %693 = vst [vmem:[#allocation2 + $0x20] sm:$0xff] %v631
        %694 = vst [vmem:[#allocation2 + $0x28] sm:$0xff] %v636
        %695 = vst [vmem:[#allocation2 + $0x30] sm:$0xff] %v641
        %696 = vst [vmem:[#allocation2 + $0x38] sm:$0xff] %v646
        %697 = vst [vmem:[#allocation2 + $0x40] sm:$0xff] %v651
        %698 = vst [vmem:[#allocation2 + $0x48] sm:$0xff] %v656
        %699 = vst [vmem:[#allocation2 + $0x50] sm:$0xff] %v661
        %700 = vst [vmem:[#allocation2 + $0x58] sm:$0xff] %v666
        %701 = vst [vmem:[#allocation2 + $0x60] sm:$0xff] %v671
        %702 = vst [vmem:[#allocation2 + $0x68] sm:$0xff] %v676
        %703 = vst [vmem:[#allocation2 + $0x70] sm:$0xff] %v681
        %704 = vst [vmem:[#allocation2 + $0x78] sm:$0xff] %v686
        %v705 = vld [vmem:[#allocation8] sm:$0xff]
        %v706 = vld [vmem:[#allocation8 + $0x8] sm:$0xff]
        %v707 = vld [vmem:[#allocation8 + $0x10] sm:$0xff]
        %v708 = vld [vmem:[#allocation8 + $0x18] sm:$0xff]
        %v709 = vld [vmem:[#allocation8 + $0x20] sm:$0xff]
        %v710 = vld [vmem:[#allocation8 + $0x28] sm:$0xff]
        %v711 = vld [vmem:[#allocation8 + $0x30] sm:$0xff]
        %v712 = vld [vmem:[#allocation8 + $0x38] sm:$0xff]
        %v713 = vld [vmem:[#allocation8 + $0x40] sm:$0xff]
        %v714 = vld [vmem:[#allocation8 + $0x48] sm:$0xff]
        %v715 = vld [vmem:[#allocation8 + $0x50] sm:$0xff]
        %v716 = vld [vmem:[#allocation8 + $0x58] sm:$0xff]
        %v717 = vld [vmem:[#allocation8 + $0x60] sm:$0xff]
        %v718 = vld [vmem:[#allocation8 + $0x68] sm:$0xff]
        %v719 = vld [vmem:[#allocation8 + $0x70] sm:$0xff]
        %v720 = vld [vmem:[#allocation8 + $0x78] sm:$0xff]
        %v721 = vld [vmem:[#allocation8 + $0x80] sm:$0xff]
        %v722 = vld [vmem:[#allocation8 + $0x88] sm:$0xff]
        %v723 = vld [vmem:[#allocation8 + $0x90] sm:$0xff]
        %v724 = vld [vmem:[#allocation8 + $0x98] sm:$0xff]
        %v725 = vld [vmem:[#allocation8 + $0xa0] sm:$0xff]
        %v726 = vld [vmem:[#allocation8 + $0xa8] sm:$0xff]
        %v727 = vld [vmem:[#allocation8 + $0xb0] sm:$0xff]
        %v728 = vld [vmem:[#allocation8 + $0xb8] sm:$0xff]
        %v729 = vld [vmem:[#allocation8 + $0xc0] sm:$0xff]
        %v730 = vld [vmem:[#allocation8 + $0xc8] sm:$0xff]
        %v731 = vld [vmem:[#allocation8 + $0xd0] sm:$0xff]
        %v732 = vld [vmem:[#allocation8 + $0xd8] sm:$0xff]
        %v733 = vld [vmem:[#allocation8 + $0xe0] sm:$0xff]
        %v734 = vld [vmem:[#allocation8 + $0xe8] sm:$0xff]
        %v735 = vld [vmem:[#allocation8 + $0xf0] sm:$0xff]
        %v736 = vld [vmem:[#allocation8 + $0xf8] sm:$0xff]
        %v737 = vld [vmem:[%s4] sm:$0xff]
        %v738 = vld [vmem:[%s4 + $0x8] sm:$0xff]
        %v739 = vld [vmem:[%s4 + $0x10] sm:$0xff]
        %v740 = vld [vmem:[%s4 + $0x18] sm:$0xff]
        %v741 = vld [vmem:[%s4 + $0x20] sm:$0xff]
        %v742 = vld [vmem:[%s4 + $0x28] sm:$0xff]
        %v743 = vld [vmem:[%s4 + $0x30] sm:$0xff]
        %v744 = vld [vmem:[%s4 + $0x38] sm:$0xff]
        %v745 = vld [vmem:[%s4 + $0x40] sm:$0xff]
        %v746 = vld [vmem:[%s4 + $0x48] sm:$0xff]
        %v747 = vld [vmem:[%s4 + $0x50] sm:$0xff]
        %v748 = vld [vmem:[%s4 + $0x58] sm:$0xff]
        %v749 = vld [vmem:[%s4 + $0x60] sm:$0xff]
        %v750 = vld [vmem:[%s4 + $0x68] sm:$0xff]
        %v751 = vld [vmem:[%s4 + $0x70] sm:$0xff]
        %v752 = vld [vmem:[%s4 + $0x78] sm:$0xff]
        %v753 = vld [vmem:[%s4 + $0x80] sm:$0xff]
        %v754 = vld [vmem:[%s4 + $0x88] sm:$0xff]
        %v755 = vld [vmem:[%s4 + $0x90] sm:$0xff]
        %v756 = vld [vmem:[%s4 + $0x98] sm:$0xff]
        %v757 = vld [vmem:[%s4 + $0xa0] sm:$0xff]
        %v758 = vld [vmem:[%s4 + $0xa8] sm:$0xff]
        %v759 = vld [vmem:[%s4 + $0xb0] sm:$0xff]
        %v760 = vld [vmem:[%s4 + $0xb8] sm:$0xff]
        %v761 = vld [vmem:[%s4 + $0xc0] sm:$0xff]
        %v762 = vld [vmem:[%s4 + $0xc8] sm:$0xff]
        %v763 = vld [vmem:[%s4 + $0xd0] sm:$0xff]
        %v764 = vld [vmem:[%s4 + $0xd8] sm:$0xff]
        %v765 = vld [vmem:[%s4 + $0xe0] sm:$0xff]
        %v766 = vld [vmem:[%s4 + $0xe8] sm:$0xff]
        %v767 = vld [vmem:[%s4 + $0xf0] sm:$0xff]
        %v768 = vld [vmem:[%s4 + $0xf8] sm:$0xff]
        %770 = vset.pattern.permute.xlu0 0
        %771 = vperm.xlu0 %770, %v737
        %v772 = vpop.permute.xlu0 %771
        %775 = vset.pattern.permute.xlu0 0
        %776 = vperm.xlu0 %775, %v738
        %v777 = vpop.permute.xlu0 %776
        %780 = vset.pattern.permute.xlu0 0
        %781 = vperm.xlu0 %780, %v739
        %v782 = vpop.permute.xlu0 %781
        %785 = vset.pattern.permute.xlu0 0
        %786 = vperm.xlu0 %785, %v740
        %v787 = vpop.permute.xlu0 %786
        %790 = vset.pattern.permute.xlu0 0
        %791 = vperm.xlu0 %790, %v741
        %v792 = vpop.permute.xlu0 %791
        %795 = vset.pattern.permute.xlu0 0
        %796 = vperm.xlu0 %795, %v742
        %v797 = vpop.permute.xlu0 %796
        %800 = vset.pattern.permute.xlu0 0
        %801 = vperm.xlu0 %800, %v743
        %v802 = vpop.permute.xlu0 %801
        %805 = vset.pattern.permute.xlu0 0
        %806 = vperm.xlu0 %805, %v744
        %v807 = vpop.permute.xlu0 %806
        %810 = vset.pattern.permute.xlu0 0
        %811 = vperm.xlu0 %810, %v745
        %v812 = vpop.permute.xlu0 %811
        %815 = vset.pattern.permute.xlu0 0
        %816 = vperm.xlu0 %815, %v746
        %v817 = vpop.permute.xlu0 %816
        %820 = vset.pattern.permute.xlu0 0
        %821 = vperm.xlu0 %820, %v747
        %v822 = vpop.permute.xlu0 %821
        %825 = vset.pattern.permute.xlu0 0
        %826 = vperm.xlu0 %825, %v748
        %v827 = vpop.permute.xlu0 %826
        %830 = vset.pattern.permute.xlu0 0
        %831 = vperm.xlu0 %830, %v749
        %v832 = vpop.permute.xlu0 %831
        %835 = vset.pattern.permute.xlu0 0
        %836 = vperm.xlu0 %835, %v750
        %v837 = vpop.permute.xlu0 %836
        %840 = vset.pattern.permute.xlu0 0
        %841 = vperm.xlu0 %840, %v751
        %v842 = vpop.permute.xlu0 %841
        %845 = vset.pattern.permute.xlu0 0
        %846 = vperm.xlu0 %845, %v752
        %v847 = vpop.permute.xlu0 %846
        %850 = vset.pattern.permute.xlu0 0
        %851 = vperm.xlu0 %850, %v753
        %v852 = vpop.permute.xlu0 %851
        %855 = vset.pattern.permute.xlu0 0
        %856 = vperm.xlu0 %855, %v754
        %v857 = vpop.permute.xlu0 %856
        %860 = vset.pattern.permute.xlu0 0
        %861 = vperm.xlu0 %860, %v755
        %v862 = vpop.permute.xlu0 %861
        %865 = vset.pattern.permute.xlu0 0
        %866 = vperm.xlu0 %865, %v756
        %v867 = vpop.permute.xlu0 %866
        %870 = vset.pattern.permute.xlu0 0
        %871 = vperm.xlu0 %870, %v757
        %v872 = vpop.permute.xlu0 %871
        %875 = vset.pattern.permute.xlu0 0
        %876 = vperm.xlu0 %875, %v758
        %v877 = vpop.permute.xlu0 %876
        %880 = vset.pattern.permute.xlu0 0
        %881 = vperm.xlu0 %880, %v759
        %v882 = vpop.permute.xlu0 %881
        %885 = vset.pattern.permute.xlu0 0
        %886 = vperm.xlu0 %885, %v760
        %v887 = vpop.permute.xlu0 %886
        %890 = vset.pattern.permute.xlu0 0
        %891 = vperm.xlu0 %890, %v761
        %v892 = vpop.permute.xlu0 %891
        %895 = vset.pattern.permute.xlu0 0
        %896 = vperm.xlu0 %895, %v762
        %v897 = vpop.permute.xlu0 %896
        %900 = vset.pattern.permute.xlu0 0
        %901 = vperm.xlu0 %900, %v763
        %v902 = vpop.permute.xlu0 %901
        %905 = vset.pattern.permute.xlu0 0
        %906 = vperm.xlu0 %905, %v764
        %v907 = vpop.permute.xlu0 %906
        %910 = vset.pattern.permute.xlu0 0
        %911 = vperm.xlu0 %910, %v765
        %v912 = vpop.permute.xlu0 %911
        %915 = vset.pattern.permute.xlu0 0
        %916 = vperm.xlu0 %915, %v766
        %v917 = vpop.permute.xlu0 %916
        %920 = vset.pattern.permute.xlu0 0
        %921 = vperm.xlu0 %920, %v767
        %v922 = vpop.permute.xlu0 %921
        %925 = vset.pattern.permute.xlu0 0
        %926 = vperm.xlu0 %925, %v768
        %v927 = vpop.permute.xlu0 %926
        %929 = vmatprep.subr.mxu0 0.0
        %930 = vmatpush1.xpose.msra.mxu0 %v505
        %931 = vmatprep.subr.mxu0 0.0
        %932 = vmatpush1.xpose.msra.mxu0 %v506
        %933 = vmatprep.subr.mxu0 0.0
        %934 = vmatpush1.xpose.msra.mxu0 %v507
        %935 = vmatprep.subr.mxu0 0.0
        %936 = vmatpush1.xpose.msra.mxu0 %v508
        %937 = vmatprep.subr.mxu0 0.0
        %938 = vmatpush1.xpose.msra.mxu0 %v509
        %939 = vmatprep.subr.mxu0 0.0
        %940 = vmatpush1.xpose.msra.mxu0 %v510
        %941 = vmatprep.subr.mxu0 0.0
        %942 = vmatpush1.xpose.msra.mxu0 %v511
        %943 = vmatprep.subr.mxu0 0.0
        %944 = vmatpush1.xpose.msra.mxu0 %v512
        %945 = vmatprep.subr.mxu0 0.0
        %946 = vmatpush1.xpose.msra.mxu0 %v513
        %947 = vmatprep.subr.mxu0 0.0
        %948 = vmatpush1.xpose.msra.mxu0 %v514
        %949 = vmatprep.subr.mxu0 0.0
        %950 = vmatpush1.xpose.msra.mxu0 %v515
        %951 = vmatprep.subr.mxu0 0.0
        %952 = vmatpush1.xpose.msra.mxu0 %v516
        %953 = vmatprep.subr.mxu0 0.0
        %954 = vmatpush1.xpose.msra.mxu0 %v517
        %955 = vmatprep.subr.mxu0 0.0
        %956 = vmatpush1.xpose.msra.mxu0 %v518
        %957 = vmatprep.subr.mxu0 0.0
        %958 = vmatpush1.xpose.msra.mxu0 %v519
        %959 = vmatprep.subr.mxu0 0.0
        %960 = vmatpush1.xpose.msra.mxu0 %v520
        %961 = vmatprep.subr.mxu0 0.0
        %962 = vmatpush1.xpose.msra.mxu0 0.0
        %963 = vmatprep.subr.mxu0 0.0
        %964 = vmatpush1.xpose.msra.mxu0 0.0
        %965 = vmatprep.subr.mxu0 0.0
        %966 = vmatpush1.xpose.msra.mxu0 0.0
        %967 = vmatprep.subr.mxu0 0.0
        %968 = vmatpush1.xpose.msra.mxu0 0.0
        %969 = vmatprep.subr.mxu0 0.0
        %970 = vmatpush1.xpose.msra.mxu0 0.0
        %971 = vmatprep.subr.mxu0 0.0
        %972 = vmatpush1.xpose.msra.mxu0 0.0
        %973 = vmatprep.subr.mxu0 0.0
        %974 = vmatpush1.xpose.msra.mxu0 0.0
        %975 = vmatprep.subr.mxu0 0.0
        %976 = vmatpush1.xpose.msra.mxu0 0.0
        %977 = vmatprep.subr.mxu0 0.0
        %978 = vmatpush1.xpose.msra.mxu0 0.0
        %979 = vmatprep.subr.mxu0 0.0
        %980 = vmatpush1.xpose.msra.mxu0 0.0
        %981 = vmatprep.subr.mxu0 0.0
        %982 = vmatpush1.xpose.msra.mxu0 0.0
        %983 = vmatprep.subr.mxu0 0.0
        %984 = vmatpush1.xpose.msra.mxu0 0.0
        %985 = vmatprep.subr.mxu0 0.0
        %986 = vmatpush1.xpose.msra.mxu0 0.0
        %987 = vmatprep.subr.mxu0 0.0
        %988 = vmatpush1.xpose.msra.mxu0 0.0
        %989 = vmatprep.subr.mxu0 0.0
        %990 = vmatpush1.xpose.msra.mxu0 0.0
        %991 = vmatprep.subr.mxu0 0.0
        %992 = vmatpush1.xpose.msra.mxu0 0.0
        %993 = vmatprep.mubr.f32.mxu0 0.0
        %994 = vmatmul.mubr.f32.gmra.mrb[0].mxu0 %v705
        %v995 = vpop.f32.mrb[0].mxu0
        %v996 = vadd.f32 %v772, %v995
        %v997 = vpop.f32.mrb[0].mxu0
        %998 = vmatprep.mubr.f32.mxu0 0.0
        %999 = vmatmul.mubr.f32.gmra.mrb[0].mxu0 %v706
        %v1000 = vpop.f32.mrb[0].mxu0
        %v1001 = vadd.f32 %v777, %v1000
        %v1002 = vpop.f32.mrb[0].mxu0
        %1003 = vmatprep.mubr.f32.mxu0 0.0
        %1004 = vmatmul.mubr.f32.gmra.mrb[0].mxu0 %v707
        %v1005 = vpop.f32.mrb[0].mxu0
        %v1006 = vadd.f32 %v782, %v1005
        %v1007 = vpop.f32.mrb[0].mxu0
        %1008 = vmatprep.mubr.f32.mxu0 0.0
        %1009 = vmatmul.mubr.f32.gmra.mrb[0].mxu0 %v708
        %v1010 = vpop.f32.mrb[0].mxu0
        %v1011 = vadd.f32 %v787, %v1010
        %v1012 = vpop.f32.mrb[0].mxu0
        %1013 = vmatprep.mubr.f32.mxu0 0.0
        %1014 = vmatmul.mubr.f32.gmra.mrb[0].mxu0 %v709
        %v1015 = vpop.f32.mrb[0].mxu0
        %v1016 = vadd.f32 %v792, %v1015
        %v1017 = vpop.f32.mrb[0].mxu0
        %1018 = vmatprep.mubr.f32.mxu0 0.0
        %1019 = vmatmul.mubr.f32.gmra.mrb[0].mxu0 %v710
        %v1020 = vpop.f32.mrb[0].mxu0
        %v1021 = vadd.f32 %v797, %v1020
        %v1022 = vpop.f32.mrb[0].mxu0
        %1023 = vmatprep.mubr.f32.mxu0 0.0
        %1024 = vmatmul.mubr.f32.gmra.mrb[0].mxu0 %v711
        %v1025 = vpop.f32.mrb[0].mxu0
        %v1026 = vadd.f32 %v802, %v1025
        %v1027 = vpop.f32.mrb[0].mxu0
        %1028 = vmatprep.mubr.f32.mxu0 0.0
        %1029 = vmatmul.mubr.f32.gmra.mrb[0].mxu0 %v712
        %v1030 = vpop.f32.mrb[0].mxu0
        %v1031 = vadd.f32 %v807, %v1030
        %v1032 = vpop.f32.mrb[0].mxu0
        %1033 = vmatprep.mubr.f32.mxu0 0.0
        %1034 = vmatmul.mubr.f32.gmra.mrb[0].mxu0 %v713
        %v1035 = vpop.f32.mrb[0].mxu0
        %v1036 = vadd.f32 %v812, %v1035
        %v1037 = vpop.f32.mrb[0].mxu0
        %1038 = vmatprep.mubr.f32.mxu0 0.0
        %1039 = vmatmul.mubr.f32.gmra.mrb[0].mxu0 %v714
        %v1040 = vpop.f32.mrb[0].mxu0
        %v1041 = vadd.f32 %v817, %v1040
        %v1042 = vpop.f32.mrb[0].mxu0
        %1043 = vmatprep.mubr.f32.mxu0 0.0
        %1044 = vmatmul.mubr.f32.gmra.mrb[0].mxu0 %v715
        %v1045 = vpop.f32.mrb[0].mxu0
        %v1046 = vadd.f32 %v822, %v1045
        %v1047 = vpop.f32.mrb[0].mxu0
        %1048 = vmatprep.mubr.f32.mxu0 0.0
        %1049 = vmatmul.mubr.f32.gmra.mrb[0].mxu0 %v716
        %v1050 = vpop.f32.mrb[0].mxu0
        %v1051 = vadd.f32 %v827, %v1050
        %v1052 = vpop.f32.mrb[0].mxu0
        %1053 = vmatprep.mubr.f32.mxu0 0.0
        %1054 = vmatmul.mubr.f32.gmra.mrb[0].mxu0 %v717
        %v1055 = vpop.f32.mrb[0].mxu0
        %v1056 = vadd.f32 %v832, %v1055
        %v1057 = vpop.f32.mrb[0].mxu0
        %1058 = vmatprep.mubr.f32.mxu0 0.0
        %1059 = vmatmul.mubr.f32.gmra.mrb[0].mxu0 %v718
        %v1060 = vpop.f32.mrb[0].mxu0
        %v1061 = vadd.f32 %v837, %v1060
        %v1062 = vpop.f32.mrb[0].mxu0
        %1063 = vmatprep.mubr.f32.mxu0 0.0
        %1064 = vmatmul.mubr.f32.gmra.mrb[0].mxu0 %v719
        %v1065 = vpop.f32.mrb[0].mxu0
        %v1066 = vadd.f32 %v842, %v1065
        %v1067 = vpop.f32.mrb[0].mxu0
        %1068 = vmatprep.mubr.f32.mxu0 0.0
        %1069 = vmatmul.mubr.f32.gmra.mrb[0].mxu0 %v720
        %v1070 = vpop.f32.mrb[0].mxu0
        %v1071 = vadd.f32 %v847, %v1070
        %v1072 = vpop.f32.mrb[0].mxu0
        %1073 = vmatprep.mubr.f32.mxu0 0.0
        %1074 = vmatmul.mubr.f32.gmra.mrb[0].mxu0 %v721
        %v1075 = vpop.f32.mrb[0].mxu0
        %v1076 = vadd.f32 %v852, %v1075
        %v1077 = vpop.f32.mrb[0].mxu0
        %1078 = vmatprep.mubr.f32.mxu0 0.0
        %1079 = vmatmul.mubr.f32.gmra.mrb[0].mxu0 %v722
        %v1080 = vpop.f32.mrb[0].mxu0
        %v1081 = vadd.f32 %v857, %v1080
        %v1082 = vpop.f32.mrb[0].mxu0
        %1083 = vmatprep.mubr.f32.mxu0 0.0
        %1084 = vmatmul.mubr.f32.gmra.mrb[0].mxu0 %v723
        %v1085 = vpop.f32.mrb[0].mxu0
        %v1086 = vadd.f32 %v862, %v1085
        %v1087 = vpop.f32.mrb[0].mxu0
        %1088 = vmatprep.mubr.f32.mxu0 0.0
        %1089 = vmatmul.mubr.f32.gmra.mrb[0].mxu0 %v724
        %v1090 = vpop.f32.mrb[0].mxu0
        %v1091 = vadd.f32 %v867, %v1090
        %v1092 = vpop.f32.mrb[0].mxu0
        %1093 = vmatprep.mubr.f32.mxu0 0.0
        %1094 = vmatmul.mubr.f32.gmra.mrb[0].mxu0 %v725
        %v1095 = vpop.f32.mrb[0].mxu0
        %v1096 = vadd.f32 %v872, %v1095
        %v1097 = vpop.f32.mrb[0].mxu0
        %1098 = vmatprep.mubr.f32.mxu0 0.0
        %1099 = vmatmul.mubr.f32.gmra.mrb[0].mxu0 %v726
        %v1100 = vpop.f32.mrb[0].mxu0
        %v1101 = vadd.f32 %v877, %v1100
        %v1102 = vpop.f32.mrb[0].mxu0
        %1103 = vmatprep.mubr.f32.mxu0 0.0
        %1104 = vmatmul.mubr.f32.gmra.mrb[0].mxu0 %v727
        %v1105 = vpop.f32.mrb[0].mxu0
        %v1106 = vadd.f32 %v882, %v1105
        %v1107 = vpop.f32.mrb[0].mxu0
        %1108 = vmatprep.mubr.f32.mxu0 0.0
        %1109 = vmatmul.mubr.f32.gmra.mrb[0].mxu0 %v728
        %v1110 = vpop.f32.mrb[0].mxu0
        %v1111 = vadd.f32 %v887, %v1110
        %v1112 = vpop.f32.mrb[0].mxu0
        %1113 = vmatprep.mubr.f32.mxu0 0.0
        %1114 = vmatmul.mubr.f32.gmra.mrb[0].mxu0 %v729
        %v1115 = vpop.f32.mrb[0].mxu0
        %v1116 = vadd.f32 %v892, %v1115
        %v1117 = vpop.f32.mrb[0].mxu0
        %1118 = vmatprep.mubr.f32.mxu0 0.0
        %1119 = vmatmul.mubr.f32.gmra.mrb[0].mxu0 %v730
        %v1120 = vpop.f32.mrb[0].mxu0
        %v1121 = vadd.f32 %v897, %v1120
        %v1122 = vpop.f32.mrb[0].mxu0
        %1123 = vmatprep.mubr.f32.mxu0 0.0
        %1124 = vmatmul.mubr.f32.gmra.mrb[0].mxu0 %v731
        %v1125 = vpop.f32.mrb[0].mxu0
        %v1126 = vadd.f32 %v902, %v1125
        %v1127 = vpop.f32.mrb[0].mxu0
        %1128 = vmatprep.mubr.f32.mxu0 0.0
        %1129 = vmatmul.mubr.f32.gmra.mrb[0].mxu0 %v732
        %v1130 = vpop.f32.mrb[0].mxu0
        %v1131 = vadd.f32 %v907, %v1130
        %v1132 = vpop.f32.mrb[0].mxu0
        %1133 = vmatprep.mubr.f32.mxu0 0.0
        %1134 = vmatmul.mubr.f32.gmra.mrb[0].mxu0 %v733
        %v1135 = vpop.f32.mrb[0].mxu0
        %v1136 = vadd.f32 %v912, %v1135
        %v1137 = vpop.f32.mrb[0].mxu0
        %1138 = vmatprep.mubr.f32.mxu0 0.0
        %1139 = vmatmul.mubr.f32.gmra.mrb[0].mxu0 %v734
        %v1140 = vpop.f32.mrb[0].mxu0
        %v1141 = vadd.f32 %v917, %v1140
        %v1142 = vpop.f32.mrb[0].mxu0
        %1143 = vmatprep.mubr.f32.mxu0 0.0
        %1144 = vmatmul.mubr.f32.gmra.mrb[0].mxu0 %v735
        %v1145 = vpop.f32.mrb[0].mxu0
        %v1146 = vadd.f32 %v922, %v1145
        %v1147 = vpop.f32.mrb[0].mxu0
        %1148 = vmatprep.mubr.f32.mxu0 0.0
        %1149 = vmatmul.mubr.f32.gmra.mrb[0].mxu0 %v736
        %v1150 = vpop.f32.mrb[0].mxu0
        %v1151 = vadd.f32 %v927, %v1150
        %v1152 = vpop.f32.mrb[0].mxu0
        %1153 = vdwg.mxu0
        %1154 = vst [vmem:[#allocation3] sm:$0xff] %v996
        %1155 = vst [vmem:[#allocation3 + $0x8] sm:$0xff] %v1001
        %1156 = vst [vmem:[#allocation3 + $0x10] sm:$0xff] %v1006
        %1157 = vst [vmem:[#allocation3 + $0x18] sm:$0xff] %v1011
        %1158 = vst [vmem:[#allocation3 + $0x20] sm:$0xff] %v1016
        %1159 = vst [vmem:[#allocation3 + $0x28] sm:$0xff] %v1021
        %1160 = vst [vmem:[#allocation3 + $0x30] sm:$0xff] %v1026
        %1161 = vst [vmem:[#allocation3 + $0x38] sm:$0xff] %v1031
        %1162 = vst [vmem:[#allocation3 + $0x40] sm:$0xff] %v1036
        %1163 = vst [vmem:[#allocation3 + $0x48] sm:$0xff] %v1041
        %1164 = vst [vmem:[#allocation3 + $0x50] sm:$0xff] %v1046
        %1165 = vst [vmem:[#allocation3 + $0x58] sm:$0xff] %v1051
        %1166 = vst [vmem:[#allocation3 + $0x60] sm:$0xff] %v1056
        %1167 = vst [vmem:[#allocation3 + $0x68] sm:$0xff] %v1061
        %1168 = vst [vmem:[#allocation3 + $0x70] sm:$0xff] %v1066
        %1169 = vst [vmem:[#allocation3 + $0x78] sm:$0xff] %v1071
        %1170 = vst [vmem:[#allocation3 + $0x80] sm:$0xff] %v1076
        %1171 = vst [vmem:[#allocation3 + $0x88] sm:$0xff] %v1081
        %1172 = vst [vmem:[#allocation3 + $0x90] sm:$0xff] %v1086
        %1173 = vst [vmem:[#allocation3 + $0x98] sm:$0xff] %v1091
        %1174 = vst [vmem:[#allocation3 + $0xa0] sm:$0xff] %v1096
        %1175 = vst [vmem:[#allocation3 + $0xa8] sm:$0xff] %v1101
        %1176 = vst [vmem:[#allocation3 + $0xb0] sm:$0xff] %v1106
        %1177 = vst [vmem:[#allocation3 + $0xb8] sm:$0xff] %v1111
        %1178 = vst [vmem:[#allocation3 + $0xc0] sm:$0xff] %v1116
        %1179 = vst [vmem:[#allocation3 + $0xc8] sm:$0xff] %v1121
        %1180 = vst [vmem:[#allocation3 + $0xd0] sm:$0xff] %v1126
        %1181 = vst [vmem:[#allocation3 + $0xd8] sm:$0xff] %v1131
        %1182 = vst [vmem:[#allocation3 + $0xe0] sm:$0xff] %v1136
        %1183 = vst [vmem:[#allocation3 + $0xe8] sm:$0xff] %v1141
        %1184 = vst [vmem:[#allocation3 + $0xf0] sm:$0xff] %v1146
        %1185 = vst [vmem:[#allocation3 + $0xf8] sm:$0xff] %v1151
        %v1186 = vld [vmem:[#allocation2] sm:$0xff]
        %v1187 = vld [vmem:[#allocation2 + $0x8] sm:$0xff]
        %v1188 = vld [vmem:[#allocation2 + $0x10] sm:$0xff]
        %v1189 = vld [vmem:[#allocation2 + $0x18] sm:$0xff]
        %v1190 = vld [vmem:[#allocation2 + $0x20] sm:$0xff]
        %v1191 = vld [vmem:[#allocation2 + $0x28] sm:$0xff]
        %v1192 = vld [vmem:[#allocation2 + $0x30] sm:$0xff]
        %v1193 = vld [vmem:[#allocation2 + $0x38] sm:$0xff]
        %v1194 = vld [vmem:[#allocation2 + $0x40] sm:$0xff]
        %v1195 = vld [vmem:[#allocation2 + $0x48] sm:$0xff]
        %v1196 = vld [vmem:[#allocation2 + $0x50] sm:$0xff]
        %v1197 = vld [vmem:[#allocation2 + $0x58] sm:$0xff]
        %v1198 = vld [vmem:[#allocation2 + $0x60] sm:$0xff]
        %v1199 = vld [vmem:[#allocation2 + $0x68] sm:$0xff]
        %v1200 = vld [vmem:[#allocation2 + $0x70] sm:$0xff]
        %v1201 = vld [vmem:[#allocation2 + $0x78] sm:$0xff]
        %v1202 = vld [vmem:[#allocation3] sm:$0xff]
        %v1203 = vld [vmem:[#allocation3 + $0x8] sm:$0xff]
        %v1204 = vld [vmem:[#allocation3 + $0x10] sm:$0xff]
        %v1205 = vld [vmem:[#allocation3 + $0x18] sm:$0xff]
        %v1206 = vld [vmem:[#allocation3 + $0x80] sm:$0xff]
        %v1207 = vld [vmem:[#allocation3 + $0x88] sm:$0xff]
        %v1208 = vld [vmem:[#allocation3 + $0x90] sm:$0xff]
        %v1209 = vld [vmem:[#allocation3 + $0x98] sm:$0xff]
        %v1210 = vld [vmem:[#allocation13] sm:$0xff]
        %v1211 = vld [vmem:[#allocation13 + $0x8] sm:$0xff]
        %v1212 = vld [vmem:[#allocation13 + $0x10] sm:$0xff]
        %v1213 = vld [vmem:[#allocation13 + $0x18] sm:$0xff]
        %v1214 = vld [vmem:[#allocation13 + $0x20] sm:$0xff]
        %v1215 = vld [vmem:[#allocation13 + $0x28] sm:$0xff]
        %v1216 = vld [vmem:[#allocation13 + $0x30] sm:$0xff]
        %v1217 = vld [vmem:[#allocation13 + $0x38] sm:$0xff]
        %v1218 = vld [vmem:[#allocation13 + $0x40] sm:$0xff]
        %v1219 = vld [vmem:[#allocation13 + $0x48] sm:$0xff]
        %v1220 = vld [vmem:[#allocation13 + $0x50] sm:$0xff]
        %v1221 = vld [vmem:[#allocation13 + $0x58] sm:$0xff]
        %v1222 = vld [vmem:[#allocation13 + $0x60] sm:$0xff]
        %v1223 = vld [vmem:[#allocation13 + $0x68] sm:$0xff]
        %v1224 = vld [vmem:[#allocation13 + $0x70] sm:$0xff]
        %v1225 = vld [vmem:[#allocation13 + $0x78] sm:$0xff]
        %vm1226 = vcmask 261120
        %v1228 = vsel %vm1226, %v1186, 0
        %v1231 = vsel %vm1226, %v1187, 0
        %v1234 = vsel %vm1226, %v1188, 0
        %v1237 = vsel %vm1226, %v1189, 0
        %v1240 = vsel %vm1226, %v1190, 0
        %v1243 = vsel %vm1226, %v1191, 0
        %v1246 = vsel %vm1226, %v1192, 0
        %v1249 = vsel %vm1226, %v1193, 0
        %v1252 = vsel %vm1226, %v1194, 0
        %v1255 = vsel %vm1226, %v1195, 0
        %v1258 = vsel %vm1226, %v1196, 0
        %v1261 = vsel %vm1226, %v1197, 0
        %v1264 = vsel %vm1226, %v1198, 0
        %v1267 = vsel %vm1226, %v1199, 0
        %v1270 = vsel %vm1226, %v1200, 0
        %v1273 = vsel %vm1226, %v1201, 0
        %1275 = vmatprep.subr.mxu0 0.0
        %1276 = vmatpush1.msra.mxu0 %v1202
        %1277 = vmatprep.subr.mxu0 0.0
        %1278 = vmatpush1.msra.mxu0 %v1203
        %1279 = vmatprep.subr.mxu0 0.0
        %1280 = vmatpush1.msra.mxu0 %v1204
        %1281 = vmatprep.subr.mxu0 0.0
        %1282 = vmatpush1.msra.mxu0 %v1205
        %1283 = vmatprep.subr.mxu0 0.0
        %1284 = vmatpush1.msra.mxu0 0.0
        %1285 = vmatprep.subr.mxu0 0.0
        %1286 = vmatpush1.msra.mxu0 0.0
        %1287 = vmatprep.subr.mxu0 0.0
        %1288 = vmatpush1.msra.mxu0 0.0
        %1289 = vmatprep.subr.mxu0 0.0
        %1290 = vmatpush1.msra.mxu0 0.0
        %1291 = vmatprep.subr.mxu0 0.0
        %1292 = vmatpush1.msra.mxu0 0.0
        %1293 = vmatprep.subr.mxu0 0.0
        %1294 = vmatpush1.msra.mxu0 0.0
        %1295 = vmatprep.subr.mxu0 0.0
        %1296 = vmatpush1.msra.mxu0 0.0
        %1297 = vmatprep.subr.mxu0 0.0
        %1298 = vmatpush1.msra.mxu0 0.0
        %1299 = vmatprep.subr.mxu0 0.0
        %1300 = vmatpush1.msra.mxu0 0.0
        %1301 = vmatprep.subr.mxu0 0.0
        %1302 = vmatpush1.msra.mxu0 0.0
        %1303 = vmatprep.subr.mxu0 0.0
        %1304 = vmatpush1.msra.mxu0 0.0
        %1305 = vmatprep.subr.mxu0 0.0
        %1306 = vmatpush1.msra.mxu0 0.0
        %1307 = vmatprep.subr.mxu0 0.0
        %1308 = vmatpush1.msra.mxu0 0.0
        %1309 = vmatprep.subr.mxu0 0.0
        %1310 = vmatpush1.msra.mxu0 0.0
        %1311 = vmatprep.subr.mxu0 0.0
        %1312 = vmatpush1.msra.mxu0 0.0
        %1313 = vmatprep.subr.mxu0 0.0
        %1314 = vmatpush1.msra.mxu0 0.0
        %1315 = vmatprep.subr.mxu0 0.0
        %1316 = vmatpush1.msra.mxu0 0.0
        %1317 = vmatprep.subr.mxu0 0.0
        %1318 = vmatpush1.msra.mxu0 0.0
        %1319 = vmatprep.subr.mxu0 0.0
        %1320 = vmatpush1.msra.mxu0 0.0
        %1321 = vmatprep.subr.mxu0 0.0
        %1322 = vmatpush1.msra.mxu0 0.0
        %1323 = vmatprep.subr.mxu0 0.0
        %1324 = vmatpush1.msra.mxu0 0.0
        %1325 = vmatprep.subr.mxu0 0.0
        %1326 = vmatpush1.msra.mxu0 0.0
        %1327 = vmatprep.subr.mxu0 0.0
        %1328 = vmatpush1.msra.mxu0 0.0
        %1329 = vmatprep.subr.mxu0 0.0
        %1330 = vmatpush1.msra.mxu0 0.0
        %1331 = vmatprep.subr.mxu0 0.0
        %1332 = vmatpush1.msra.mxu0 0.0
        %1333 = vmatprep.subr.mxu0 0.0
        %1334 = vmatpush1.msra.mxu0 0.0
        %1335 = vmatprep.subr.mxu0 0.0
        %1336 = vmatpush1.msra.mxu0 0.0
        %1337 = vmatprep.subr.mxu0 0.0
        %1338 = vmatpush1.msra.mxu0 0.0
        %1339 = vmatprep.mubr.f32.mxu0 0.0
        %1340 = vmatmul.mubr.f32.gmra.mrb[0].mxu0 %v1228
        %v1341 = vpop.f32.mrb[0].mxu0
        %v1342 = vadd.f32 %v1210, %v1341
        %v1343 = vpop.f32.mrb[0].mxu0
        %1344 = vmatprep.mubr.f32.mxu0 0.0
        %1345 = vmatmul.mubr.f32.gmra.mrb[0].mxu0 %v1231
        %v1346 = vpop.f32.mrb[0].mxu0
        %v1347 = vadd.f32 %v1211, %v1346
        %v1348 = vpop.f32.mrb[0].mxu0
        %1349 = vmatprep.mubr.f32.mxu0 0.0
        %1350 = vmatmul.mubr.f32.gmra.mrb[0].mxu0 %v1234
        %v1351 = vpop.f32.mrb[0].mxu0
        %v1352 = vadd.f32 %v1212, %v1351
        %v1353 = vpop.f32.mrb[0].mxu0
        %1354 = vmatprep.mubr.f32.mxu0 0.0
        %1355 = vmatmul.mubr.f32.gmra.mrb[0].mxu0 %v1237
        %v1356 = vpop.f32.mrb[0].mxu0
        %v1357 = vadd.f32 %v1213, %v1356
        %v1358 = vpop.f32.mrb[0].mxu0
        %1359 = vmatprep.mubr.f32.mxu0 0.0
        %1360 = vmatmul.mubr.f32.gmra.mrb[0].mxu0 %v1240
        %v1361 = vpop.f32.mrb[0].mxu0
        %v1362 = vadd.f32 %v1214, %v1361
        %v1363 = vpop.f32.mrb[0].mxu0
        %1364 = vmatprep.mubr.f32.mxu0 0.0
        %1365 = vmatmul.mubr.f32.gmra.mrb[0].mxu0 %v1243
        %v1366 = vpop.f32.mrb[0].mxu0
        %v1367 = vadd.f32 %v1215, %v1366
        %v1368 = vpop.f32.mrb[0].mxu0
        %1369 = vmatprep.mubr.f32.mxu0 0.0
        %1370 = vmatmul.mubr.f32.gmra.mrb[0].mxu0 %v1246
        %v1371 = vpop.f32.mrb[0].mxu0
        %v1372 = vadd.f32 %v1216, %v1371
        %v1373 = vpop.f32.mrb[0].mxu0
        %1374 = vmatprep.mubr.f32.mxu0 0.0
        %1375 = vmatmul.mubr.f32.gmra.mrb[0].mxu0 %v1249
        %v1376 = vpop.f32.mrb[0].mxu0
        %v1377 = vadd.f32 %v1217, %v1376
        %v1378 = vpop.f32.mrb[0].mxu0
        %1379 = vmatprep.mubr.f32.mxu0 0.0
        %1380 = vmatmul.mubr.f32.gmra.mrb[0].mxu0 %v1252
        %v1381 = vpop.f32.mrb[0].mxu0
        %v1382 = vadd.f32 %v1218, %v1381
        %v1383 = vpop.f32.mrb[0].mxu0
        %1384 = vmatprep.mubr.f32.mxu0 0.0
        %1385 = vmatmul.mubr.f32.gmra.mrb[0].mxu0 %v1255
        %v1386 = vpop.f32.mrb[0].mxu0
        %v1387 = vadd.f32 %v1219, %v1386
        %v1388 = vpop.f32.mrb[0].mxu0
        %1389 = vmatprep.mubr.f32.mxu0 0.0
        %1390 = vmatmul.mubr.f32.gmra.mrb[0].mxu0 %v1258
        %v1391 = vpop.f32.mrb[0].mxu0
        %v1392 = vadd.f32 %v1220, %v1391
        %v1393 = vpop.f32.mrb[0].mxu0
        %1394 = vmatprep.mubr.f32.mxu0 0.0
        %1395 = vmatmul.mubr.f32.gmra.mrb[0].mxu0 %v1261
        %v1396 = vpop.f32.mrb[0].mxu0
        %v1397 = vadd.f32 %v1221, %v1396
        %v1398 = vpop.f32.mrb[0].mxu0
        %1399 = vmatprep.mubr.f32.mxu0 0.0
        %1400 = vmatmul.mubr.f32.gmra.mrb[0].mxu0 %v1264
        %v1401 = vpop.f32.mrb[0].mxu0
        %v1402 = vadd.f32 %v1222, %v1401
        %v1403 = vpop.f32.mrb[0].mxu0
        %1404 = vmatprep.mubr.f32.mxu0 0.0
        %1405 = vmatmul.mubr.f32.gmra.mrb[0].mxu0 %v1267
        %v1406 = vpop.f32.mrb[0].mxu0
        %v1407 = vadd.f32 %v1223, %v1406
        %v1408 = vpop.f32.mrb[0].mxu0
        %1409 = vmatprep.mubr.f32.mxu0 0.0
        %1410 = vmatmul.mubr.f32.gmra.mrb[0].mxu0 %v1270
        %v1411 = vpop.f32.mrb[0].mxu0
        %v1412 = vadd.f32 %v1224, %v1411
        %v1413 = vpop.f32.mrb[0].mxu0
        %1414 = vmatprep.mubr.f32.mxu0 0.0
        %1415 = vmatmul.mubr.f32.gmra.mrb[0].mxu0 %v1273
        %v1416 = vpop.f32.mrb[0].mxu0
        %v1417 = vadd.f32 %v1225, %v1416
        %v1418 = vpop.f32.mrb[0].mxu0
        %1419 = vdwg.mxu0
        %1420 = vmax.xlane.f32.xlu0 %v1342
        %v1421 = vpop.xlane.xlu0 %1420
        %1422 = vmax.xlane.f32.xlu0 %v1347
        %v1423 = vpop.xlane.xlu0 %1422
        %1424 = vmax.xlane.f32.xlu0 %v1352
        %v1425 = vpop.xlane.xlu0 %1424
        %1426 = vmax.xlane.f32.xlu0 %v1357
        %v1427 = vpop.xlane.xlu0 %1426
        %1428 = vmax.xlane.f32.xlu0 %v1362
        %v1429 = vpop.xlane.xlu0 %1428
        %1430 = vmax.xlane.f32.xlu0 %v1367
        %v1431 = vpop.xlane.xlu0 %1430
        %1432 = vmax.xlane.f32.xlu0 %v1372
        %v1433 = vpop.xlane.xlu0 %1432
        %1434 = vmax.xlane.f32.xlu0 %v1377
        %v1435 = vpop.xlane.xlu0 %1434
        %1436 = vmax.xlane.f32.xlu0 %v1382
        %v1437 = vpop.xlane.xlu0 %1436
        %1438 = vmax.xlane.f32.xlu0 %v1387
        %v1439 = vpop.xlane.xlu0 %1438
        %1440 = vmax.xlane.f32.xlu0 %v1392
        %v1441 = vpop.xlane.xlu0 %1440
        %1442 = vmax.xlane.f32.xlu0 %v1397
        %v1443 = vpop.xlane.xlu0 %1442
        %1444 = vmax.xlane.f32.xlu0 %v1402
        %v1445 = vpop.xlane.xlu0 %1444
        %1446 = vmax.xlane.f32.xlu0 %v1407
        %v1447 = vpop.xlane.xlu0 %1446
        %1448 = vmax.xlane.f32.xlu0 %v1412
        %v1449 = vpop.xlane.xlu0 %1448
        %1450 = vmax.xlane.f32.xlu0 %v1417
        %v1451 = vpop.xlane.xlu0 %1450
        %v1452 = vsub.f32 %v1342, %v1421
        %v1453 = vsub.f32 %v1347, %v1423
        %v1454 = vsub.f32 %v1352, %v1425
        %v1455 = vsub.f32 %v1357, %v1427
        %v1456 = vsub.f32 %v1362, %v1429
        %v1457 = vsub.f32 %v1367, %v1431
        %v1458 = vsub.f32 %v1372, %v1433
        %v1459 = vsub.f32 %v1377, %v1435
        %v1460 = vsub.f32 %v1382, %v1437
        %v1461 = vsub.f32 %v1387, %v1439
        %v1462 = vsub.f32 %v1392, %v1441
        %v1463 = vsub.f32 %v1397, %v1443
        %v1464 = vsub.f32 %v1402, %v1445
        %v1465 = vsub.f32 %v1407, %v1447
        %v1466 = vsub.f32 %v1412, %v1449
        %v1467 = vsub.f32 %v1417, %v1451
        %v1468 = vmul.f32 %v1452, 1.442695
        %v1469 = vpow.pop %v1468
        %v1470 = vmul.f32 %v1453, 1.442695
        %v1471 = vpow.pop %v1470
        %v1472 = vmul.f32 %v1454, 1.442695
        %v1473 = vpow.pop %v1472
        %v1474 = vmul.f32 %v1455, 1.442695
        %v1475 = vpow.pop %v1474
        %v1476 = vmul.f32 %v1456, 1.442695
        %v1477 = vpow.pop %v1476
        %v1478 = vmul.f32 %v1457, 1.442695
        %v1479 = vpow.pop %v1478
        %v1480 = vmul.f32 %v1458, 1.442695
        %v1481 = vpow.pop %v1480
        %v1482 = vmul.f32 %v1459, 1.442695
        %v1483 = vpow.pop %v1482
        %v1484 = vmul.f32 %v1460, 1.442695
        %v1485 = vpow.pop %v1484
        %v1486 = vmul.f32 %v1461, 1.442695
        %v1487 = vpow.pop %v1486
        %v1488 = vmul.f32 %v1462, 1.442695
        %v1489 = vpow.pop %v1488
        %v1490 = vmul.f32 %v1463, 1.442695
        %v1491 = vpow.pop %v1490
        %v1492 = vmul.f32 %v1464, 1.442695
        %v1493 = vpow.pop %v1492
        %v1494 = vmul.f32 %v1465, 1.442695
        %v1495 = vpow.pop %v1494
        %v1496 = vmul.f32 %v1466, 1.442695
        %v1497 = vpow.pop %v1496
        %v1498 = vmul.f32 %v1467, 1.442695
        %v1499 = vpow.pop %v1498
        %1500 = vadd.xlane.f32.xlu0 %v1469
        %v1501 = vpop.xlane.xlu0 %1500
        %1502 = vadd.xlane.f32.xlu0 %v1471
        %v1503 = vpop.xlane.xlu0 %1502
        %1504 = vadd.xlane.f32.xlu0 %v1473
        %v1505 = vpop.xlane.xlu0 %1504
        %1506 = vadd.xlane.f32.xlu0 %v1475
        %v1507 = vpop.xlane.xlu0 %1506
        %1508 = vadd.xlane.f32.xlu0 %v1477
        %v1509 = vpop.xlane.xlu0 %1508
        %1510 = vadd.xlane.f32.xlu0 %v1479
        %v1511 = vpop.xlane.xlu0 %1510
        %1512 = vadd.xlane.f32.xlu0 %v1481
        %v1513 = vpop.xlane.xlu0 %1512
        %1514 = vadd.xlane.f32.xlu0 %v1483
        %v1515 = vpop.xlane.xlu0 %1514
        %1516 = vadd.xlane.f32.xlu0 %v1485
        %v1517 = vpop.xlane.xlu0 %1516
        %1518 = vadd.xlane.f32.xlu0 %v1487
        %v1519 = vpop.xlane.xlu0 %1518
        %1520 = vadd.xlane.f32.xlu0 %v1489
        %v1521 = vpop.xlane.xlu0 %1520
        %1522 = vadd.xlane.f32.xlu0 %v1491
        %v1523 = vpop.xlane.xlu0 %1522
        %1524 = vadd.xlane.f32.xlu0 %v1493
        %v1525 = vpop.xlane.xlu0 %1524
        %1526 = vadd.xlane.f32.xlu0 %v1495
        %v1527 = vpop.xlane.xlu0 %1526
        %1528 = vadd.xlane.f32.xlu0 %v1497
        %v1529 = vpop.xlane.xlu0 %1528
        %1530 = vadd.xlane.f32.xlu0 %v1499
        %v1531 = vpop.xlane.xlu0 %1530
        %v1532 = vrcp.pop %v1501
        %v1533 = vrcp.pop %v1503
        %v1534 = vrcp.pop %v1505
        %v1535 = vrcp.pop %v1507
        %v1536 = vrcp.pop %v1509
        %v1537 = vrcp.pop %v1511
        %v1538 = vrcp.pop %v1513
        %v1539 = vrcp.pop %v1515
        %v1540 = vrcp.pop %v1517
        %v1541 = vrcp.pop %v1519
        %v1542 = vrcp.pop %v1521
        %v1543 = vrcp.pop %v1523
        %v1544 = vrcp.pop %v1525
        %v1545 = vrcp.pop %v1527
        %v1546 = vrcp.pop %v1529
        %v1547 = vrcp.pop %v1531
        %v1548 = vld [vmem:[#allocation11] sm:$0xff]
        %v1549 = vld [vmem:[#allocation11 + $0x8] sm:$0xff]
        %v1550 = vld [vmem:[#allocation11 + $0x10] sm:$0xff]
        %v1551 = vld [vmem:[#allocation11 + $0x18] sm:$0xff]
        %v1552 = vld [vmem:[#allocation11 + $0x20] sm:$0xff]
        %v1553 = vld [vmem:[#allocation11 + $0x28] sm:$0xff]
        %v1554 = vld [vmem:[#allocation11 + $0x30] sm:$0xff]
        %v1555 = vld [vmem:[#allocation11 + $0x38] sm:$0xff]
        %v1556 = vld [vmem:[#allocation11 + $0x40] sm:$0xff]
        %v1557 = vld [vmem:[#allocation11 + $0x48] sm:$0xff]
        %v1558 = vld [vmem:[#allocation11 + $0x50] sm:$0xff]
        %v1559 = vld [vmem:[#allocation11 + $0x58] sm:$0xff]
        %v1560 = vld [vmem:[#allocation11 + $0x60] sm:$0xff]
        %v1561 = vld [vmem:[#allocation11 + $0x68] sm:$0xff]
        %v1562 = vld [vmem:[#allocation11 + $0x70] sm:$0xff]
        %v1563 = vld [vmem:[#allocation11 + $0x78] sm:$0xff]
        %v1564 = vmul.f32 %v1469, %v1548
        %v1565 = vmul.f32 %v1471, %v1549
        %v1566 = vmul.f32 %v1473, %v1550
        %v1567 = vmul.f32 %v1475, %v1551
        %v1568 = vmul.f32 %v1477, %v1552
        %v1569 = vmul.f32 %v1479, %v1553
        %v1570 = vmul.f32 %v1481, %v1554
        %v1571 = vmul.f32 %v1483, %v1555
        %v1572 = vmul.f32 %v1485, %v1556
        %v1573 = vmul.f32 %v1487, %v1557
        %v1574 = vmul.f32 %v1489, %v1558
        %v1575 = vmul.f32 %v1491, %v1559
        %v1576 = vmul.f32 %v1493, %v1560
        %v1577 = vmul.f32 %v1495, %v1561
        %v1578 = vmul.f32 %v1497, %v1562
        %v1579 = vmul.f32 %v1499, %v1563
        %1580 = vmatprep.subr.mxu0 0.0
        %1581 = vmatpush1.xpose.msra.mxu0 %v1206
        %1582 = vmatprep.subr.mxu0 0.0
        %1583 = vmatpush1.xpose.msra.mxu0 %v1207
        %1584 = vmatprep.subr.mxu0 0.0
        %1585 = vmatpush1.xpose.msra.mxu0 %v1208
        %1586 = vmatprep.subr.mxu0 0.0
        %1587 = vmatpush1.xpose.msra.mxu0 %v1209
        %1588 = vmatprep.subr.mxu0 0.0
        %1589 = vmatpush1.xpose.msra.mxu0 0.0
        %1590 = vmatprep.subr.mxu0 0.0
        %1591 = vmatpush1.xpose.msra.mxu0 0.0
        %1592 = vmatprep.subr.mxu0 0.0
        %1593 = vmatpush1.xpose.msra.mxu0 0.0
        %1594 = vmatprep.subr.mxu0 0.0
        %1595 = vmatpush1.xpose.msra.mxu0 0.0
        %1596 = vmatprep.subr.mxu0 0.0
        %1597 = vmatpush1.xpose.msra.mxu0 0.0
        %1598 = vmatprep.subr.mxu0 0.0
        %1599 = vmatpush1.xpose.msra.mxu0 0.0
        %1600 = vmatprep.subr.mxu0 0.0
        %1601 = vmatpush1.xpose.msra.mxu0 0.0
        %1602 = vmatprep.subr.mxu0 0.0
        %1603 = vmatpush1.xpose.msra.mxu0 0.0
        %1604 = vmatprep.subr.mxu0 0.0
        %1605 = vmatpush1.xpose.msra.mxu0 0.0
        %1606 = vmatprep.subr.mxu0 0.0
        %1607 = vmatpush1.xpose.msra.mxu0 0.0
        %1608 = vmatprep.subr.mxu0 0.0
        %1609 = vmatpush1.xpose.msra.mxu0 0.0
        %1610 = vmatprep.subr.mxu0 0.0
        %1611 = vmatpush1.xpose.msra.mxu0 0.0
        %1612 = vmatprep.subr.mxu0 0.0
        %1613 = vmatpush1.xpose.msra.mxu0 0.0
        %1614 = vmatprep.subr.mxu0 0.0
        %1615 = vmatpush1.xpose.msra.mxu0 0.0
        %1616 = vmatprep.subr.mxu0 0.0
        %1617 = vmatpush1.xpose.msra.mxu0 0.0
        %1618 = vmatprep.subr.mxu0 0.0
        %1619 = vmatpush1.xpose.msra.mxu0 0.0
        %1620 = vmatprep.subr.mxu0 0.0
        %1621 = vmatpush1.xpose.msra.mxu0 0.0
        %1622 = vmatprep.subr.mxu0 0.0
        %1623 = vmatpush1.xpose.msra.mxu0 0.0
        %1624 = vmatprep.subr.mxu0 0.0
        %1625 = vmatpush1.xpose.msra.mxu0 0.0
        %1626 = vmatprep.subr.mxu0 0.0
        %1627 = vmatpush1.xpose.msra.mxu0 0.0
        %1628 = vmatprep.subr.mxu0 0.0
        %1629 = vmatpush1.xpose.msra.mxu0 0.0
        %1630 = vmatprep.subr.mxu0 0.0
        %1631 = vmatpush1.xpose.msra.mxu0 0.0
        %1632 = vmatprep.subr.mxu0 0.0
        %1633 = vmatpush1.xpose.msra.mxu0 0.0
        %1634 = vmatprep.subr.mxu0 0.0
        %1635 = vmatpush1.xpose.msra.mxu0 0.0
        %1636 = vmatprep.subr.mxu0 0.0
        %1637 = vmatpush1.xpose.msra.mxu0 0.0
        %1638 = vmatprep.subr.mxu0 0.0
        %1639 = vmatpush1.xpose.msra.mxu0 0.0
        %1640 = vmatprep.subr.mxu0 0.0
        %1641 = vmatpush1.xpose.msra.mxu0 0.0
        %1642 = vmatprep.subr.mxu0 0.0
        %1643 = vmatpush1.xpose.msra.mxu0 0.0
        %1644 = vmatprep.mubr.f32.mxu0 0.0
        %1645 = vmatmul.mubr.f32.gmra.mrb[0].mxu0 %v1564
        %v1646 = vpop.f32.mrb[0].mxu0
        %v1647 = vadd.f32 0.0, %v1646
        %v1648 = vpop.f32.mrb[0].mxu0
        %1649 = vmatprep.mubr.f32.mxu0 0.0
        %1650 = vmatmul.mubr.f32.gmra.mrb[0].mxu0 %v1565
        %v1651 = vpop.f32.mrb[0].mxu0
        %v1652 = vadd.f32 0.0, %v1651
        %v1653 = vpop.f32.mrb[0].mxu0
        %1654 = vmatprep.mubr.f32.mxu0 0.0
        %1655 = vmatmul.mubr.f32.gmra.mrb[0].mxu0 %v1566
        %v1656 = vpop.f32.mrb[0].mxu0
        %v1657 = vadd.f32 0.0, %v1656
        %v1658 = vpop.f32.mrb[0].mxu0
        %1659 = vmatprep.mubr.f32.mxu0 0.0
        %1660 = vmatmul.mubr.f32.gmra.mrb[0].mxu0 %v1567
        %v1661 = vpop.f32.mrb[0].mxu0
        %v1662 = vadd.f32 0.0, %v1661
        %v1663 = vpop.f32.mrb[0].mxu0
        %1664 = vmatprep.mubr.f32.mxu0 0.0
        %1665 = vmatmul.mubr.f32.gmra.mrb[0].mxu0 %v1568
        %v1666 = vpop.f32.mrb[0].mxu0
        %v1667 = vadd.f32 0.0, %v1666
        %v1668 = vpop.f32.mrb[0].mxu0
        %1669 = vmatprep.mubr.f32.mxu0 0.0
        %1670 = vmatmul.mubr.f32.gmra.mrb[0].mxu0 %v1569
        %v1671 = vpop.f32.mrb[0].mxu0
        %v1672 = vadd.f32 0.0, %v1671
        %v1673 = vpop.f32.mrb[0].mxu0
        %1674 = vmatprep.mubr.f32.mxu0 0.0
        %1675 = vmatmul.mubr.f32.gmra.mrb[0].mxu0 %v1570
        %v1676 = vpop.f32.mrb[0].mxu0
        %v1677 = vadd.f32 0.0, %v1676
        %v1678 = vpop.f32.mrb[0].mxu0
        %1679 = vmatprep.mubr.f32.mxu0 0.0
        %1680 = vmatmul.mubr.f32.gmra.mrb[0].mxu0 %v1571
        %v1681 = vpop.f32.mrb[0].mxu0
        %v1682 = vadd.f32 0.0, %v1681
        %v1683 = vpop.f32.mrb[0].mxu0
        %1684 = vmatprep.mubr.f32.mxu0 0.0
        %1685 = vmatmul.mubr.f32.gmra.mrb[0].mxu0 %v1572
        %v1686 = vpop.f32.mrb[0].mxu0
        %v1687 = vadd.f32 0.0, %v1686
        %v1688 = vpop.f32.mrb[0].mxu0
        %1689 = vmatprep.mubr.f32.mxu0 0.0
        %1690 = vmatmul.mubr.f32.gmra.mrb[0].mxu0 %v1573
        %v1691 = vpop.f32.mrb[0].mxu0
        %v1692 = vadd.f32 0.0, %v1691
        %v1693 = vpop.f32.mrb[0].mxu0
        %1694 = vmatprep.mubr.f32.mxu0 0.0
        %1695 = vmatmul.mubr.f32.gmra.mrb[0].mxu0 %v1574
        %v1696 = vpop.f32.mrb[0].mxu0
        %v1697 = vadd.f32 0.0, %v1696
        %v1698 = vpop.f32.mrb[0].mxu0
        %1699 = vmatprep.mubr.f32.mxu0 0.0
        %1700 = vmatmul.mubr.f32.gmra.mrb[0].mxu0 %v1575
        %v1701 = vpop.f32.mrb[0].mxu0
        %v1702 = vadd.f32 0.0, %v1701
        %v1703 = vpop.f32.mrb[0].mxu0
        %1704 = vmatprep.mubr.f32.mxu0 0.0
        %1705 = vmatmul.mubr.f32.gmra.mrb[0].mxu0 %v1576
        %v1706 = vpop.f32.mrb[0].mxu0
        %v1707 = vadd.f32 0.0, %v1706
        %v1708 = vpop.f32.mrb[0].mxu0
        %1709 = vmatprep.mubr.f32.mxu0 0.0
        %1710 = vmatmul.mubr.f32.gmra.mrb[0].mxu0 %v1577
        %v1711 = vpop.f32.mrb[0].mxu0
        %v1712 = vadd.f32 0.0, %v1711
        %v1713 = vpop.f32.mrb[0].mxu0
        %1714 = vmatprep.mubr.f32.mxu0 0.0
        %1715 = vmatmul.mubr.f32.gmra.mrb[0].mxu0 %v1578
        %v1716 = vpop.f32.mrb[0].mxu0
        %v1717 = vadd.f32 0.0, %v1716
        %v1718 = vpop.f32.mrb[0].mxu0
        %1719 = vmatprep.mubr.f32.mxu0 0.0
        %1720 = vmatmul.mubr.f32.gmra.mrb[0].mxu0 %v1579
        %v1721 = vpop.f32.mrb[0].mxu0
        %v1722 = vadd.f32 0.0, %v1721
        %v1723 = vpop.f32.mrb[0].mxu0
        %1724 = vdwg.mxu0
        %v1725 = vmul.f32 %v1647, %v1532
        %v1726 = vmul.f32 %v1652, %v1533
        %v1727 = vmul.f32 %v1657, %v1534
        %v1728 = vmul.f32 %v1662, %v1535
        %v1729 = vmul.f32 %v1667, %v1536
        %v1730 = vmul.f32 %v1672, %v1537
        %v1731 = vmul.f32 %v1677, %v1538
        %v1732 = vmul.f32 %v1682, %v1539
        %v1733 = vmul.f32 %v1687, %v1540
        %v1734 = vmul.f32 %v1692, %v1541
        %v1735 = vmul.f32 %v1697, %v1542
        %v1736 = vmul.f32 %v1702, %v1543
        %v1737 = vmul.f32 %v1707, %v1544
        %v1738 = vmul.f32 %v1712, %v1545
        %v1739 = vmul.f32 %v1717, %v1546
        %v1740 = vmul.f32 %v1722, %v1547
        %v1741 = vld [vmem:[#allocation10] sm:$0xff]
        %v1742 = vld [vmem:[#allocation10 + $0x8] sm:$0xff]
        %v1743 = vld [vmem:[#allocation10 + $0x10] sm:$0xff]
        %v1744 = vld [vmem:[#allocation10 + $0x18] sm:$0xff]
        %v1746 = vsel %vm1226, %v1725, 0
        %v1749 = vsel %vm1226, %v1726, 0
        %v1752 = vsel %vm1226, %v1727, 0
        %v1755 = vsel %vm1226, %v1728, 0
        %v1758 = vsel %vm1226, %v1729, 0
        %v1761 = vsel %vm1226, %v1730, 0
        %v1764 = vsel %vm1226, %v1731, 0
        %v1767 = vsel %vm1226, %v1732, 0
        %v1770 = vsel %vm1226, %v1733, 0
        %v1773 = vsel %vm1226, %v1734, 0
        %v1776 = vsel %vm1226, %v1735, 0
        %v1779 = vsel %vm1226, %v1736, 0
        %v1782 = vsel %vm1226, %v1737, 0
        %v1785 = vsel %vm1226, %v1738, 0
        %v1788 = vsel %vm1226, %v1739, 0
        %v1791 = vsel %vm1226, %v1740, 0
        %1793 = vmatprep.subr.mxu0 0.0
        %1794 = vmatpush1.msra.mxu0 %v1741
        %1795 = vmatprep.subr.mxu0 0.0
        %1796 = vmatpush1.msra.mxu0 %v1742
        %1797 = vmatprep.subr.mxu0 0.0
        %1798 = vmatpush1.msra.mxu0 %v1743
        %1799 = vmatprep.subr.mxu0 0.0
        %1800 = vmatpush1.msra.mxu0 %v1744
        %1801 = vmatprep.subr.mxu0 0.0
        %1802 = vmatpush1.msra.mxu0 0.0
        %1803 = vmatprep.subr.mxu0 0.0
        %1804 = vmatpush1.msra.mxu0 0.0
        %1805 = vmatprep.subr.mxu0 0.0
        %1806 = vmatpush1.msra.mxu0 0.0
        %1807 = vmatprep.subr.mxu0 0.0
        %1808 = vmatpush1.msra.mxu0 0.0
        %1809 = vmatprep.subr.mxu0 0.0
        %1810 = vmatpush1.msra.mxu0 0.0
        %1811 = vmatprep.subr.mxu0 0.0
        %1812 = vmatpush1.msra.mxu0 0.0
        %1813 = vmatprep.subr.mxu0 0.0
        %1814 = vmatpush1.msra.mxu0 0.0
        %1815 = vmatprep.subr.mxu0 0.0
        %1816 = vmatpush1.msra.mxu0 0.0
        %1817 = vmatprep.subr.mxu0 0.0
        %1818 = vmatpush1.msra.mxu0 0.0
        %1819 = vmatprep.subr.mxu0 0.0
        %1820 = vmatpush1.msra.mxu0 0.0
        %1821 = vmatprep.subr.mxu0 0.0
        %1822 = vmatpush1.msra.mxu0 0.0
        %1823 = vmatprep.subr.mxu0 0.0
        %1824 = vmatpush1.msra.mxu0 0.0
        %1825 = vmatprep.subr.mxu0 0.0
        %1826 = vmatpush1.msra.mxu0 0.0
        %1827 = vmatprep.subr.mxu0 0.0
        %1828 = vmatpush1.msra.mxu0 0.0
        %1829 = vmatprep.subr.mxu0 0.0
        %1830 = vmatpush1.msra.mxu0 0.0
        %1831 = vmatprep.subr.mxu0 0.0
        %1832 = vmatpush1.msra.mxu0 0.0
        %1833 = vmatprep.subr.mxu0 0.0
        %1834 = vmatpush1.msra.mxu0 0.0
        %1835 = vmatprep.subr.mxu0 0.0
        %1836 = vmatpush1.msra.mxu0 0.0
        %1837 = vmatprep.subr.mxu0 0.0
        %1838 = vmatpush1.msra.mxu0 0.0
        %1839 = vmatprep.subr.mxu0 0.0
        %1840 = vmatpush1.msra.mxu0 0.0
        %1841 = vmatprep.subr.mxu0 0.0
        %1842 = vmatpush1.msra.mxu0 0.0
        %1843 = vmatprep.subr.mxu0 0.0
        %1844 = vmatpush1.msra.mxu0 0.0
        %1845 = vmatprep.subr.mxu0 0.0
        %1846 = vmatpush1.msra.mxu0 0.0
        %1847 = vmatprep.subr.mxu0 0.0
        %1848 = vmatpush1.msra.mxu0 0.0
        %1849 = vmatprep.subr.mxu0 0.0
        %1850 = vmatpush1.msra.mxu0 0.0
        %1851 = vmatprep.subr.mxu0 0.0
        %1852 = vmatpush1.msra.mxu0 0.0
        %1853 = vmatprep.subr.mxu0 0.0
        %1854 = vmatpush1.msra.mxu0 0.0
        %1855 = vmatprep.subr.mxu0 0.0
        %1856 = vmatpush1.msra.mxu0 0.0
        %1857 = vmatprep.mubr.f32.mxu0 0.0
        %1858 = vmatmul.mubr.f32.gmra.mrb[0].mxu0 %v1746
        %v1859 = vpop.f32.mrb[0].mxu0
        %v1860 = vadd.f32 0.0, %v1859
        %v1861 = vpop.f32.mrb[0].mxu0
        %1862 = vmatprep.mubr.f32.mxu0 0.0
        %1863 = vmatmul.mubr.f32.gmra.mrb[0].mxu0 %v1749
        %v1864 = vpop.f32.mrb[0].mxu0
        %v1865 = vadd.f32 0.0, %v1864
        %v1866 = vpop.f32.mrb[0].mxu0
        %1867 = vmatprep.mubr.f32.mxu0 0.0
        %1868 = vmatmul.mubr.f32.gmra.mrb[0].mxu0 %v1752
        %v1869 = vpop.f32.mrb[0].mxu0
        %v1870 = vadd.f32 0.0, %v1869
        %v1871 = vpop.f32.mrb[0].mxu0
        %1872 = vmatprep.mubr.f32.mxu0 0.0
        %1873 = vmatmul.mubr.f32.gmra.mrb[0].mxu0 %v1755
        %v1874 = vpop.f32.mrb[0].mxu0
        %v1875 = vadd.f32 0.0, %v1874
        %v1876 = vpop.f32.mrb[0].mxu0
        %1877 = vmatprep.mubr.f32.mxu0 0.0
        %1878 = vmatmul.mubr.f32.gmra.mrb[0].mxu0 %v1758
        %v1879 = vpop.f32.mrb[0].mxu0
        %v1880 = vadd.f32 0.0, %v1879
        %v1881 = vpop.f32.mrb[0].mxu0
        %1882 = vmatprep.mubr.f32.mxu0 0.0
        %1883 = vmatmul.mubr.f32.gmra.mrb[0].mxu0 %v1761
        %v1884 = vpop.f32.mrb[0].mxu0
        %v1885 = vadd.f32 0.0, %v1884
        %v1886 = vpop.f32.mrb[0].mxu0
        %1887 = vmatprep.mubr.f32.mxu0 0.0
        %1888 = vmatmul.mubr.f32.gmra.mrb[0].mxu0 %v1764
        %v1889 = vpop.f32.mrb[0].mxu0
        %v1890 = vadd.f32 0.0, %v1889
        %v1891 = vpop.f32.mrb[0].mxu0
        %1892 = vmatprep.mubr.f32.mxu0 0.0
        %1893 = vmatmul.mubr.f32.gmra.mrb[0].mxu0 %v1767
        %v1894 = vpop.f32.mrb[0].mxu0
        %v1895 = vadd.f32 0.0, %v1894
        %v1896 = vpop.f32.mrb[0].mxu0
        %1897 = vmatprep.mubr.f32.mxu0 0.0
        %1898 = vmatmul.mubr.f32.gmra.mrb[0].mxu0 %v1770
        %v1899 = vpop.f32.mrb[0].mxu0
        %v1900 = vadd.f32 0.0, %v1899
        %v1901 = vpop.f32.mrb[0].mxu0
        %1902 = vmatprep.mubr.f32.mxu0 0.0
        %1903 = vmatmul.mubr.f32.gmra.mrb[0].mxu0 %v1773
        %v1904 = vpop.f32.mrb[0].mxu0
        %v1905 = vadd.f32 0.0, %v1904
        %v1906 = vpop.f32.mrb[0].mxu0
        %1907 = vmatprep.mubr.f32.mxu0 0.0
        %1908 = vmatmul.mubr.f32.gmra.mrb[0].mxu0 %v1776
        %v1909 = vpop.f32.mrb[0].mxu0
        %v1910 = vadd.f32 0.0, %v1909
        %v1911 = vpop.f32.mrb[0].mxu0
        %1912 = vmatprep.mubr.f32.mxu0 0.0
        %1913 = vmatmul.mubr.f32.gmra.mrb[0].mxu0 %v1779
        %v1914 = vpop.f32.mrb[0].mxu0
        %v1915 = vadd.f32 0.0, %v1914
        %v1916 = vpop.f32.mrb[0].mxu0
        %1917 = vmatprep.mubr.f32.mxu0 0.0
        %1918 = vmatmul.mubr.f32.gmra.mrb[0].mxu0 %v1782
        %v1919 = vpop.f32.mrb[0].mxu0
        %v1920 = vadd.f32 0.0, %v1919
        %v1921 = vpop.f32.mrb[0].mxu0
        %1922 = vmatprep.mubr.f32.mxu0 0.0
        %1923 = vmatmul.mubr.f32.gmra.mrb[0].mxu0 %v1785
        %v1924 = vpop.f32.mrb[0].mxu0
        %v1925 = vadd.f32 0.0, %v1924
        %v1926 = vpop.f32.mrb[0].mxu0
        %1927 = vmatprep.mubr.f32.mxu0 0.0
        %1928 = vmatmul.mubr.f32.gmra.mrb[0].mxu0 %v1788
        %v1929 = vpop.f32.mrb[0].mxu0
        %v1930 = vadd.f32 0.0, %v1929
        %v1931 = vpop.f32.mrb[0].mxu0
        %1932 = vmatprep.mubr.f32.mxu0 0.0
        %1933 = vmatmul.mubr.f32.gmra.mrb[0].mxu0 %v1791
        %v1934 = vpop.f32.mrb[0].mxu0
        %v1935 = vadd.f32 0.0, %v1934
        %v1936 = vpop.f32.mrb[0].mxu0
        %1937 = vdwg.mxu0
        %1938 = vst [vmem:[#allocation4] sm:$0xff] %v1860
        %1939 = vst [vmem:[#allocation4 + $0x8] sm:$0xff] %v1865
        %1940 = vst [vmem:[#allocation4 + $0x10] sm:$0xff] %v1870
        %1941 = vst [vmem:[#allocation4 + $0x18] sm:$0xff] %v1875
        %1942 = vst [vmem:[#allocation4 + $0x20] sm:$0xff] %v1880
        %1943 = vst [vmem:[#allocation4 + $0x28] sm:$0xff] %v1885
        %1944 = vst [vmem:[#allocation4 + $0x30] sm:$0xff] %v1890
        %1945 = vst [vmem:[#allocation4 + $0x38] sm:$0xff] %v1895
        %1946 = vst [vmem:[#allocation4 + $0x40] sm:$0xff] %v1900
        %1947 = vst [vmem:[#allocation4 + $0x48] sm:$0xff] %v1905
        %1948 = vst [vmem:[#allocation4 + $0x50] sm:$0xff] %v1910
        %1949 = vst [vmem:[#allocation4 + $0x58] sm:$0xff] %v1915
        %1950 = vst [vmem:[#allocation4 + $0x60] sm:$0xff] %v1920
        %1951 = vst [vmem:[#allocation4 + $0x68] sm:$0xff] %v1925
        %1952 = vst [vmem:[#allocation4 + $0x70] sm:$0xff] %v1930
        %1953 = vst [vmem:[#allocation4 + $0x78] sm:$0xff] %v1935
        %v1954 = vld [vmem:[#allocation2] sm:$0xff]
        %v1955 = vld [vmem:[#allocation2 + $0x8] sm:$0xff]
        %v1956 = vld [vmem:[#allocation2 + $0x10] sm:$0xff]
        %v1957 = vld [vmem:[#allocation2 + $0x18] sm:$0xff]
        %v1958 = vld [vmem:[#allocation2 + $0x20] sm:$0xff]
        %v1959 = vld [vmem:[#allocation2 + $0x28] sm:$0xff]
        %v1960 = vld [vmem:[#allocation2 + $0x30] sm:$0xff]
        %v1961 = vld [vmem:[#allocation2 + $0x38] sm:$0xff]
        %v1962 = vld [vmem:[#allocation2 + $0x40] sm:$0xff]
        %v1963 = vld [vmem:[#allocation2 + $0x48] sm:$0xff]
        %v1964 = vld [vmem:[#allocation2 + $0x50] sm:$0xff]
        %v1965 = vld [vmem:[#allocation2 + $0x58] sm:$0xff]
        %v1966 = vld [vmem:[#allocation2 + $0x60] sm:$0xff]
        %v1967 = vld [vmem:[#allocation2 + $0x68] sm:$0xff]
        %v1968 = vld [vmem:[#allocation2 + $0x70] sm:$0xff]
        %v1969 = vld [vmem:[#allocation2 + $0x78] sm:$0xff]
        %v1970 = vld [vmem:[#allocation3 + $0x20] sm:$0xff]
        %v1971 = vld [vmem:[#allocation3 + $0x28] sm:$0xff]
        %v1972 = vld [vmem:[#allocation3 + $0x30] sm:$0xff]
        %v1973 = vld [vmem:[#allocation3 + $0x38] sm:$0xff]
        %v1974 = vld [vmem:[#allocation3 + $0xa0] sm:$0xff]
        %v1975 = vld [vmem:[#allocation3 + $0xa8] sm:$0xff]
        %v1976 = vld [vmem:[#allocation3 + $0xb0] sm:$0xff]
        %v1977 = vld [vmem:[#allocation3 + $0xb8] sm:$0xff]
        %v1978 = vld [vmem:[#allocation13] sm:$0xff]
        %v1979 = vld [vmem:[#allocation13 + $0x8] sm:$0xff]
        %v1980 = vld [vmem:[#allocation13 + $0x10] sm:$0xff]
        %v1981 = vld [vmem:[#allocation13 + $0x18] sm:$0xff]
        %v1982 = vld [vmem:[#allocation13 + $0x20] sm:$0xff]
        %v1983 = vld [vmem:[#allocation13 + $0x28] sm:$0xff]
        %v1984 = vld [vmem:[#allocation13 + $0x30] sm:$0xff]
        %v1985 = vld [vmem:[#allocation13 + $0x38] sm:$0xff]
        %v1986 = vld [vmem:[#allocation13 + $0x40] sm:$0xff]
        %v1987 = vld [vmem:[#allocation13 + $0x48] sm:$0xff]
        %v1988 = vld [vmem:[#allocation13 + $0x50] sm:$0xff]
        %v1989 = vld [vmem:[#allocation13 + $0x58] sm:$0xff]
        %v1990 = vld [vmem:[#allocation13 + $0x60] sm:$0xff]
        %v1991 = vld [vmem:[#allocation13 + $0x68] sm:$0xff]
        %v1992 = vld [vmem:[#allocation13 + $0x70] sm:$0xff]
        %v1993 = vld [vmem:[#allocation13 + $0x78] sm:$0xff]
        %2010 = vrot.lane.b32.xlu0 %v1954, 96
        %v2011 = vpop.permute.xlu0 %2010
        %2012 = vrot.lane.b32.xlu0 %v1955, 96
        %v2013 = vpop.permute.xlu0 %2012
        %2014 = vrot.lane.b32.xlu0 %v1956, 96
        %v2015 = vpop.permute.xlu0 %2014
        %2016 = vrot.lane.b32.xlu0 %v1957, 96
        %v2017 = vpop.permute.xlu0 %2016
        %2018 = vrot.lane.b32.xlu0 %v1958, 96
        %v2019 = vpop.permute.xlu0 %2018
        %2020 = vrot.lane.b32.xlu0 %v1959, 96
        %v2021 = vpop.permute.xlu0 %2020
        %2022 = vrot.lane.b32.xlu0 %v1960, 96
        %v2023 = vpop.permute.xlu0 %2022
        %2024 = vrot.lane.b32.xlu0 %v1961, 96
        %v2025 = vpop.permute.xlu0 %2024
        %2026 = vrot.lane.b32.xlu0 %v1962, 96
        %v2027 = vpop.permute.xlu0 %2026
        %2028 = vrot.lane.b32.xlu0 %v1963, 96
        %v2029 = vpop.permute.xlu0 %2028
        %2030 = vrot.lane.b32.xlu0 %v1964, 96
        %v2031 = vpop.permute.xlu0 %2030
        %2032 = vrot.lane.b32.xlu0 %v1965, 96
        %v2033 = vpop.permute.xlu0 %2032
        %2034 = vrot.lane.b32.xlu0 %v1966, 96
        %v2035 = vpop.permute.xlu0 %2034
        %2036 = vrot.lane.b32.xlu0 %v1967, 96
        %v2037 = vpop.permute.xlu0 %2036
        %2038 = vrot.lane.b32.xlu0 %v1968, 96
        %v2039 = vpop.permute.xlu0 %2038
        %2040 = vrot.lane.b32.xlu0 %v1969, 96
        %v2041 = vpop.permute.xlu0 %2040
        %v2042 = vsel %vm1226, %v2011, 0
        %v2044 = vsel %vm1226, %v2013, 0
        %v2046 = vsel %vm1226, %v2015, 0
        %v2048 = vsel %vm1226, %v2017, 0
        %v2050 = vsel %vm1226, %v2019, 0
        %v2052 = vsel %vm1226, %v2021, 0
        %v2054 = vsel %vm1226, %v2023, 0
        %v2056 = vsel %vm1226, %v2025, 0
        %v2058 = vsel %vm1226, %v2027, 0
        %v2060 = vsel %vm1226, %v2029, 0
        %v2062 = vsel %vm1226, %v2031, 0
        %v2064 = vsel %vm1226, %v2033, 0
        %v2066 = vsel %vm1226, %v2035, 0
        %v2068 = vsel %vm1226, %v2037, 0
        %v2070 = vsel %vm1226, %v2039, 0
        %v2072 = vsel %vm1226, %v2041, 0
        %2074 = vmatprep.subr.mxu0 0.0
        %2075 = vmatpush1.msra.mxu0 %v1970
        %2076 = vmatprep.subr.mxu0 0.0
        %2077 = vmatpush1.msra.mxu0 %v1971
        %2078 = vmatprep.subr.mxu0 0.0
        %2079 = vmatpush1.msra.mxu0 %v1972
        %2080 = vmatprep.subr.mxu0 0.0
        %2081 = vmatpush1.msra.mxu0 %v1973
        %2082 = vmatprep.subr.mxu0 0.0
        %2083 = vmatpush1.msra.mxu0 0.0
        %2084 = vmatprep.subr.mxu0 0.0
        %2085 = vmatpush1.msra.mxu0 0.0
        %2086 = vmatprep.subr.mxu0 0.0
        %2087 = vmatpush1.msra.mxu0 0.0
        %2088 = vmatprep.subr.mxu0 0.0
        %2089 = vmatpush1.msra.mxu0 0.0
        %2090 = vmatprep.subr.mxu0 0.0
        %2091 = vmatpush1.msra.mxu0 0.0
        %2092 = vmatprep.subr.mxu0 0.0
        %2093 = vmatpush1.msra.mxu0 0.0
        %2094 = vmatprep.subr.mxu0 0.0
        %2095 = vmatpush1.msra.mxu0 0.0
        %2096 = vmatprep.subr.mxu0 0.0
        %2097 = vmatpush1.msra.mxu0 0.0
        %2098 = vmatprep.subr.mxu0 0.0
        %2099 = vmatpush1.msra.mxu0 0.0
        %2100 = vmatprep.subr.mxu0 0.0
        %2101 = vmatpush1.msra.mxu0 0.0
        %2102 = vmatprep.subr.mxu0 0.0
        %2103 = vmatpush1.msra.mxu0 0.0
        %2104 = vmatprep.subr.mxu0 0.0
        %2105 = vmatpush1.msra.mxu0 0.0
        %2106 = vmatprep.subr.mxu0 0.0
        %2107 = vmatpush1.msra.mxu0 0.0
        %2108 = vmatprep.subr.mxu0 0.0
        %2109 = vmatpush1.msra.mxu0 0.0
        %2110 = vmatprep.subr.mxu0 0.0
        %2111 = vmatpush1.msra.mxu0 0.0
        %2112 = vmatprep.subr.mxu0 0.0
        %2113 = vmatpush1.msra.mxu0 0.0
        %2114 = vmatprep.subr.mxu0 0.0
        %2115 = vmatpush1.msra.mxu0 0.0
        %2116 = vmatprep.subr.mxu0 0.0
        %2117 = vmatpush1.msra.mxu0 0.0
        %2118 = vmatprep.subr.mxu0 0.0
        %2119 = vmatpush1.msra.mxu0 0.0
        %2120 = vmatprep.subr.mxu0 0.0
        %2121 = vmatpush1.msra.mxu0 0.0
        %2122 = vmatprep.subr.mxu0 0.0
        %2123 = vmatpush1.msra.mxu0 0.0
        %2124 = vmatprep.subr.mxu0 0.0
        %2125 = vmatpush1.msra.mxu0 0.0
        %2126 = vmatprep.subr.mxu0 0.0
        %2127 = vmatpush1.msra.mxu0 0.0
        %2128 = vmatprep.subr.mxu0 0.0
        %2129 = vmatpush1.msra.mxu0 0.0
        %2130 = vmatprep.subr.mxu0 0.0
        %2131 = vmatpush1.msra.mxu0 0.0
        %2132 = vmatprep.subr.mxu0 0.0
        %2133 = vmatpush1.msra.mxu0 0.0
        %2134 = vmatprep.subr.mxu0 0.0
        %2135 = vmatpush1.msra.mxu0 0.0
        %2136 = vmatprep.subr.mxu0 0.0
        %2137 = vmatpush1.msra.mxu0 0.0
        %2138 = vmatprep.mubr.f32.mxu0 0.0
        %2139 = vmatmul.mubr.f32.gmra.mrb[0].mxu0 %v2042
        %v2140 = vpop.f32.mrb[0].mxu0
        %v2141 = vadd.f32 %v1978, %v2140
        %v2142 = vpop.f32.mrb[0].mxu0
        %2143 = vmatprep.mubr.f32.mxu0 0.0
        %2144 = vmatmul.mubr.f32.gmra.mrb[0].mxu0 %v2044
        %v2145 = vpop.f32.mrb[0].mxu0
        %v2146 = vadd.f32 %v1979, %v2145
        %v2147 = vpop.f32.mrb[0].mxu0
        %2148 = vmatprep.mubr.f32.mxu0 0.0
        %2149 = vmatmul.mubr.f32.gmra.mrb[0].mxu0 %v2046
        %v2150 = vpop.f32.mrb[0].mxu0
        %v2151 = vadd.f32 %v1980, %v2150
        %v2152 = vpop.f32.mrb[0].mxu0
        %2153 = vmatprep.mubr.f32.mxu0 0.0
        %2154 = vmatmul.mubr.f32.gmra.mrb[0].mxu0 %v2048
        %v2155 = vpop.f32.mrb[0].mxu0
        %v2156 = vadd.f32 %v1981, %v2155
        %v2157 = vpop.f32.mrb[0].mxu0
        %2158 = vmatprep.mubr.f32.mxu0 0.0
        %2159 = vmatmul.mubr.f32.gmra.mrb[0].mxu0 %v2050
        %v2160 = vpop.f32.mrb[0].mxu0
        %v2161 = vadd.f32 %v1982, %v2160
        %v2162 = vpop.f32.mrb[0].mxu0
        %2163 = vmatprep.mubr.f32.mxu0 0.0
        %2164 = vmatmul.mubr.f32.gmra.mrb[0].mxu0 %v2052
        %v2165 = vpop.f32.mrb[0].mxu0
        %v2166 = vadd.f32 %v1983, %v2165
        %v2167 = vpop.f32.mrb[0].mxu0
        %2168 = vmatprep.mubr.f32.mxu0 0.0
        %2169 = vmatmul.mubr.f32.gmra.mrb[0].mxu0 %v2054
        %v2170 = vpop.f32.mrb[0].mxu0
        %v2171 = vadd.f32 %v1984, %v2170
        %v2172 = vpop.f32.mrb[0].mxu0
        %2173 = vmatprep.mubr.f32.mxu0 0.0
        %2174 = vmatmul.mubr.f32.gmra.mrb[0].mxu0 %v2056
        %v2175 = vpop.f32.mrb[0].mxu0
        %v2176 = vadd.f32 %v1985, %v2175
        %v2177 = vpop.f32.mrb[0].mxu0
        %2178 = vmatprep.mubr.f32.mxu0 0.0
        %2179 = vmatmul.mubr.f32.gmra.mrb[0].mxu0 %v2058
        %v2180 = vpop.f32.mrb[0].mxu0
        %v2181 = vadd.f32 %v1986, %v2180
        %v2182 = vpop.f32.mrb[0].mxu0
        %2183 = vmatprep.mubr.f32.mxu0 0.0
        %2184 = vmatmul.mubr.f32.gmra.mrb[0].mxu0 %v2060
        %v2185 = vpop.f32.mrb[0].mxu0
        %v2186 = vadd.f32 %v1987, %v2185
        %v2187 = vpop.f32.mrb[0].mxu0
        %2188 = vmatprep.mubr.f32.mxu0 0.0
        %2189 = vmatmul.mubr.f32.gmra.mrb[0].mxu0 %v2062
        %v2190 = vpop.f32.mrb[0].mxu0
        %v2191 = vadd.f32 %v1988, %v2190
        %v2192 = vpop.f32.mrb[0].mxu0
        %2193 = vmatprep.mubr.f32.mxu0 0.0
        %2194 = vmatmul.mubr.f32.gmra.mrb[0].mxu0 %v2064
        %v2195 = vpop.f32.mrb[0].mxu0
        %v2196 = vadd.f32 %v1989, %v2195
        %v2197 = vpop.f32.mrb[0].mxu0
        %2198 = vmatprep.mubr.f32.mxu0 0.0
        %2199 = vmatmul.mubr.f32.gmra.mrb[0].mxu0 %v2066
        %v2200 = vpop.f32.mrb[0].mxu0
        %v2201 = vadd.f32 %v1990, %v2200
        %v2202 = vpop.f32.mrb[0].mxu0
        %2203 = vmatprep.mubr.f32.mxu0 0.0
        %2204 = vmatmul.mubr.f32.gmra.mrb[0].mxu0 %v2068
        %v2205 = vpop.f32.mrb[0].mxu0
        %v2206 = vadd.f32 %v1991, %v2205
        %v2207 = vpop.f32.mrb[0].mxu0
        %2208 = vmatprep.mubr.f32.mxu0 0.0
        %2209 = vmatmul.mubr.f32.gmra.mrb[0].mxu0 %v2070
        %v2210 = vpop.f32.mrb[0].mxu0
        %v2211 = vadd.f32 %v1992, %v2210
        %v2212 = vpop.f32.mrb[0].mxu0
        %2213 = vmatprep.mubr.f32.mxu0 0.0
        %2214 = vmatmul.mubr.f32.gmra.mrb[0].mxu0 %v2072
        %v2215 = vpop.f32.mrb[0].mxu0
        %v2216 = vadd.f32 %v1993, %v2215
        %v2217 = vpop.f32.mrb[0].mxu0
        %2218 = vdwg.mxu0
        %2219 = vmax.xlane.f32.xlu0 %v2141
        %v2220 = vpop.xlane.xlu0 %2219
        %2221 = vmax.xlane.f32.xlu0 %v2146
        %v2222 = vpop.xlane.xlu0 %2221
        %2223 = vmax.xlane.f32.xlu0 %v2151
        %v2224 = vpop.xlane.xlu0 %2223
        %2225 = vmax.xlane.f32.xlu0 %v2156
        %v2226 = vpop.xlane.xlu0 %2225
        %2227 = vmax.xlane.f32.xlu0 %v2161
        %v2228 = vpop.xlane.xlu0 %2227
        %2229 = vmax.xlane.f32.xlu0 %v2166
        %v2230 = vpop.xlane.xlu0 %2229
        %2231 = vmax.xlane.f32.xlu0 %v2171
        %v2232 = vpop.xlane.xlu0 %2231
        %2233 = vmax.xlane.f32.xlu0 %v2176
        %v2234 = vpop.xlane.xlu0 %2233
        %2235 = vmax.xlane.f32.xlu0 %v2181
        %v2236 = vpop.xlane.xlu0 %2235
        %2237 = vmax.xlane.f32.xlu0 %v2186
        %v2238 = vpop.xlane.xlu0 %2237
        %2239 = vmax.xlane.f32.xlu0 %v2191
        %v2240 = vpop.xlane.xlu0 %2239
        %2241 = vmax.xlane.f32.xlu0 %v2196
        %v2242 = vpop.xlane.xlu0 %2241
        %2243 = vmax.xlane.f32.xlu0 %v2201
        %v2244 = vpop.xlane.xlu0 %2243
        %2245 = vmax.xlane.f32.xlu0 %v2206
        %v2246 = vpop.xlane.xlu0 %2245
        %2247 = vmax.xlane.f32.xlu0 %v2211
        %v2248 = vpop.xlane.xlu0 %2247
        %2249 = vmax.xlane.f32.xlu0 %v2216
        %v2250 = vpop.xlane.xlu0 %2249
        %v2251 = vsub.f32 %v2141, %v2220
        %v2252 = vsub.f32 %v2146, %v2222
        %v2253 = vsub.f32 %v2151, %v2224
        %v2254 = vsub.f32 %v2156, %v2226
        %v2255 = vsub.f32 %v2161, %v2228
        %v2256 = vsub.f32 %v2166, %v2230
        %v2257 = vsub.f32 %v2171, %v2232
        %v2258 = vsub.f32 %v2176, %v2234
        %v2259 = vsub.f32 %v2181, %v2236
        %v2260 = vsub.f32 %v2186, %v2238
        %v2261 = vsub.f32 %v2191, %v2240
        %v2262 = vsub.f32 %v2196, %v2242
        %v2263 = vsub.f32 %v2201, %v2244
        %v2264 = vsub.f32 %v2206, %v2246
        %v2265 = vsub.f32 %v2211, %v2248
        %v2266 = vsub.f32 %v2216, %v2250
        %v2267 = vmul.f32 %v2251, 1.442695
        %v2268 = vpow.pop %v2267
        %v2269 = vmul.f32 %v2252, 1.442695
        %v2270 = vpow.pop %v2269
        %v2271 = vmul.f32 %v2253, 1.442695
        %v2272 = vpow.pop %v2271
        %v2273 = vmul.f32 %v2254, 1.442695
        %v2274 = vpow.pop %v2273
        %v2275 = vmul.f32 %v2255, 1.442695
        %v2276 = vpow.pop %v2275
        %v2277 = vmul.f32 %v2256, 1.442695
        %v2278 = vpow.pop %v2277
        %v2279 = vmul.f32 %v2257, 1.442695
        %v2280 = vpow.pop %v2279
        %v2281 = vmul.f32 %v2258, 1.442695
        %v2282 = vpow.pop %v2281
        %v2283 = vmul.f32 %v2259, 1.442695
        %v2284 = vpow.pop %v2283
        %v2285 = vmul.f32 %v2260, 1.442695
        %v2286 = vpow.pop %v2285
        %v2287 = vmul.f32 %v2261, 1.442695
        %v2288 = vpow.pop %v2287
        %v2289 = vmul.f32 %v2262, 1.442695
        %v2290 = vpow.pop %v2289
        %v2291 = vmul.f32 %v2263, 1.442695
        %v2292 = vpow.pop %v2291
        %v2293 = vmul.f32 %v2264, 1.442695
        %v2294 = vpow.pop %v2293
        %v2295 = vmul.f32 %v2265, 1.442695
        %v2296 = vpow.pop %v2295
        %v2297 = vmul.f32 %v2266, 1.442695
        %v2298 = vpow.pop %v2297
        %2299 = vadd.xlane.f32.xlu0 %v2268
        %v2300 = vpop.xlane.xlu0 %2299
        %2301 = vadd.xlane.f32.xlu0 %v2270
        %v2302 = vpop.xlane.xlu0 %2301
        %2303 = vadd.xlane.f32.xlu0 %v2272
        %v2304 = vpop.xlane.xlu0 %2303
        %2305 = vadd.xlane.f32.xlu0 %v2274
        %v2306 = vpop.xlane.xlu0 %2305
        %2307 = vadd.xlane.f32.xlu0 %v2276
        %v2308 = vpop.xlane.xlu0 %2307
        %2309 = vadd.xlane.f32.xlu0 %v2278
        %v2310 = vpop.xlane.xlu0 %2309
        %2311 = vadd.xlane.f32.xlu0 %v2280
        %v2312 = vpop.xlane.xlu0 %2311
        %2313 = vadd.xlane.f32.xlu0 %v2282
        %v2314 = vpop.xlane.xlu0 %2313
        %2315 = vadd.xlane.f32.xlu0 %v2284
        %v2316 = vpop.xlane.xlu0 %2315
        %2317 = vadd.xlane.f32.xlu0 %v2286
        %v2318 = vpop.xlane.xlu0 %2317
        %2319 = vadd.xlane.f32.xlu0 %v2288
        %v2320 = vpop.xlane.xlu0 %2319
        %2321 = vadd.xlane.f32.xlu0 %v2290
        %v2322 = vpop.xlane.xlu0 %2321
        %2323 = vadd.xlane.f32.xlu0 %v2292
        %v2324 = vpop.xlane.xlu0 %2323
        %2325 = vadd.xlane.f32.xlu0 %v2294
        %v2326 = vpop.xlane.xlu0 %2325
        %2327 = vadd.xlane.f32.xlu0 %v2296
        %v2328 = vpop.xlane.xlu0 %2327
        %2329 = vadd.xlane.f32.xlu0 %v2298
        %v2330 = vpop.xlane.xlu0 %2329
        %v2331 = vrcp.pop %v2300
        %v2332 = vrcp.pop %v2302
        %v2333 = vrcp.pop %v2304
        %v2334 = vrcp.pop %v2306
        %v2335 = vrcp.pop %v2308
        %v2336 = vrcp.pop %v2310
        %v2337 = vrcp.pop %v2312
        %v2338 = vrcp.pop %v2314
        %v2339 = vrcp.pop %v2316
        %v2340 = vrcp.pop %v2318
        %v2341 = vrcp.pop %v2320
        %v2342 = vrcp.pop %v2322
        %v2343 = vrcp.pop %v2324
        %v2344 = vrcp.pop %v2326
        %v2345 = vrcp.pop %v2328
        %v2346 = vrcp.pop %v2330
        %s2347 = scalar_lea.vmem [#allocation11], 128
        %v2348 = vld [vmem:[%s2347] sm:$0xff]
        %v2349 = vld [vmem:[%s2347 + $0x8] sm:$0xff]
        %v2350 = vld [vmem:[%s2347 + $0x10] sm:$0xff]
        %v2351 = vld [vmem:[%s2347 + $0x18] sm:$0xff]
        %v2352 = vld [vmem:[%s2347 + $0x20] sm:$0xff]
        %v2353 = vld [vmem:[%s2347 + $0x28] sm:$0xff]
        %v2354 = vld [vmem:[%s2347 + $0x30] sm:$0xff]
        %v2355 = vld [vmem:[%s2347 + $0x38] sm:$0xff]
        %v2356 = vld [vmem:[%s2347 + $0x40] sm:$0xff]
        %v2357 = vld [vmem:[%s2347 + $0x48] sm:$0xff]
        %v2358 = vld [vmem:[%s2347 + $0x50] sm:$0xff]
        %v2359 = vld [vmem:[%s2347 + $0x58] sm:$0xff]
        %v2360 = vld [vmem:[%s2347 + $0x60] sm:$0xff]
        %v2361 = vld [vmem:[%s2347 + $0x68] sm:$0xff]
        %v2362 = vld [vmem:[%s2347 + $0x70] sm:$0xff]
        %v2363 = vld [vmem:[%s2347 + $0x78] sm:$0xff]
        %v2364 = vmul.f32 %v2268, %v2348
        %v2365 = vmul.f32 %v2270, %v2349
        %v2366 = vmul.f32 %v2272, %v2350
        %v2367 = vmul.f32 %v2274, %v2351
        %v2368 = vmul.f32 %v2276, %v2352
        %v2369 = vmul.f32 %v2278, %v2353
        %v2370 = vmul.f32 %v2280, %v2354
        %v2371 = vmul.f32 %v2282, %v2355
        %v2372 = vmul.f32 %v2284, %v2356
        %v2373 = vmul.f32 %v2286, %v2357
        %v2374 = vmul.f32 %v2288, %v2358
        %v2375 = vmul.f32 %v2290, %v2359
        %v2376 = vmul.f32 %v2292, %v2360
        %v2377 = vmul.f32 %v2294, %v2361
        %v2378 = vmul.f32 %v2296, %v2362
        %v2379 = vmul.f32 %v2298, %v2363
        %2380 = vmatprep.subr.mxu0 0.0
        %2381 = vmatpush1.xpose.msra.mxu0 %v1974
        %2382 = vmatprep.subr.mxu0 0.0
        %2383 = vmatpush1.xpose.msra.mxu0 %v1975
        %2384 = vmatprep.subr.mxu0 0.0
        %2385 = vmatpush1.xpose.msra.mxu0 %v1976
        %2386 = vmatprep.subr.mxu0 0.0
        %2387 = vmatpush1.xpose.msra.mxu0 %v1977
        %2388 = vmatprep.subr.mxu0 0.0
        %2389 = vmatpush1.xpose.msra.mxu0 0.0
        %2390 = vmatprep.subr.mxu0 0.0
        %2391 = vmatpush1.xpose.msra.mxu0 0.0
        %2392 = vmatprep.subr.mxu0 0.0
        %2393 = vmatpush1.xpose.msra.mxu0 0.0
        %2394 = vmatprep.subr.mxu0 0.0
        %2395 = vmatpush1.xpose.msra.mxu0 0.0
        %2396 = vmatprep.subr.mxu0 0.0
        %2397 = vmatpush1.xpose.msra.mxu0 0.0
        %2398 = vmatprep.subr.mxu0 0.0
        %2399 = vmatpush1.xpose.msra.mxu0 0.0
        %2400 = vmatprep.subr.mxu0 0.0
        %2401 = vmatpush1.xpose.msra.mxu0 0.0
        %2402 = vmatprep.subr.mxu0 0.0
        %2403 = vmatpush1.xpose.msra.mxu0 0.0
        %2404 = vmatprep.subr.mxu0 0.0
        %2405 = vmatpush1.xpose.msra.mxu0 0.0
        %2406 = vmatprep.subr.mxu0 0.0
        %2407 = vmatpush1.xpose.msra.mxu0 0.0
        %2408 = vmatprep.subr.mxu0 0.0
        %2409 = vmatpush1.xpose.msra.mxu0 0.0
        %2410 = vmatprep.subr.mxu0 0.0
        %2411 = vmatpush1.xpose.msra.mxu0 0.0
        %2412 = vmatprep.subr.mxu0 0.0
        %2413 = vmatpush1.xpose.msra.mxu0 0.0
        %2414 = vmatprep.subr.mxu0 0.0
        %2415 = vmatpush1.xpose.msra.mxu0 0.0
        %2416 = vmatprep.subr.mxu0 0.0
        %2417 = vmatpush1.xpose.msra.mxu0 0.0
        %2418 = vmatprep.subr.mxu0 0.0
        %2419 = vmatpush1.xpose.msra.mxu0 0.0
        %2420 = vmatprep.subr.mxu0 0.0
        %2421 = vmatpush1.xpose.msra.mxu0 0.0
        %2422 = vmatprep.subr.mxu0 0.0
        %2423 = vmatpush1.xpose.msra.mxu0 0.0
        %2424 = vmatprep.subr.mxu0 0.0
        %2425 = vmatpush1.xpose.msra.mxu0 0.0
        %2426 = vmatprep.subr.mxu0 0.0
        %2427 = vmatpush1.xpose.msra.mxu0 0.0
        %2428 = vmatprep.subr.mxu0 0.0
        %2429 = vmatpush1.xpose.msra.mxu0 0.0
        %2430 = vmatprep.subr.mxu0 0.0
        %2431 = vmatpush1.xpose.msra.mxu0 0.0
        %2432 = vmatprep.subr.mxu0 0.0
        %2433 = vmatpush1.xpose.msra.mxu0 0.0
        %2434 = vmatprep.subr.mxu0 0.0
        %2435 = vmatpush1.xpose.msra.mxu0 0.0
        %2436 = vmatprep.subr.mxu0 0.0
        %2437 = vmatpush1.xpose.msra.mxu0 0.0
        %2438 = vmatprep.subr.mxu0 0.0
        %2439 = vmatpush1.xpose.msra.mxu0 0.0
        %2440 = vmatprep.subr.mxu0 0.0
        %2441 = vmatpush1.xpose.msra.mxu0 0.0
        %2442 = vmatprep.subr.mxu0 0.0
        %2443 = vmatpush1.xpose.msra.mxu0 0.0
        %2444 = vmatprep.mubr.f32.mxu0 0.0
        %2445 = vmatmul.mubr.f32.gmra.mrb[0].mxu0 %v2364
        %v2446 = vpop.f32.mrb[0].mxu0
        %v2447 = vadd.f32 0.0, %v2446
        %v2448 = vpop.f32.mrb[0].mxu0
        %2449 = vmatprep.mubr.f32.mxu0 0.0
        %2450 = vmatmul.mubr.f32.gmra.mrb[0].mxu0 %v2365
        %v2451 = vpop.f32.mrb[0].mxu0
        %v2452 = vadd.f32 0.0, %v2451
        %v2453 = vpop.f32.mrb[0].mxu0
        %2454 = vmatprep.mubr.f32.mxu0 0.0
        %2455 = vmatmul.mubr.f32.gmra.mrb[0].mxu0 %v2366
        %v2456 = vpop.f32.mrb[0].mxu0
        %v2457 = vadd.f32 0.0, %v2456
        %v2458 = vpop.f32.mrb[0].mxu0
        %2459 = vmatprep.mubr.f32.mxu0 0.0
        %2460 = vmatmul.mubr.f32.gmra.mrb[0].mxu0 %v2367
        %v2461 = vpop.f32.mrb[0].mxu0
        %v2462 = vadd.f32 0.0, %v2461
        %v2463 = vpop.f32.mrb[0].mxu0
        %2464 = vmatprep.mubr.f32.mxu0 0.0
        %2465 = vmatmul.mubr.f32.gmra.mrb[0].mxu0 %v2368
        %v2466 = vpop.f32.mrb[0].mxu0
        %v2467 = vadd.f32 0.0, %v2466
        %v2468 = vpop.f32.mrb[0].mxu0
        %2469 = vmatprep.mubr.f32.mxu0 0.0
        %2470 = vmatmul.mubr.f32.gmra.mrb[0].mxu0 %v2369
        %v2471 = vpop.f32.mrb[0].mxu0
        %v2472 = vadd.f32 0.0, %v2471
        %v2473 = vpop.f32.mrb[0].mxu0
        %2474 = vmatprep.mubr.f32.mxu0 0.0
        %2475 = vmatmul.mubr.f32.gmra.mrb[0].mxu0 %v2370
        %v2476 = vpop.f32.mrb[0].mxu0
        %v2477 = vadd.f32 0.0, %v2476
        %v2478 = vpop.f32.mrb[0].mxu0
        %2479 = vmatprep.mubr.f32.mxu0 0.0
        %2480 = vmatmul.mubr.f32.gmra.mrb[0].mxu0 %v2371
        %v2481 = vpop.f32.mrb[0].mxu0
        %v2482 = vadd.f32 0.0, %v2481
        %v2483 = vpop.f32.mrb[0].mxu0
        %2484 = vmatprep.mubr.f32.mxu0 0.0
        %2485 = vmatmul.mubr.f32.gmra.mrb[0].mxu0 %v2372
        %v2486 = vpop.f32.mrb[0].mxu0
        %v2487 = vadd.f32 0.0, %v2486
        %v2488 = vpop.f32.mrb[0].mxu0
        %2489 = vmatprep.mubr.f32.mxu0 0.0
        %2490 = vmatmul.mubr.f32.gmra.mrb[0].mxu0 %v2373
        %v2491 = vpop.f32.mrb[0].mxu0
        %v2492 = vadd.f32 0.0, %v2491
        %v2493 = vpop.f32.mrb[0].mxu0
        %2494 = vmatprep.mubr.f32.mxu0 0.0
        %2495 = vmatmul.mubr.f32.gmra.mrb[0].mxu0 %v2374
        %v2496 = vpop.f32.mrb[0].mxu0
        %v2497 = vadd.f32 0.0, %v2496
        %v2498 = vpop.f32.mrb[0].mxu0
        %2499 = vmatprep.mubr.f32.mxu0 0.0
        %2500 = vmatmul.mubr.f32.gmra.mrb[0].mxu0 %v2375
        %v2501 = vpop.f32.mrb[0].mxu0
        %v2502 = vadd.f32 0.0, %v2501
        %v2503 = vpop.f32.mrb[0].mxu0
        %2504 = vmatprep.mubr.f32.mxu0 0.0
        %2505 = vmatmul.mubr.f32.gmra.mrb[0].mxu0 %v2376
        %v2506 = vpop.f32.mrb[0].mxu0
        %v2507 = vadd.f32 0.0, %v2506
        %v2508 = vpop.f32.mrb[0].mxu0
        %2509 = vmatprep.mubr.f32.mxu0 0.0
        %2510 = vmatmul.mubr.f32.gmra.mrb[0].mxu0 %v2377
        %v2511 = vpop.f32.mrb[0].mxu0
        %v2512 = vadd.f32 0.0, %v2511
        %v2513 = vpop.f32.mrb[0].mxu0
        %2514 = vmatprep.mubr.f32.mxu0 0.0
        %2515 = vmatmul.mubr.f32.gmra.mrb[0].mxu0 %v2378
        %v2516 = vpop.f32.mrb[0].mxu0
        %v2517 = vadd.f32 0.0, %v2516
        %v2518 = vpop.f32.mrb[0].mxu0
        %2519 = vmatprep.mubr.f32.mxu0 0.0
        %2520 = vmatmul.mubr.f32.gmra.mrb[0].mxu0 %v2379
        %v2521 = vpop.f32.mrb[0].mxu0
        %v2522 = vadd.f32 0.0, %v2521
        %v2523 = vpop.f32.mrb[0].mxu0
        %2524 = vdwg.mxu0
        %v2525 = vmul.f32 %v2447, %v2331
        %v2526 = vmul.f32 %v2452, %v2332
        %v2527 = vmul.f32 %v2457, %v2333
        %v2528 = vmul.f32 %v2462, %v2334
        %v2529 = vmul.f32 %v2467, %v2335
        %v2530 = vmul.f32 %v2472, %v2336
        %v2531 = vmul.f32 %v2477, %v2337
        %v2532 = vmul.f32 %v2482, %v2338
        %v2533 = vmul.f32 %v2487, %v2339
        %v2534 = vmul.f32 %v2492, %v2340
        %v2535 = vmul.f32 %v2497, %v2341
        %v2536 = vmul.f32 %v2502, %v2342
        %v2537 = vmul.f32 %v2507, %v2343
        %v2538 = vmul.f32 %v2512, %v2344
        %v2539 = vmul.f32 %v2517, %v2345
        %v2540 = vmul.f32 %v2522, %v2346
        %s2541 = scalar_lea.vmem [#allocation10], 32
        %v2542 = vld [vmem:[%s2541] sm:$0xff]
        %v2543 = vld [vmem:[%s2541 + $0x8] sm:$0xff]
        %v2544 = vld [vmem:[%s2541 + $0x10] sm:$0xff]
        %v2545 = vld [vmem:[%s2541 + $0x18] sm:$0xff]
        %v2547 = vsel %vm1226, %v2525, 0
        %v2550 = vsel %vm1226, %v2526, 0
        %v2553 = vsel %vm1226, %v2527, 0
        %v2556 = vsel %vm1226, %v2528, 0
        %v2559 = vsel %vm1226, %v2529, 0
        %v2562 = vsel %vm1226, %v2530, 0
        %v2565 = vsel %vm1226, %v2531, 0
        %v2568 = vsel %vm1226, %v2532, 0
        %v2571 = vsel %vm1226, %v2533, 0
        %v2574 = vsel %vm1226, %v2534, 0
        %v2577 = vsel %vm1226, %v2535, 0
        %v2580 = vsel %vm1226, %v2536, 0
        %v2583 = vsel %vm1226, %v2537, 0
        %v2586 = vsel %vm1226, %v2538, 0
        %v2589 = vsel %vm1226, %v2539, 0
        %v2592 = vsel %vm1226, %v2540, 0
        %2594 = vmatprep.subr.mxu0 0.0
        %2595 = vmatpush1.msra.mxu0 %v2542
        %2596 = vmatprep.subr.mxu0 0.0
        %2597 = vmatpush1.msra.mxu0 %v2543
        %2598 = vmatprep.subr.mxu0 0.0
        %2599 = vmatpush1.msra.mxu0 %v2544
        %2600 = vmatprep.subr.mxu0 0.0
        %2601 = vmatpush1.msra.mxu0 %v2545
        %2602 = vmatprep.subr.mxu0 0.0
        %2603 = vmatpush1.msra.mxu0 0.0
        %2604 = vmatprep.subr.mxu0 0.0
        %2605 = vmatpush1.msra.mxu0 0.0
        %2606 = vmatprep.subr.mxu0 0.0
        %2607 = vmatpush1.msra.mxu0 0.0
        %2608 = vmatprep.subr.mxu0 0.0
        %2609 = vmatpush1.msra.mxu0 0.0
        %2610 = vmatprep.subr.mxu0 0.0
        %2611 = vmatpush1.msra.mxu0 0.0
        %2612 = vmatprep.subr.mxu0 0.0
        %2613 = vmatpush1.msra.mxu0 0.0
        %2614 = vmatprep.subr.mxu0 0.0
        %2615 = vmatpush1.msra.mxu0 0.0
        %2616 = vmatprep.subr.mxu0 0.0
        %2617 = vmatpush1.msra.mxu0 0.0
        %2618 = vmatprep.subr.mxu0 0.0
        %2619 = vmatpush1.msra.mxu0 0.0
        %2620 = vmatprep.subr.mxu0 0.0
        %2621 = vmatpush1.msra.mxu0 0.0
        %2622 = vmatprep.subr.mxu0 0.0
        %2623 = vmatpush1.msra.mxu0 0.0
        %2624 = vmatprep.subr.mxu0 0.0
        %2625 = vmatpush1.msra.mxu0 0.0
        %2626 = vmatprep.subr.mxu0 0.0
        %2627 = vmatpush1.msra.mxu0 0.0
        %2628 = vmatprep.subr.mxu0 0.0
        %2629 = vmatpush1.msra.mxu0 0.0
        %2630 = vmatprep.subr.mxu0 0.0
        %2631 = vmatpush1.msra.mxu0 0.0
        %2632 = vmatprep.subr.mxu0 0.0
        %2633 = vmatpush1.msra.mxu0 0.0
        %2634 = vmatprep.subr.mxu0 0.0
        %2635 = vmatpush1.msra.mxu0 0.0
        %2636 = vmatprep.subr.mxu0 0.0
        %2637 = vmatpush1.msra.mxu0 0.0
        %2638 = vmatprep.subr.mxu0 0.0
        %2639 = vmatpush1.msra.mxu0 0.0
        %2640 = vmatprep.subr.mxu0 0.0
        %2641 = vmatpush1.msra.mxu0 0.0
        %2642 = vmatprep.subr.mxu0 0.0
        %2643 = vmatpush1.msra.mxu0 0.0
        %2644 = vmatprep.subr.mxu0 0.0
        %2645 = vmatpush1.msra.mxu0 0.0
        %2646 = vmatprep.subr.mxu0 0.0
        %2647 = vmatpush1.msra.mxu0 0.0
        %2648 = vmatprep.subr.mxu0 0.0
        %2649 = vmatpush1.msra.mxu0 0.0
        %2650 = vmatprep.subr.mxu0 0.0
        %2651 = vmatpush1.msra.mxu0 0.0
        %2652 = vmatprep.subr.mxu0 0.0
        %2653 = vmatpush1.msra.mxu0 0.0
        %2654 = vmatprep.subr.mxu0 0.0
        %2655 = vmatpush1.msra.mxu0 0.0
        %2656 = vmatprep.subr.mxu0 0.0
        %2657 = vmatpush1.msra.mxu0 0.0
        %2658 = vmatprep.mubr.f32.mxu0 0.0
        %2659 = vmatmul.mubr.f32.gmra.mrb[0].mxu0 %v2547
        %v2660 = vpop.f32.mrb[0].mxu0
        %v2661 = vadd.f32 0.0, %v2660
        %v2662 = vpop.f32.mrb[0].mxu0
        %2663 = vmatprep.mubr.f32.mxu0 0.0
        %2664 = vmatmul.mubr.f32.gmra.mrb[0].mxu0 %v2550
        %v2665 = vpop.f32.mrb[0].mxu0
        %v2666 = vadd.f32 0.0, %v2665
        %v2667 = vpop.f32.mrb[0].mxu0
        %2668 = vmatprep.mubr.f32.mxu0 0.0
        %2669 = vmatmul.mubr.f32.gmra.mrb[0].mxu0 %v2553
        %v2670 = vpop.f32.mrb[0].mxu0
        %v2671 = vadd.f32 0.0, %v2670
        %v2672 = vpop.f32.mrb[0].mxu0
        %2673 = vmatprep.mubr.f32.mxu0 0.0
        %2674 = vmatmul.mubr.f32.gmra.mrb[0].mxu0 %v2556
        %v2675 = vpop.f32.mrb[0].mxu0
        %v2676 = vadd.f32 0.0, %v2675
        %v2677 = vpop.f32.mrb[0].mxu0
        %2678 = vmatprep.mubr.f32.mxu0 0.0
        %2679 = vmatmul.mubr.f32.gmra.mrb[0].mxu0 %v2559
        %v2680 = vpop.f32.mrb[0].mxu0
        %v2681 = vadd.f32 0.0, %v2680
        %v2682 = vpop.f32.mrb[0].mxu0
        %2683 = vmatprep.mubr.f32.mxu0 0.0
        %2684 = vmatmul.mubr.f32.gmra.mrb[0].mxu0 %v2562
        %v2685 = vpop.f32.mrb[0].mxu0
        %v2686 = vadd.f32 0.0, %v2685
        %v2687 = vpop.f32.mrb[0].mxu0
        %2688 = vmatprep.mubr.f32.mxu0 0.0
        %2689 = vmatmul.mubr.f32.gmra.mrb[0].mxu0 %v2565
        %v2690 = vpop.f32.mrb[0].mxu0
        %v2691 = vadd.f32 0.0, %v2690
        %v2692 = vpop.f32.mrb[0].mxu0
        %2693 = vmatprep.mubr.f32.mxu0 0.0
        %2694 = vmatmul.mubr.f32.gmra.mrb[0].mxu0 %v2568
        %v2695 = vpop.f32.mrb[0].mxu0
        %v2696 = vadd.f32 0.0, %v2695
        %v2697 = vpop.f32.mrb[0].mxu0
        %2698 = vmatprep.mubr.f32.mxu0 0.0
        %2699 = vmatmul.mubr.f32.gmra.mrb[0].mxu0 %v2571
        %v2700 = vpop.f32.mrb[0].mxu0
        %v2701 = vadd.f32 0.0, %v2700
        %v2702 = vpop.f32.mrb[0].mxu0
        %2703 = vmatprep.mubr.f32.mxu0 0.0
        %2704 = vmatmul.mubr.f32.gmra.mrb[0].mxu0 %v2574
        %v2705 = vpop.f32.mrb[0].mxu0
        %v2706 = vadd.f32 0.0, %v2705
        %v2707 = vpop.f32.mrb[0].mxu0
        %2708 = vmatprep.mubr.f32.mxu0 0.0
        %2709 = vmatmul.mubr.f32.gmra.mrb[0].mxu0 %v2577
        %v2710 = vpop.f32.mrb[0].mxu0
        %v2711 = vadd.f32 0.0, %v2710
        %v2712 = vpop.f32.mrb[0].mxu0
        %2713 = vmatprep.mubr.f32.mxu0 0.0
        %2714 = vmatmul.mubr.f32.gmra.mrb[0].mxu0 %v2580
        %v2715 = vpop.f32.mrb[0].mxu0
        %v2716 = vadd.f32 0.0, %v2715
        %v2717 = vpop.f32.mrb[0].mxu0
        %2718 = vmatprep.mubr.f32.mxu0 0.0
        %2719 = vmatmul.mubr.f32.gmra.mrb[0].mxu0 %v2583
        %v2720 = vpop.f32.mrb[0].mxu0
        %v2721 = vadd.f32 0.0, %v2720
        %v2722 = vpop.f32.mrb[0].mxu0
        %2723 = vmatprep.mubr.f32.mxu0 0.0
        %2724 = vmatmul.mubr.f32.gmra.mrb[0].mxu0 %v2586
        %v2725 = vpop.f32.mrb[0].mxu0
        %v2726 = vadd.f32 0.0, %v2725
        %v2727 = vpop.f32.mrb[0].mxu0
        %2728 = vmatprep.mubr.f32.mxu0 0.0
        %2729 = vmatmul.mubr.f32.gmra.mrb[0].mxu0 %v2589
        %v2730 = vpop.f32.mrb[0].mxu0
        %v2731 = vadd.f32 0.0, %v2730
        %v2732 = vpop.f32.mrb[0].mxu0
        %2733 = vmatprep.mubr.f32.mxu0 0.0
        %2734 = vmatmul.mubr.f32.gmra.mrb[0].mxu0 %v2592
        %v2735 = vpop.f32.mrb[0].mxu0
        %v2736 = vadd.f32 0.0, %v2735
        %v2737 = vpop.f32.mrb[0].mxu0
        %2738 = vdwg.mxu0
        %v2739 = vld [vmem:[#allocation4] sm:$0xff]
        %v2740 = vld [vmem:[#allocation4 + $0x8] sm:$0xff]
        %v2741 = vld [vmem:[#allocation4 + $0x10] sm:$0xff]
        %v2742 = vld [vmem:[#allocation4 + $0x18] sm:$0xff]
        %v2743 = vld [vmem:[#allocation4 + $0x20] sm:$0xff]
        %v2744 = vld [vmem:[#allocation4 + $0x28] sm:$0xff]
        %v2745 = vld [vmem:[#allocation4 + $0x30] sm:$0xff]
        %v2746 = vld [vmem:[#allocation4 + $0x38] sm:$0xff]
        %v2747 = vld [vmem:[#allocation4 + $0x40] sm:$0xff]
        %v2748 = vld [vmem:[#allocation4 + $0x48] sm:$0xff]
        %v2749 = vld [vmem:[#allocation4 + $0x50] sm:$0xff]
        %v2750 = vld [vmem:[#allocation4 + $0x58] sm:$0xff]
        %v2751 = vld [vmem:[#allocation4 + $0x60] sm:$0xff]
        %v2752 = vld [vmem:[#allocation4 + $0x68] sm:$0xff]
        %v2753 = vld [vmem:[#allocation4 + $0x70] sm:$0xff]
        %v2754 = vld [vmem:[#allocation4 + $0x78] sm:$0xff]
        %v2755 = vadd.f32 %v2739, %v2661
        %v2756 = vadd.f32 %v2740, %v2666
        %v2757 = vadd.f32 %v2741, %v2671
        %v2758 = vadd.f32 %v2742, %v2676
        %v2759 = vadd.f32 %v2743, %v2681
        %v2760 = vadd.f32 %v2744, %v2686
        %v2761 = vadd.f32 %v2745, %v2691
        %v2762 = vadd.f32 %v2746, %v2696
        %v2763 = vadd.f32 %v2747, %v2701
        %v2764 = vadd.f32 %v2748, %v2706
        %v2765 = vadd.f32 %v2749, %v2711
        %v2766 = vadd.f32 %v2750, %v2716
        %v2767 = vadd.f32 %v2751, %v2721
        %v2768 = vadd.f32 %v2752, %v2726
        %v2769 = vadd.f32 %v2753, %v2731
        %v2770 = vadd.f32 %v2754, %v2736
        %2771 = vst [vmem:[#allocation4] sm:$0xff] %v2755
        %2772 = vst [vmem:[#allocation4 + $0x8] sm:$0xff] %v2756
        %2773 = vst [vmem:[#allocation4 + $0x10] sm:$0xff] %v2757
        %2774 = vst [vmem:[#allocation4 + $0x18] sm:$0xff] %v2758
        %2775 = vst [vmem:[#allocation4 + $0x20] sm:$0xff] %v2759
        %2776 = vst [vmem:[#allocation4 + $0x28] sm:$0xff] %v2760
        %2777 = vst [vmem:[#allocation4 + $0x30] sm:$0xff] %v2761
        %2778 = vst [vmem:[#allocation4 + $0x38] sm:$0xff] %v2762
        %2779 = vst [vmem:[#allocation4 + $0x40] sm:$0xff] %v2763
        %2780 = vst [vmem:[#allocation4 + $0x48] sm:$0xff] %v2764
        %2781 = vst [vmem:[#allocation4 + $0x50] sm:$0xff] %v2765
        %2782 = vst [vmem:[#allocation4 + $0x58] sm:$0xff] %v2766
        %2783 = vst [vmem:[#allocation4 + $0x60] sm:$0xff] %v2767
        %2784 = vst [vmem:[#allocation4 + $0x68] sm:$0xff] %v2768
        %2785 = vst [vmem:[#allocation4 + $0x70] sm:$0xff] %v2769
        %2786 = vst [vmem:[#allocation4 + $0x78] sm:$0xff] %v2770
        %v2787 = vld [vmem:[#allocation2] sm:$0xff]
        %v2788 = vld [vmem:[#allocation2 + $0x8] sm:$0xff]
        %v2789 = vld [vmem:[#allocation2 + $0x10] sm:$0xff]
        %v2790 = vld [vmem:[#allocation2 + $0x18] sm:$0xff]
        %v2791 = vld [vmem:[#allocation2 + $0x20] sm:$0xff]
        %v2792 = vld [vmem:[#allocation2 + $0x28] sm:$0xff]
        %v2793 = vld [vmem:[#allocation2 + $0x30] sm:$0xff]
        %v2794 = vld [vmem:[#allocation2 + $0x38] sm:$0xff]
        %v2795 = vld [vmem:[#allocation2 + $0x40] sm:$0xff]
        %v2796 = vld [vmem:[#allocation2 + $0x48] sm:$0xff]
        %v2797 = vld [vmem:[#allocation2 + $0x50] sm:$0xff]
        %v2798 = vld [vmem:[#allocation2 + $0x58] sm:$0xff]
        %v2799 = vld [vmem:[#allocation2 + $0x60] sm:$0xff]
        %v2800 = vld [vmem:[#allocation2 + $0x68] sm:$0xff]
        %v2801 = vld [vmem:[#allocation2 + $0x70] sm:$0xff]
        %v2802 = vld [vmem:[#allocation2 + $0x78] sm:$0xff]
        %v2803 = vld [vmem:[#allocation3 + $0x40] sm:$0xff]
        %v2804 = vld [vmem:[#allocation3 + $0x48] sm:$0xff]
        %v2805 = vld [vmem:[#allocation3 + $0x50] sm:$0xff]
        %v2806 = vld [vmem:[#allocation3 + $0x58] sm:$0xff]
        %v2807 = vld [vmem:[#allocation3 + $0xc0] sm:$0xff]
        %v2808 = vld [vmem:[#allocation3 + $0xc8] sm:$0xff]
        %v2809 = vld [vmem:[#allocation3 + $0xd0] sm:$0xff]
        %v2810 = vld [vmem:[#allocation3 + $0xd8] sm:$0xff]
        %v2811 = vld [vmem:[#allocation13] sm:$0xff]
        %v2812 = vld [vmem:[#allocation13 + $0x8] sm:$0xff]
        %v2813 = vld [vmem:[#allocation13 + $0x10] sm:$0xff]
        %v2814 = vld [vmem:[#allocation13 + $0x18] sm:$0xff]
        %v2815 = vld [vmem:[#allocation13 + $0x20] sm:$0xff]
        %v2816 = vld [vmem:[#allocation13 + $0x28] sm:$0xff]
        %v2817 = vld [vmem:[#allocation13 + $0x30] sm:$0xff]
        %v2818 = vld [vmem:[#allocation13 + $0x38] sm:$0xff]
        %v2819 = vld [vmem:[#allocation13 + $0x40] sm:$0xff]
        %v2820 = vld [vmem:[#allocation13 + $0x48] sm:$0xff]
        %v2821 = vld [vmem:[#allocation13 + $0x50] sm:$0xff]
        %v2822 = vld [vmem:[#allocation13 + $0x58] sm:$0xff]
        %v2823 = vld [vmem:[#allocation13 + $0x60] sm:$0xff]
        %v2824 = vld [vmem:[#allocation13 + $0x68] sm:$0xff]
        %v2825 = vld [vmem:[#allocation13 + $0x70] sm:$0xff]
        %v2826 = vld [vmem:[#allocation13 + $0x78] sm:$0xff]
        %2843 = vrot.lane.b32.xlu0 %v2787, 64
        %v2844 = vpop.permute.xlu0 %2843
        %2845 = vrot.lane.b32.xlu0 %v2788, 64
        %v2846 = vpop.permute.xlu0 %2845
        %2847 = vrot.lane.b32.xlu0 %v2789, 64
        %v2848 = vpop.permute.xlu0 %2847
        %2849 = vrot.lane.b32.xlu0 %v2790, 64
        %v2850 = vpop.permute.xlu0 %2849
        %2851 = vrot.lane.b32.xlu0 %v2791, 64
        %v2852 = vpop.permute.xlu0 %2851
        %2853 = vrot.lane.b32.xlu0 %v2792, 64
        %v2854 = vpop.permute.xlu0 %2853
        %2855 = vrot.lane.b32.xlu0 %v2793, 64
        %v2856 = vpop.permute.xlu0 %2855
        %2857 = vrot.lane.b32.xlu0 %v2794, 64
        %v2858 = vpop.permute.xlu0 %2857
        %2859 = vrot.lane.b32.xlu0 %v2795, 64
        %v2860 = vpop.permute.xlu0 %2859
        %2861 = vrot.lane.b32.xlu0 %v2796, 64
        %v2862 = vpop.permute.xlu0 %2861
        %2863 = vrot.lane.b32.xlu0 %v2797, 64
        %v2864 = vpop.permute.xlu0 %2863
        %2865 = vrot.lane.b32.xlu0 %v2798, 64
        %v2866 = vpop.permute.xlu0 %2865
        %2867 = vrot.lane.b32.xlu0 %v2799, 64
        %v2868 = vpop.permute.xlu0 %2867
        %2869 = vrot.lane.b32.xlu0 %v2800, 64
        %v2870 = vpop.permute.xlu0 %2869
        %2871 = vrot.lane.b32.xlu0 %v2801, 64
        %v2872 = vpop.permute.xlu0 %2871
        %2873 = vrot.lane.b32.xlu0 %v2802, 64
        %v2874 = vpop.permute.xlu0 %2873
        %v2875 = vsel %vm1226, %v2844, 0
        %v2877 = vsel %vm1226, %v2846, 0
        %v2879 = vsel %vm1226, %v2848, 0
        %v2881 = vsel %vm1226, %v2850, 0
        %v2883 = vsel %vm1226, %v2852, 0
        %v2885 = vsel %vm1226, %v2854, 0
        %v2887 = vsel %vm1226, %v2856, 0
        %v2889 = vsel %vm1226, %v2858, 0
        %v2891 = vsel %vm1226, %v2860, 0
        %v2893 = vsel %vm1226, %v2862, 0
        %v2895 = vsel %vm1226, %v2864, 0
        %v2897 = vsel %vm1226, %v2866, 0
        %v2899 = vsel %vm1226, %v2868, 0
        %v2901 = vsel %vm1226, %v2870, 0
        %v2903 = vsel %vm1226, %v2872, 0
        %v2905 = vsel %vm1226, %v2874, 0
        %2907 = vmatprep.subr.mxu0 0.0
        %2908 = vmatpush1.msra.mxu0 %v2803
        %2909 = vmatprep.subr.mxu0 0.0
        %2910 = vmatpush1.msra.mxu0 %v2804
        %2911 = vmatprep.subr.mxu0 0.0
        %2912 = vmatpush1.msra.mxu0 %v2805
        %2913 = vmatprep.subr.mxu0 0.0
        %2914 = vmatpush1.msra.mxu0 %v2806
        %2915 = vmatprep.subr.mxu0 0.0
        %2916 = vmatpush1.msra.mxu0 0.0
        %2917 = vmatprep.subr.mxu0 0.0
        %2918 = vmatpush1.msra.mxu0 0.0
        %2919 = vmatprep.subr.mxu0 0.0
        %2920 = vmatpush1.msra.mxu0 0.0
        %2921 = vmatprep.subr.mxu0 0.0
        %2922 = vmatpush1.msra.mxu0 0.0
        %2923 = vmatprep.subr.mxu0 0.0
        %2924 = vmatpush1.msra.mxu0 0.0
        %2925 = vmatprep.subr.mxu0 0.0
        %2926 = vmatpush1.msra.mxu0 0.0
        %2927 = vmatprep.subr.mxu0 0.0
        %2928 = vmatpush1.msra.mxu0 0.0
        %2929 = vmatprep.subr.mxu0 0.0
        %2930 = vmatpush1.msra.mxu0 0.0
        %2931 = vmatprep.subr.mxu0 0.0
        %2932 = vmatpush1.msra.mxu0 0.0
        %2933 = vmatprep.subr.mxu0 0.0
        %2934 = vmatpush1.msra.mxu0 0.0
        %2935 = vmatprep.subr.mxu0 0.0
        %2936 = vmatpush1.msra.mxu0 0.0
        %2937 = vmatprep.subr.mxu0 0.0
        %2938 = vmatpush1.msra.mxu0 0.0
        %2939 = vmatprep.subr.mxu0 0.0
        %2940 = vmatpush1.msra.mxu0 0.0
        %2941 = vmatprep.subr.mxu0 0.0
        %2942 = vmatpush1.msra.mxu0 0.0
        %2943 = vmatprep.subr.mxu0 0.0
        %2944 = vmatpush1.msra.mxu0 0.0
        %2945 = vmatprep.subr.mxu0 0.0
        %2946 = vmatpush1.msra.mxu0 0.0
        %2947 = vmatprep.subr.mxu0 0.0
        %2948 = vmatpush1.msra.mxu0 0.0
        %2949 = vmatprep.subr.mxu0 0.0
        %2950 = vmatpush1.msra.mxu0 0.0
        %2951 = vmatprep.subr.mxu0 0.0
        %2952 = vmatpush1.msra.mxu0 0.0
        %2953 = vmatprep.subr.mxu0 0.0
        %2954 = vmatpush1.msra.mxu0 0.0
        %2955 = vmatprep.subr.mxu0 0.0
        %2956 = vmatpush1.msra.mxu0 0.0
        %2957 = vmatprep.subr.mxu0 0.0
        %2958 = vmatpush1.msra.mxu0 0.0
        %2959 = vmatprep.subr.mxu0 0.0
        %2960 = vmatpush1.msra.mxu0 0.0
        %2961 = vmatprep.subr.mxu0 0.0
        %2962 = vmatpush1.msra.mxu0 0.0
        %2963 = vmatprep.subr.mxu0 0.0
        %2964 = vmatpush1.msra.mxu0 0.0
        %2965 = vmatprep.subr.mxu0 0.0
        %2966 = vmatpush1.msra.mxu0 0.0
        %2967 = vmatprep.subr.mxu0 0.0
        %2968 = vmatpush1.msra.mxu0 0.0
        %2969 = vmatprep.subr.mxu0 0.0
        %2970 = vmatpush1.msra.mxu0 0.0
        %2971 = vmatprep.mubr.f32.mxu0 0.0
        %2972 = vmatmul.mubr.f32.gmra.mrb[0].mxu0 %v2875
        %v2973 = vpop.f32.mrb[0].mxu0
        %v2974 = vadd.f32 %v2811, %v2973
        %v2975 = vpop.f32.mrb[0].mxu0
        %2976 = vmatprep.mubr.f32.mxu0 0.0
        %2977 = vmatmul.mubr.f32.gmra.mrb[0].mxu0 %v2877
        %v2978 = vpop.f32.mrb[0].mxu0
        %v2979 = vadd.f32 %v2812, %v2978
        %v2980 = vpop.f32.mrb[0].mxu0
        %2981 = vmatprep.mubr.f32.mxu0 0.0
        %2982 = vmatmul.mubr.f32.gmra.mrb[0].mxu0 %v2879
        %v2983 = vpop.f32.mrb[0].mxu0
        %v2984 = vadd.f32 %v2813, %v2983
        %v2985 = vpop.f32.mrb[0].mxu0
        %2986 = vmatprep.mubr.f32.mxu0 0.0
        %2987 = vmatmul.mubr.f32.gmra.mrb[0].mxu0 %v2881
        %v2988 = vpop.f32.mrb[0].mxu0
        %v2989 = vadd.f32 %v2814, %v2988
        %v2990 = vpop.f32.mrb[0].mxu0
        %2991 = vmatprep.mubr.f32.mxu0 0.0
        %2992 = vmatmul.mubr.f32.gmra.mrb[0].mxu0 %v2883
        %v2993 = vpop.f32.mrb[0].mxu0
        %v2994 = vadd.f32 %v2815, %v2993
        %v2995 = vpop.f32.mrb[0].mxu0
        %2996 = vmatprep.mubr.f32.mxu0 0.0
        %2997 = vmatmul.mubr.f32.gmra.mrb[0].mxu0 %v2885
        %v2998 = vpop.f32.mrb[0].mxu0
        %v2999 = vadd.f32 %v2816, %v2998
        %v3000 = vpop.f32.mrb[0].mxu0
        %3001 = vmatprep.mubr.f32.mxu0 0.0
        %3002 = vmatmul.mubr.f32.gmra.mrb[0].mxu0 %v2887
        %v3003 = vpop.f32.mrb[0].mxu0
        %v3004 = vadd.f32 %v2817, %v3003
        %v3005 = vpop.f32.mrb[0].mxu0
        %3006 = vmatprep.mubr.f32.mxu0 0.0
        %3007 = vmatmul.mubr.f32.gmra.mrb[0].mxu0 %v2889
        %v3008 = vpop.f32.mrb[0].mxu0
        %v3009 = vadd.f32 %v2818, %v3008
        %v3010 = vpop.f32.mrb[0].mxu0
        %3011 = vmatprep.mubr.f32.mxu0 0.0
        %3012 = vmatmul.mubr.f32.gmra.mrb[0].mxu0 %v2891
        %v3013 = vpop.f32.mrb[0].mxu0
        %v3014 = vadd.f32 %v2819, %v3013
        %v3015 = vpop.f32.mrb[0].mxu0
        %3016 = vmatprep.mubr.f32.mxu0 0.0
        %3017 = vmatmul.mubr.f32.gmra.mrb[0].mxu0 %v2893
        %v3018 = vpop.f32.mrb[0].mxu0
        %v3019 = vadd.f32 %v2820, %v3018
        %v3020 = vpop.f32.mrb[0].mxu0
        %3021 = vmatprep.mubr.f32.mxu0 0.0
        %3022 = vmatmul.mubr.f32.gmra.mrb[0].mxu0 %v2895
        %v3023 = vpop.f32.mrb[0].mxu0
        %v3024 = vadd.f32 %v2821, %v3023
        %v3025 = vpop.f32.mrb[0].mxu0
        %3026 = vmatprep.mubr.f32.mxu0 0.0
        %3027 = vmatmul.mubr.f32.gmra.mrb[0].mxu0 %v2897
        %v3028 = vpop.f32.mrb[0].mxu0
        %v3029 = vadd.f32 %v2822, %v3028
        %v3030 = vpop.f32.mrb[0].mxu0
        %3031 = vmatprep.mubr.f32.mxu0 0.0
        %3032 = vmatmul.mubr.f32.gmra.mrb[0].mxu0 %v2899
        %v3033 = vpop.f32.mrb[0].mxu0
        %v3034 = vadd.f32 %v2823, %v3033
        %v3035 = vpop.f32.mrb[0].mxu0
        %3036 = vmatprep.mubr.f32.mxu0 0.0
        %3037 = vmatmul.mubr.f32.gmra.mrb[0].mxu0 %v2901
        %v3038 = vpop.f32.mrb[0].mxu0
        %v3039 = vadd.f32 %v2824, %v3038
        %v3040 = vpop.f32.mrb[0].mxu0
        %3041 = vmatprep.mubr.f32.mxu0 0.0
        %3042 = vmatmul.mubr.f32.gmra.mrb[0].mxu0 %v2903
        %v3043 = vpop.f32.mrb[0].mxu0
        %v3044 = vadd.f32 %v2825, %v3043
        %v3045 = vpop.f32.mrb[0].mxu0
        %3046 = vmatprep.mubr.f32.mxu0 0.0
        %3047 = vmatmul.mubr.f32.gmra.mrb[0].mxu0 %v2905
        %v3048 = vpop.f32.mrb[0].mxu0
        %v3049 = vadd.f32 %v2826, %v3048
        %v3050 = vpop.f32.mrb[0].mxu0
        %3051 = vdwg.mxu0
        %3052 = vmax.xlane.f32.xlu0 %v2974
        %v3053 = vpop.xlane.xlu0 %3052
        %3054 = vmax.xlane.f32.xlu0 %v2979
        %v3055 = vpop.xlane.xlu0 %3054
        %3056 = vmax.xlane.f32.xlu0 %v2984
        %v3057 = vpop.xlane.xlu0 %3056
        %3058 = vmax.xlane.f32.xlu0 %v2989
        %v3059 = vpop.xlane.xlu0 %3058
        %3060 = vmax.xlane.f32.xlu0 %v2994
        %v3061 = vpop.xlane.xlu0 %3060
        %3062 = vmax.xlane.f32.xlu0 %v2999
        %v3063 = vpop.xlane.xlu0 %3062
        %3064 = vmax.xlane.f32.xlu0 %v3004
        %v3065 = vpop.xlane.xlu0 %3064
        %3066 = vmax.xlane.f32.xlu0 %v3009
        %v3067 = vpop.xlane.xlu0 %3066
        %3068 = vmax.xlane.f32.xlu0 %v3014
        %v3069 = vpop.xlane.xlu0 %3068
        %3070 = vmax.xlane.f32.xlu0 %v3019
        %v3071 = vpop.xlane.xlu0 %3070
        %3072 = vmax.xlane.f32.xlu0 %v3024
        %v3073 = vpop.xlane.xlu0 %3072
        %3074 = vmax.xlane.f32.xlu0 %v3029
        %v3075 = vpop.xlane.xlu0 %3074
        %3076 = vmax.xlane.f32.xlu0 %v3034
        %v3077 = vpop.xlane.xlu0 %3076
        %3078 = vmax.xlane.f32.xlu0 %v3039
        %v3079 = vpop.xlane.xlu0 %3078
        %3080 = vmax.xlane.f32.xlu0 %v3044
        %v3081 = vpop.xlane.xlu0 %3080
        %3082 = vmax.xlane.f32.xlu0 %v3049
        %v3083 = vpop.xlane.xlu0 %3082
        %v3084 = vsub.f32 %v2974, %v3053
        %v3085 = vsub.f32 %v2979, %v3055
        %v3086 = vsub.f32 %v2984, %v3057
        %v3087 = vsub.f32 %v2989, %v3059
        %v3088 = vsub.f32 %v2994, %v3061
        %v3089 = vsub.f32 %v2999, %v3063
        %v3090 = vsub.f32 %v3004, %v3065
        %v3091 = vsub.f32 %v3009, %v3067
        %v3092 = vsub.f32 %v3014, %v3069
        %v3093 = vsub.f32 %v3019, %v3071
        %v3094 = vsub.f32 %v3024, %v3073
        %v3095 = vsub.f32 %v3029, %v3075
        %v3096 = vsub.f32 %v3034, %v3077
        %v3097 = vsub.f32 %v3039, %v3079
        %v3098 = vsub.f32 %v3044, %v3081
        %v3099 = vsub.f32 %v3049, %v3083
        %v3100 = vmul.f32 %v3084, 1.442695
        %v3101 = vpow.pop %v3100
        %v3102 = vmul.f32 %v3085, 1.442695
        %v3103 = vpow.pop %v3102
        %v3104 = vmul.f32 %v3086, 1.442695
        %v3105 = vpow.pop %v3104
        %v3106 = vmul.f32 %v3087, 1.442695
        %v3107 = vpow.pop %v3106
        %v3108 = vmul.f32 %v3088, 1.442695
        %v3109 = vpow.pop %v3108
        %v3110 = vmul.f32 %v3089, 1.442695
        %v3111 = vpow.pop %v3110
        %v3112 = vmul.f32 %v3090, 1.442695
        %v3113 = vpow.pop %v3112
        %v3114 = vmul.f32 %v3091, 1.442695
        %v3115 = vpow.pop %v3114
        %v3116 = vmul.f32 %v3092, 1.442695
        %v3117 = vpow.pop %v3116
        %v3118 = vmul.f32 %v3093, 1.442695
        %v3119 = vpow.pop %v3118
        %v3120 = vmul.f32 %v3094, 1.442695
        %v3121 = vpow.pop %v3120
        %v3122 = vmul.f32 %v3095, 1.442695
        %v3123 = vpow.pop %v3122
        %v3124 = vmul.f32 %v3096, 1.442695
        %v3125 = vpow.pop %v3124
        %v3126 = vmul.f32 %v3097, 1.442695
        %v3127 = vpow.pop %v3126
        %v3128 = vmul.f32 %v3098, 1.442695
        %v3129 = vpow.pop %v3128
        %v3130 = vmul.f32 %v3099, 1.442695
        %v3131 = vpow.pop %v3130
        %3132 = vadd.xlane.f32.xlu0 %v3101
        %v3133 = vpop.xlane.xlu0 %3132
        %3134 = vadd.xlane.f32.xlu0 %v3103
        %v3135 = vpop.xlane.xlu0 %3134
        %3136 = vadd.xlane.f32.xlu0 %v3105
        %v3137 = vpop.xlane.xlu0 %3136
        %3138 = vadd.xlane.f32.xlu0 %v3107
        %v3139 = vpop.xlane.xlu0 %3138
        %3140 = vadd.xlane.f32.xlu0 %v3109
        %v3141 = vpop.xlane.xlu0 %3140
        %3142 = vadd.xlane.f32.xlu0 %v3111
        %v3143 = vpop.xlane.xlu0 %3142
        %3144 = vadd.xlane.f32.xlu0 %v3113
        %v3145 = vpop.xlane.xlu0 %3144
        %3146 = vadd.xlane.f32.xlu0 %v3115
        %v3147 = vpop.xlane.xlu0 %3146
        %3148 = vadd.xlane.f32.xlu0 %v3117
        %v3149 = vpop.xlane.xlu0 %3148
        %3150 = vadd.xlane.f32.xlu0 %v3119
        %v3151 = vpop.xlane.xlu0 %3150
        %3152 = vadd.xlane.f32.xlu0 %v3121
        %v3153 = vpop.xlane.xlu0 %3152
        %3154 = vadd.xlane.f32.xlu0 %v3123
        %v3155 = vpop.xlane.xlu0 %3154
        %3156 = vadd.xlane.f32.xlu0 %v3125
        %v3157 = vpop.xlane.xlu0 %3156
        %3158 = vadd.xlane.f32.xlu0 %v3127
        %v3159 = vpop.xlane.xlu0 %3158
        %3160 = vadd.xlane.f32.xlu0 %v3129
        %v3161 = vpop.xlane.xlu0 %3160
        %3162 = vadd.xlane.f32.xlu0 %v3131
        %v3163 = vpop.xlane.xlu0 %3162
        %v3164 = vrcp.pop %v3133
        %v3165 = vrcp.pop %v3135
        %v3166 = vrcp.pop %v3137
        %v3167 = vrcp.pop %v3139
        %v3168 = vrcp.pop %v3141
        %v3169 = vrcp.pop %v3143
        %v3170 = vrcp.pop %v3145
        %v3171 = vrcp.pop %v3147
        %v3172 = vrcp.pop %v3149
        %v3173 = vrcp.pop %v3151
        %v3174 = vrcp.pop %v3153
        %v3175 = vrcp.pop %v3155
        %v3176 = vrcp.pop %v3157
        %v3177 = vrcp.pop %v3159
        %v3178 = vrcp.pop %v3161
        %v3179 = vrcp.pop %v3163
        %s3180 = scalar_lea.vmem [#allocation11], 256
        %v3181 = vld [vmem:[%s3180] sm:$0xff]
        %v3182 = vld [vmem:[%s3180 + $0x8] sm:$0xff]
        %v3183 = vld [vmem:[%s3180 + $0x10] sm:$0xff]
        %v3184 = vld [vmem:[%s3180 + $0x18] sm:$0xff]
        %v3185 = vld [vmem:[%s3180 + $0x20] sm:$0xff]
        %v3186 = vld [vmem:[%s3180 + $0x28] sm:$0xff]
        %v3187 = vld [vmem:[%s3180 + $0x30] sm:$0xff]
        %v3188 = vld [vmem:[%s3180 + $0x38] sm:$0xff]
        %v3189 = vld [vmem:[%s3180 + $0x40] sm:$0xff]
        %v3190 = vld [vmem:[%s3180 + $0x48] sm:$0xff]
        %v3191 = vld [vmem:[%s3180 + $0x50] sm:$0xff]
        %v3192 = vld [vmem:[%s3180 + $0x58] sm:$0xff]
        %v3193 = vld [vmem:[%s3180 + $0x60] sm:$0xff]
        %v3194 = vld [vmem:[%s3180 + $0x68] sm:$0xff]
        %v3195 = vld [vmem:[%s3180 + $0x70] sm:$0xff]
        %v3196 = vld [vmem:[%s3180 + $0x78] sm:$0xff]
        %v3197 = vmul.f32 %v3101, %v3181
        %v3198 = vmul.f32 %v3103, %v3182
        %v3199 = vmul.f32 %v3105, %v3183
        %v3200 = vmul.f32 %v3107, %v3184
        %v3201 = vmul.f32 %v3109, %v3185
        %v3202 = vmul.f32 %v3111, %v3186
        %v3203 = vmul.f32 %v3113, %v3187
        %v3204 = vmul.f32 %v3115, %v3188
        %v3205 = vmul.f32 %v3117, %v3189
        %v3206 = vmul.f32 %v3119, %v3190
        %v3207 = vmul.f32 %v3121, %v3191
        %v3208 = vmul.f32 %v3123, %v3192
        %v3209 = vmul.f32 %v3125, %v3193
        %v3210 = vmul.f32 %v3127, %v3194
        %v3211 = vmul.f32 %v3129, %v3195
        %v3212 = vmul.f32 %v3131, %v3196
        %3213 = vmatprep.subr.mxu0 0.0
        %3214 = vmatpush1.xpose.msra.mxu0 %v2807
        %3215 = vmatprep.subr.mxu0 0.0
        %3216 = vmatpush1.xpose.msra.mxu0 %v2808
        %3217 = vmatprep.subr.mxu0 0.0
        %3218 = vmatpush1.xpose.msra.mxu0 %v2809
        %3219 = vmatprep.subr.mxu0 0.0
        %3220 = vmatpush1.xpose.msra.mxu0 %v2810
        %3221 = vmatprep.subr.mxu0 0.0
        %3222 = vmatpush1.xpose.msra.mxu0 0.0
        %3223 = vmatprep.subr.mxu0 0.0
        %3224 = vmatpush1.xpose.msra.mxu0 0.0
        %3225 = vmatprep.subr.mxu0 0.0
        %3226 = vmatpush1.xpose.msra.mxu0 0.0
        %3227 = vmatprep.subr.mxu0 0.0
        %3228 = vmatpush1.xpose.msra.mxu0 0.0
        %3229 = vmatprep.subr.mxu0 0.0
        %3230 = vmatpush1.xpose.msra.mxu0 0.0
        %3231 = vmatprep.subr.mxu0 0.0
        %3232 = vmatpush1.xpose.msra.mxu0 0.0
        %3233 = vmatprep.subr.mxu0 0.0
        %3234 = vmatpush1.xpose.msra.mxu0 0.0
        %3235 = vmatprep.subr.mxu0 0.0
        %3236 = vmatpush1.xpose.msra.mxu0 0.0
        %3237 = vmatprep.subr.mxu0 0.0
        %3238 = vmatpush1.xpose.msra.mxu0 0.0
        %3239 = vmatprep.subr.mxu0 0.0
        %3240 = vmatpush1.xpose.msra.mxu0 0.0
        %3241 = vmatprep.subr.mxu0 0.0
        %3242 = vmatpush1.xpose.msra.mxu0 0.0
        %3243 = vmatprep.subr.mxu0 0.0
        %3244 = vmatpush1.xpose.msra.mxu0 0.0
        %3245 = vmatprep.subr.mxu0 0.0
        %3246 = vmatpush1.xpose.msra.mxu0 0.0
        %3247 = vmatprep.subr.mxu0 0.0
        %3248 = vmatpush1.xpose.msra.mxu0 0.0
        %3249 = vmatprep.subr.mxu0 0.0
        %3250 = vmatpush1.xpose.msra.mxu0 0.0
        %3251 = vmatprep.subr.mxu0 0.0
        %3252 = vmatpush1.xpose.msra.mxu0 0.0
        %3253 = vmatprep.subr.mxu0 0.0
        %3254 = vmatpush1.xpose.msra.mxu0 0.0
        %3255 = vmatprep.subr.mxu0 0.0
        %3256 = vmatpush1.xpose.msra.mxu0 0.0
        %3257 = vmatprep.subr.mxu0 0.0
        %3258 = vmatpush1.xpose.msra.mxu0 0.0
        %3259 = vmatprep.subr.mxu0 0.0
        %3260 = vmatpush1.xpose.msra.mxu0 0.0
        %3261 = vmatprep.subr.mxu0 0.0
        %3262 = vmatpush1.xpose.msra.mxu0 0.0
        %3263 = vmatprep.subr.mxu0 0.0
        %3264 = vmatpush1.xpose.msra.mxu0 0.0
        %3265 = vmatprep.subr.mxu0 0.0
        %3266 = vmatpush1.xpose.msra.mxu0 0.0
        %3267 = vmatprep.subr.mxu0 0.0
        %3268 = vmatpush1.xpose.msra.mxu0 0.0
        %3269 = vmatprep.subr.mxu0 0.0
        %3270 = vmatpush1.xpose.msra.mxu0 0.0
        %3271 = vmatprep.subr.mxu0 0.0
        %3272 = vmatpush1.xpose.msra.mxu0 0.0
        %3273 = vmatprep.subr.mxu0 0.0
        %3274 = vmatpush1.xpose.msra.mxu0 0.0
        %3275 = vmatprep.subr.mxu0 0.0
        %3276 = vmatpush1.xpose.msra.mxu0 0.0
        %3277 = vmatprep.mubr.f32.mxu0 0.0
        %3278 = vmatmul.mubr.f32.gmra.mrb[0].mxu0 %v3197
        %v3279 = vpop.f32.mrb[0].mxu0
        %v3280 = vadd.f32 0.0, %v3279
        %v3281 = vpop.f32.mrb[0].mxu0
        %3282 = vmatprep.mubr.f32.mxu0 0.0
        %3283 = vmatmul.mubr.f32.gmra.mrb[0].mxu0 %v3198
        %v3284 = vpop.f32.mrb[0].mxu0
        %v3285 = vadd.f32 0.0, %v3284
        %v3286 = vpop.f32.mrb[0].mxu0
        %3287 = vmatprep.mubr.f32.mxu0 0.0
        %3288 = vmatmul.mubr.f32.gmra.mrb[0].mxu0 %v3199
        %v3289 = vpop.f32.mrb[0].mxu0
        %v3290 = vadd.f32 0.0, %v3289
        %v3291 = vpop.f32.mrb[0].mxu0
        %3292 = vmatprep.mubr.f32.mxu0 0.0
        %3293 = vmatmul.mubr.f32.gmra.mrb[0].mxu0 %v3200
        %v3294 = vpop.f32.mrb[0].mxu0
        %v3295 = vadd.f32 0.0, %v3294
        %v3296 = vpop.f32.mrb[0].mxu0
        %3297 = vmatprep.mubr.f32.mxu0 0.0
        %3298 = vmatmul.mubr.f32.gmra.mrb[0].mxu0 %v3201
        %v3299 = vpop.f32.mrb[0].mxu0
        %v3300 = vadd.f32 0.0, %v3299
        %v3301 = vpop.f32.mrb[0].mxu0
        %3302 = vmatprep.mubr.f32.mxu0 0.0
        %3303 = vmatmul.mubr.f32.gmra.mrb[0].mxu0 %v3202
        %v3304 = vpop.f32.mrb[0].mxu0
        %v3305 = vadd.f32 0.0, %v3304
        %v3306 = vpop.f32.mrb[0].mxu0
        %3307 = vmatprep.mubr.f32.mxu0 0.0
        %3308 = vmatmul.mubr.f32.gmra.mrb[0].mxu0 %v3203
        %v3309 = vpop.f32.mrb[0].mxu0
        %v3310 = vadd.f32 0.0, %v3309
        %v3311 = vpop.f32.mrb[0].mxu0
        %3312 = vmatprep.mubr.f32.mxu0 0.0
        %3313 = vmatmul.mubr.f32.gmra.mrb[0].mxu0 %v3204
        %v3314 = vpop.f32.mrb[0].mxu0
        %v3315 = vadd.f32 0.0, %v3314
        %v3316 = vpop.f32.mrb[0].mxu0
        %3317 = vmatprep.mubr.f32.mxu0 0.0
        %3318 = vmatmul.mubr.f32.gmra.mrb[0].mxu0 %v3205
        %v3319 = vpop.f32.mrb[0].mxu0
        %v3320 = vadd.f32 0.0, %v3319
        %v3321 = vpop.f32.mrb[0].mxu0
        %3322 = vmatprep.mubr.f32.mxu0 0.0
        %3323 = vmatmul.mubr.f32.gmra.mrb[0].mxu0 %v3206
        %v3324 = vpop.f32.mrb[0].mxu0
        %v3325 = vadd.f32 0.0, %v3324
        %v3326 = vpop.f32.mrb[0].mxu0
        %3327 = vmatprep.mubr.f32.mxu0 0.0
        %3328 = vmatmul.mubr.f32.gmra.mrb[0].mxu0 %v3207
        %v3329 = vpop.f32.mrb[0].mxu0
        %v3330 = vadd.f32 0.0, %v3329
        %v3331 = vpop.f32.mrb[0].mxu0
        %3332 = vmatprep.mubr.f32.mxu0 0.0
        %3333 = vmatmul.mubr.f32.gmra.mrb[0].mxu0 %v3208
        %v3334 = vpop.f32.mrb[0].mxu0
        %v3335 = vadd.f32 0.0, %v3334
        %v3336 = vpop.f32.mrb[0].mxu0
        %3337 = vmatprep.mubr.f32.mxu0 0.0
        %3338 = vmatmul.mubr.f32.gmra.mrb[0].mxu0 %v3209
        %v3339 = vpop.f32.mrb[0].mxu0
        %v3340 = vadd.f32 0.0, %v3339
        %v3341 = vpop.f32.mrb[0].mxu0
        %3342 = vmatprep.mubr.f32.mxu0 0.0
        %3343 = vmatmul.mubr.f32.gmra.mrb[0].mxu0 %v3210
        %v3344 = vpop.f32.mrb[0].mxu0
        %v3345 = vadd.f32 0.0, %v3344
        %v3346 = vpop.f32.mrb[0].mxu0
        %3347 = vmatprep.mubr.f32.mxu0 0.0
        %3348 = vmatmul.mubr.f32.gmra.mrb[0].mxu0 %v3211
        %v3349 = vpop.f32.mrb[0].mxu0
        %v3350 = vadd.f32 0.0, %v3349
        %v3351 = vpop.f32.mrb[0].mxu0
        %3352 = vmatprep.mubr.f32.mxu0 0.0
        %3353 = vmatmul.mubr.f32.gmra.mrb[0].mxu0 %v3212
        %v3354 = vpop.f32.mrb[0].mxu0
        %v3355 = vadd.f32 0.0, %v3354
        %v3356 = vpop.f32.mrb[0].mxu0
        %3357 = vdwg.mxu0
        %v3358 = vmul.f32 %v3280, %v3164
        %v3359 = vmul.f32 %v3285, %v3165
        %v3360 = vmul.f32 %v3290, %v3166
        %v3361 = vmul.f32 %v3295, %v3167
        %v3362 = vmul.f32 %v3300, %v3168
        %v3363 = vmul.f32 %v3305, %v3169
        %v3364 = vmul.f32 %v3310, %v3170
        %v3365 = vmul.f32 %v3315, %v3171
        %v3366 = vmul.f32 %v3320, %v3172
        %v3367 = vmul.f32 %v3325, %v3173
        %v3368 = vmul.f32 %v3330, %v3174
        %v3369 = vmul.f32 %v3335, %v3175
        %v3370 = vmul.f32 %v3340, %v3176
        %v3371 = vmul.f32 %v3345, %v3177
        %v3372 = vmul.f32 %v3350, %v3178
        %v3373 = vmul.f32 %v3355, %v3179
        %s3374 = scalar_lea.vmem [#allocation10], 64
        %v3375 = vld [vmem:[%s3374] sm:$0xff]
        %v3376 = vld [vmem:[%s3374 + $0x8] sm:$0xff]
        %v3377 = vld [vmem:[%s3374 + $0x10] sm:$0xff]
        %v3378 = vld [vmem:[%s3374 + $0x18] sm:$0xff]
        %v3380 = vsel %vm1226, %v3358, 0
        %v3383 = vsel %vm1226, %v3359, 0
        %v3386 = vsel %vm1226, %v3360, 0
        %v3389 = vsel %vm1226, %v3361, 0
        %v3392 = vsel %vm1226, %v3362, 0
        %v3395 = vsel %vm1226, %v3363, 0
        %v3398 = vsel %vm1226, %v3364, 0
        %v3401 = vsel %vm1226, %v3365, 0
        %v3404 = vsel %vm1226, %v3366, 0
        %v3407 = vsel %vm1226, %v3367, 0
        %v3410 = vsel %vm1226, %v3368, 0
        %v3413 = vsel %vm1226, %v3369, 0
        %v3416 = vsel %vm1226, %v3370, 0
        %v3419 = vsel %vm1226, %v3371, 0
        %v3422 = vsel %vm1226, %v3372, 0
        %v3425 = vsel %vm1226, %v3373, 0
        %3427 = vmatprep.subr.mxu0 0.0
        %3428 = vmatpush1.msra.mxu0 %v3375
        %3429 = vmatprep.subr.mxu0 0.0
        %3430 = vmatpush1.msra.mxu0 %v3376
        %3431 = vmatprep.subr.mxu0 0.0
        %3432 = vmatpush1.msra.mxu0 %v3377
        %3433 = vmatprep.subr.mxu0 0.0
        %3434 = vmatpush1.msra.mxu0 %v3378
        %3435 = vmatprep.subr.mxu0 0.0
        %3436 = vmatpush1.msra.mxu0 0.0
        %3437 = vmatprep.subr.mxu0 0.0
        %3438 = vmatpush1.msra.mxu0 0.0
        %3439 = vmatprep.subr.mxu0 0.0
        %3440 = vmatpush1.msra.mxu0 0.0
        %3441 = vmatprep.subr.mxu0 0.0
        %3442 = vmatpush1.msra.mxu0 0.0
        %3443 = vmatprep.subr.mxu0 0.0
        %3444 = vmatpush1.msra.mxu0 0.0
        %3445 = vmatprep.subr.mxu0 0.0
        %3446 = vmatpush1.msra.mxu0 0.0
        %3447 = vmatprep.subr.mxu0 0.0
        %3448 = vmatpush1.msra.mxu0 0.0
        %3449 = vmatprep.subr.mxu0 0.0
        %3450 = vmatpush1.msra.mxu0 0.0
        %3451 = vmatprep.subr.mxu0 0.0
        %3452 = vmatpush1.msra.mxu0 0.0
        %3453 = vmatprep.subr.mxu0 0.0
        %3454 = vmatpush1.msra.mxu0 0.0
        %3455 = vmatprep.subr.mxu0 0.0
        %3456 = vmatpush1.msra.mxu0 0.0
        %3457 = vmatprep.subr.mxu0 0.0
        %3458 = vmatpush1.msra.mxu0 0.0
        %3459 = vmatprep.subr.mxu0 0.0
        %3460 = vmatpush1.msra.mxu0 0.0
        %3461 = vmatprep.subr.mxu0 0.0
        %3462 = vmatpush1.msra.mxu0 0.0
        %3463 = vmatprep.subr.mxu0 0.0
        %3464 = vmatpush1.msra.mxu0 0.0
        %3465 = vmatprep.subr.mxu0 0.0
        %3466 = vmatpush1.msra.mxu0 0.0
        %3467 = vmatprep.subr.mxu0 0.0
        %3468 = vmatpush1.msra.mxu0 0.0
        %3469 = vmatprep.subr.mxu0 0.0
        %3470 = vmatpush1.msra.mxu0 0.0
        %3471 = vmatprep.subr.mxu0 0.0
        %3472 = vmatpush1.msra.mxu0 0.0
        %3473 = vmatprep.subr.mxu0 0.0
        %3474 = vmatpush1.msra.mxu0 0.0
        %3475 = vmatprep.subr.mxu0 0.0
        %3476 = vmatpush1.msra.mxu0 0.0
        %3477 = vmatprep.subr.mxu0 0.0
        %3478 = vmatpush1.msra.mxu0 0.0
        %3479 = vmatprep.subr.mxu0 0.0
        %3480 = vmatpush1.msra.mxu0 0.0
        %3481 = vmatprep.subr.mxu0 0.0
        %3482 = vmatpush1.msra.mxu0 0.0
        %3483 = vmatprep.subr.mxu0 0.0
        %3484 = vmatpush1.msra.mxu0 0.0
        %3485 = vmatprep.subr.mxu0 0.0
        %3486 = vmatpush1.msra.mxu0 0.0
        %3487 = vmatprep.subr.mxu0 0.0
        %3488 = vmatpush1.msra.mxu0 0.0
        %3489 = vmatprep.subr.mxu0 0.0
        %3490 = vmatpush1.msra.mxu0 0.0
        %3491 = vmatprep.mubr.f32.mxu0 0.0
        %3492 = vmatmul.mubr.f32.gmra.mrb[0].mxu0 %v3380
        %v3493 = vpop.f32.mrb[0].mxu0
        %v3494 = vadd.f32 0.0, %v3493
        %v3495 = vpop.f32.mrb[0].mxu0
        %3496 = vmatprep.mubr.f32.mxu0 0.0
        %3497 = vmatmul.mubr.f32.gmra.mrb[0].mxu0 %v3383
        %v3498 = vpop.f32.mrb[0].mxu0
        %v3499 = vadd.f32 0.0, %v3498
        %v3500 = vpop.f32.mrb[0].mxu0
        %3501 = vmatprep.mubr.f32.mxu0 0.0
        %3502 = vmatmul.mubr.f32.gmra.mrb[0].mxu0 %v3386
        %v3503 = vpop.f32.mrb[0].mxu0
        %v3504 = vadd.f32 0.0, %v3503
        %v3505 = vpop.f32.mrb[0].mxu0
        %3506 = vmatprep.mubr.f32.mxu0 0.0
        %3507 = vmatmul.mubr.f32.gmra.mrb[0].mxu0 %v3389
        %v3508 = vpop.f32.mrb[0].mxu0
        %v3509 = vadd.f32 0.0, %v3508
        %v3510 = vpop.f32.mrb[0].mxu0
        %3511 = vmatprep.mubr.f32.mxu0 0.0
        %3512 = vmatmul.mubr.f32.gmra.mrb[0].mxu0 %v3392
        %v3513 = vpop.f32.mrb[0].mxu0
        %v3514 = vadd.f32 0.0, %v3513
        %v3515 = vpop.f32.mrb[0].mxu0
        %3516 = vmatprep.mubr.f32.mxu0 0.0
        %3517 = vmatmul.mubr.f32.gmra.mrb[0].mxu0 %v3395
        %v3518 = vpop.f32.mrb[0].mxu0
        %v3519 = vadd.f32 0.0, %v3518
        %v3520 = vpop.f32.mrb[0].mxu0
        %3521 = vmatprep.mubr.f32.mxu0 0.0
        %3522 = vmatmul.mubr.f32.gmra.mrb[0].mxu0 %v3398
        %v3523 = vpop.f32.mrb[0].mxu0
        %v3524 = vadd.f32 0.0, %v3523
        %v3525 = vpop.f32.mrb[0].mxu0
        %3526 = vmatprep.mubr.f32.mxu0 0.0
        %3527 = vmatmul.mubr.f32.gmra.mrb[0].mxu0 %v3401
        %v3528 = vpop.f32.mrb[0].mxu0
        %v3529 = vadd.f32 0.0, %v3528
        %v3530 = vpop.f32.mrb[0].mxu0
        %3531 = vmatprep.mubr.f32.mxu0 0.0
        %3532 = vmatmul.mubr.f32.gmra.mrb[0].mxu0 %v3404
        %v3533 = vpop.f32.mrb[0].mxu0
        %v3534 = vadd.f32 0.0, %v3533
        %v3535 = vpop.f32.mrb[0].mxu0
        %3536 = vmatprep.mubr.f32.mxu0 0.0
        %3537 = vmatmul.mubr.f32.gmra.mrb[0].mxu0 %v3407
        %v3538 = vpop.f32.mrb[0].mxu0
        %v3539 = vadd.f32 0.0, %v3538
        %v3540 = vpop.f32.mrb[0].mxu0
        %3541 = vmatprep.mubr.f32.mxu0 0.0
        %3542 = vmatmul.mubr.f32.gmra.mrb[0].mxu0 %v3410
        %v3543 = vpop.f32.mrb[0].mxu0
        %v3544 = vadd.f32 0.0, %v3543
        %v3545 = vpop.f32.mrb[0].mxu0
        %3546 = vmatprep.mubr.f32.mxu0 0.0
        %3547 = vmatmul.mubr.f32.gmra.mrb[0].mxu0 %v3413
        %v3548 = vpop.f32.mrb[0].mxu0
        %v3549 = vadd.f32 0.0, %v3548
        %v3550 = vpop.f32.mrb[0].mxu0
        %3551 = vmatprep.mubr.f32.mxu0 0.0
        %3552 = vmatmul.mubr.f32.gmra.mrb[0].mxu0 %v3416
        %v3553 = vpop.f32.mrb[0].mxu0
        %v3554 = vadd.f32 0.0, %v3553
        %v3555 = vpop.f32.mrb[0].mxu0
        %3556 = vmatprep.mubr.f32.mxu0 0.0
        %3557 = vmatmul.mubr.f32.gmra.mrb[0].mxu0 %v3419
        %v3558 = vpop.f32.mrb[0].mxu0
        %v3559 = vadd.f32 0.0, %v3558
        %v3560 = vpop.f32.mrb[0].mxu0
        %3561 = vmatprep.mubr.f32.mxu0 0.0
        %3562 = vmatmul.mubr.f32.gmra.mrb[0].mxu0 %v3422
        %v3563 = vpop.f32.mrb[0].mxu0
        %v3564 = vadd.f32 0.0, %v3563
        %v3565 = vpop.f32.mrb[0].mxu0
        %3566 = vmatprep.mubr.f32.mxu0 0.0
        %3567 = vmatmul.mubr.f32.gmra.mrb[0].mxu0 %v3425
        %v3568 = vpop.f32.mrb[0].mxu0
        %v3569 = vadd.f32 0.0, %v3568
        %v3570 = vpop.f32.mrb[0].mxu0
        %3571 = vdwg.mxu0
        %v3572 = vld [vmem:[#allocation4] sm:$0xff]
        %v3573 = vld [vmem:[#allocation4 + $0x8] sm:$0xff]
        %v3574 = vld [vmem:[#allocation4 + $0x10] sm:$0xff]
        %v3575 = vld [vmem:[#allocation4 + $0x18] sm:$0xff]
        %v3576 = vld [vmem:[#allocation4 + $0x20] sm:$0xff]
        %v3577 = vld [vmem:[#allocation4 + $0x28] sm:$0xff]
        %v3578 = vld [vmem:[#allocation4 + $0x30] sm:$0xff]
        %v3579 = vld [vmem:[#allocation4 + $0x38] sm:$0xff]
        %v3580 = vld [vmem:[#allocation4 + $0x40] sm:$0xff]
        %v3581 = vld [vmem:[#allocation4 + $0x48] sm:$0xff]
        %v3582 = vld [vmem:[#allocation4 + $0x50] sm:$0xff]
        %v3583 = vld [vmem:[#allocation4 + $0x58] sm:$0xff]
        %v3584 = vld [vmem:[#allocation4 + $0x60] sm:$0xff]
        %v3585 = vld [vmem:[#allocation4 + $0x68] sm:$0xff]
        %v3586 = vld [vmem:[#allocation4 + $0x70] sm:$0xff]
        %v3587 = vld [vmem:[#allocation4 + $0x78] sm:$0xff]
        %v3588 = vadd.f32 %v3572, %v3494
        %v3589 = vadd.f32 %v3573, %v3499
        %v3590 = vadd.f32 %v3574, %v3504
        %v3591 = vadd.f32 %v3575, %v3509
        %v3592 = vadd.f32 %v3576, %v3514
        %v3593 = vadd.f32 %v3577, %v3519
        %v3594 = vadd.f32 %v3578, %v3524
        %v3595 = vadd.f32 %v3579, %v3529
        %v3596 = vadd.f32 %v3580, %v3534
        %v3597 = vadd.f32 %v3581, %v3539
        %v3598 = vadd.f32 %v3582, %v3544
        %v3599 = vadd.f32 %v3583, %v3549
        %v3600 = vadd.f32 %v3584, %v3554
        %v3601 = vadd.f32 %v3585, %v3559
        %v3602 = vadd.f32 %v3586, %v3564
        %v3603 = vadd.f32 %v3587, %v3569
        %3604 = vst [vmem:[#allocation4] sm:$0xff] %v3588
        %3605 = vst [vmem:[#allocation4 + $0x8] sm:$0xff] %v3589
        %3606 = vst [vmem:[#allocation4 + $0x10] sm:$0xff] %v3590
        %3607 = vst [vmem:[#allocation4 + $0x18] sm:$0xff] %v3591
        %3608 = vst [vmem:[#allocation4 + $0x20] sm:$0xff] %v3592
        %3609 = vst [vmem:[#allocation4 + $0x28] sm:$0xff] %v3593
        %3610 = vst [vmem:[#allocation4 + $0x30] sm:$0xff] %v3594
        %3611 = vst [vmem:[#allocation4 + $0x38] sm:$0xff] %v3595
        %3612 = vst [vmem:[#allocation4 + $0x40] sm:$0xff] %v3596
        %3613 = vst [vmem:[#allocation4 + $0x48] sm:$0xff] %v3597
        %3614 = vst [vmem:[#allocation4 + $0x50] sm:$0xff] %v3598
        %3615 = vst [vmem:[#allocation4 + $0x58] sm:$0xff] %v3599
        %3616 = vst [vmem:[#allocation4 + $0x60] sm:$0xff] %v3600
        %3617 = vst [vmem:[#allocation4 + $0x68] sm:$0xff] %v3601
        %3618 = vst [vmem:[#allocation4 + $0x70] sm:$0xff] %v3602
        %3619 = vst [vmem:[#allocation4 + $0x78] sm:$0xff] %v3603
        %v3620 = vld [vmem:[#allocation2] sm:$0xff]
        %v3621 = vld [vmem:[#allocation2 + $0x8] sm:$0xff]
        %v3622 = vld [vmem:[#allocation2 + $0x10] sm:$0xff]
        %v3623 = vld [vmem:[#allocation2 + $0x18] sm:$0xff]
        %v3624 = vld [vmem:[#allocation2 + $0x20] sm:$0xff]
        %v3625 = vld [vmem:[#allocation2 + $0x28] sm:$0xff]
        %v3626 = vld [vmem:[#allocation2 + $0x30] sm:$0xff]
        %v3627 = vld [vmem:[#allocation2 + $0x38] sm:$0xff]
        %v3628 = vld [vmem:[#allocation2 + $0x40] sm:$0xff]
        %v3629 = vld [vmem:[#allocation2 + $0x48] sm:$0xff]
        %v3630 = vld [vmem:[#allocation2 + $0x50] sm:$0xff]
        %v3631 = vld [vmem:[#allocation2 + $0x58] sm:$0xff]
        %v3632 = vld [vmem:[#allocation2 + $0x60] sm:$0xff]
        %v3633 = vld [vmem:[#allocation2 + $0x68] sm:$0xff]
        %v3634 = vld [vmem:[#allocation2 + $0x70] sm:$0xff]
        %v3635 = vld [vmem:[#allocation2 + $0x78] sm:$0xff]
        %v3636 = vld [vmem:[#allocation3 + $0x60] sm:$0xff]
        %v3637 = vld [vmem:[#allocation3 + $0x68] sm:$0xff]
        %v3638 = vld [vmem:[#allocation3 + $0x70] sm:$0xff]
        %v3639 = vld [vmem:[#allocation3 + $0x78] sm:$0xff]
        %v3640 = vld [vmem:[#allocation3 + $0xe0] sm:$0xff]
        %v3641 = vld [vmem:[#allocation3 + $0xe8] sm:$0xff]
        %v3642 = vld [vmem:[#allocation3 + $0xf0] sm:$0xff]
        %v3643 = vld [vmem:[#allocation3 + $0xf8] sm:$0xff]
        %v3644 = vld [vmem:[#allocation13] sm:$0xff]
        %v3645 = vld [vmem:[#allocation13 + $0x8] sm:$0xff]
        %v3646 = vld [vmem:[#allocation13 + $0x10] sm:$0xff]
        %v3647 = vld [vmem:[#allocation13 + $0x18] sm:$0xff]
        %v3648 = vld [vmem:[#allocation13 + $0x20] sm:$0xff]
        %v3649 = vld [vmem:[#allocation13 + $0x28] sm:$0xff]
        %v3650 = vld [vmem:[#allocation13 + $0x30] sm:$0xff]
        %v3651 = vld [vmem:[#allocation13 + $0x38] sm:$0xff]
        %v3652 = vld [vmem:[#allocation13 + $0x40] sm:$0xff]
        %v3653 = vld [vmem:[#allocation13 + $0x48] sm:$0xff]
        %v3654 = vld [vmem:[#allocation13 + $0x50] sm:$0xff]
        %v3655 = vld [vmem:[#allocation13 + $0x58] sm:$0xff]
        %v3656 = vld [vmem:[#allocation13 + $0x60] sm:$0xff]
        %v3657 = vld [vmem:[#allocation13 + $0x68] sm:$0xff]
        %v3658 = vld [vmem:[#allocation13 + $0x70] sm:$0xff]
        %v3659 = vld [vmem:[#allocation13 + $0x78] sm:$0xff]
        %3676 = vrot.lane.b32.xlu0 %v3620, 32
        %v3677 = vpop.permute.xlu0 %3676
        %3678 = vrot.lane.b32.xlu0 %v3621, 32
        %v3679 = vpop.permute.xlu0 %3678
        %3680 = vrot.lane.b32.xlu0 %v3622, 32
        %v3681 = vpop.permute.xlu0 %3680
        %3682 = vrot.lane.b32.xlu0 %v3623, 32
        %v3683 = vpop.permute.xlu0 %3682
        %3684 = vrot.lane.b32.xlu0 %v3624, 32
        %v3685 = vpop.permute.xlu0 %3684
        %3686 = vrot.lane.b32.xlu0 %v3625, 32
        %v3687 = vpop.permute.xlu0 %3686
        %3688 = vrot.lane.b32.xlu0 %v3626, 32
        %v3689 = vpop.permute.xlu0 %3688
        %3690 = vrot.lane.b32.xlu0 %v3627, 32
        %v3691 = vpop.permute.xlu0 %3690
        %3692 = vrot.lane.b32.xlu0 %v3628, 32
        %v3693 = vpop.permute.xlu0 %3692
        %3694 = vrot.lane.b32.xlu0 %v3629, 32
        %v3695 = vpop.permute.xlu0 %3694
        %3696 = vrot.lane.b32.xlu0 %v3630, 32
        %v3697 = vpop.permute.xlu0 %3696
        %3698 = vrot.lane.b32.xlu0 %v3631, 32
        %v3699 = vpop.permute.xlu0 %3698
        %3700 = vrot.lane.b32.xlu0 %v3632, 32
        %v3701 = vpop.permute.xlu0 %3700
        %3702 = vrot.lane.b32.xlu0 %v3633, 32
        %v3703 = vpop.permute.xlu0 %3702
        %3704 = vrot.lane.b32.xlu0 %v3634, 32
        %v3705 = vpop.permute.xlu0 %3704
        %3706 = vrot.lane.b32.xlu0 %v3635, 32
        %v3707 = vpop.permute.xlu0 %3706
        %v3708 = vsel %vm1226, %v3677, 0
        %v3710 = vsel %vm1226, %v3679, 0
        %v3712 = vsel %vm1226, %v3681, 0
        %v3714 = vsel %vm1226, %v3683, 0
        %v3716 = vsel %vm1226, %v3685, 0
        %v3718 = vsel %vm1226, %v3687, 0
        %v3720 = vsel %vm1226, %v3689, 0
        %v3722 = vsel %vm1226, %v3691, 0
        %v3724 = vsel %vm1226, %v3693, 0
        %v3726 = vsel %vm1226, %v3695, 0
        %v3728 = vsel %vm1226, %v3697, 0
        %v3730 = vsel %vm1226, %v3699, 0
        %v3732 = vsel %vm1226, %v3701, 0
        %v3734 = vsel %vm1226, %v3703, 0
        %v3736 = vsel %vm1226, %v3705, 0
        %v3738 = vsel %vm1226, %v3707, 0
        %3740 = vmatprep.subr.mxu0 0.0
        %3741 = vmatpush1.msra.mxu0 %v3636
        %3742 = vmatprep.subr.mxu0 0.0
        %3743 = vmatpush1.msra.mxu0 %v3637
        %3744 = vmatprep.subr.mxu0 0.0
        %3745 = vmatpush1.msra.mxu0 %v3638
        %3746 = vmatprep.subr.mxu0 0.0
        %3747 = vmatpush1.msra.mxu0 %v3639
        %3748 = vmatprep.subr.mxu0 0.0
        %3749 = vmatpush1.msra.mxu0 0.0
        %3750 = vmatprep.subr.mxu0 0.0
        %3751 = vmatpush1.msra.mxu0 0.0
        %3752 = vmatprep.subr.mxu0 0.0
        %3753 = vmatpush1.msra.mxu0 0.0
        %3754 = vmatprep.subr.mxu0 0.0
        %3755 = vmatpush1.msra.mxu0 0.0
        %3756 = vmatprep.subr.mxu0 0.0
        %3757 = vmatpush1.msra.mxu0 0.0
        %3758 = vmatprep.subr.mxu0 0.0
        %3759 = vmatpush1.msra.mxu0 0.0
        %3760 = vmatprep.subr.mxu0 0.0
        %3761 = vmatpush1.msra.mxu0 0.0
        %3762 = vmatprep.subr.mxu0 0.0
        %3763 = vmatpush1.msra.mxu0 0.0
        %3764 = vmatprep.subr.mxu0 0.0
        %3765 = vmatpush1.msra.mxu0 0.0
        %3766 = vmatprep.subr.mxu0 0.0
        %3767 = vmatpush1.msra.mxu0 0.0
        %3768 = vmatprep.subr.mxu0 0.0
        %3769 = vmatpush1.msra.mxu0 0.0
        %3770 = vmatprep.subr.mxu0 0.0
        %3771 = vmatpush1.msra.mxu0 0.0
        %3772 = vmatprep.subr.mxu0 0.0
        %3773 = vmatpush1.msra.mxu0 0.0
        %3774 = vmatprep.subr.mxu0 0.0
        %3775 = vmatpush1.msra.mxu0 0.0
        %3776 = vmatprep.subr.mxu0 0.0
        %3777 = vmatpush1.msra.mxu0 0.0
        %3778 = vmatprep.subr.mxu0 0.0
        %3779 = vmatpush1.msra.mxu0 0.0
        %3780 = vmatprep.subr.mxu0 0.0
        %3781 = vmatpush1.msra.mxu0 0.0
        %3782 = vmatprep.subr.mxu0 0.0
        %3783 = vmatpush1.msra.mxu0 0.0
        %3784 = vmatprep.subr.mxu0 0.0
        %3785 = vmatpush1.msra.mxu0 0.0
        %3786 = vmatprep.subr.mxu0 0.0
        %3787 = vmatpush1.msra.mxu0 0.0
        %3788 = vmatprep.subr.mxu0 0.0
        %3789 = vmatpush1.msra.mxu0 0.0
        %3790 = vmatprep.subr.mxu0 0.0
        %3791 = vmatpush1.msra.mxu0 0.0
        %3792 = vmatprep.subr.mxu0 0.0
        %3793 = vmatpush1.msra.mxu0 0.0
        %3794 = vmatprep.subr.mxu0 0.0
        %3795 = vmatpush1.msra.mxu0 0.0
        %3796 = vmatprep.subr.mxu0 0.0
        %3797 = vmatpush1.msra.mxu0 0.0
        %3798 = vmatprep.subr.mxu0 0.0
        %3799 = vmatpush1.msra.mxu0 0.0
        %3800 = vmatprep.subr.mxu0 0.0
        %3801 = vmatpush1.msra.mxu0 0.0
        %3802 = vmatprep.subr.mxu0 0.0
        %3803 = vmatpush1.msra.mxu0 0.0
        %3804 = vmatprep.mubr.f32.mxu0 0.0
        %3805 = vmatmul.mubr.f32.gmra.mrb[0].mxu0 %v3708
        %v3806 = vpop.f32.mrb[0].mxu0
        %v3807 = vadd.f32 %v3644, %v3806
        %v3808 = vpop.f32.mrb[0].mxu0
        %3809 = vmatprep.mubr.f32.mxu0 0.0
        %3810 = vmatmul.mubr.f32.gmra.mrb[0].mxu0 %v3710
        %v3811 = vpop.f32.mrb[0].mxu0
        %v3812 = vadd.f32 %v3645, %v3811
        %v3813 = vpop.f32.mrb[0].mxu0
        %3814 = vmatprep.mubr.f32.mxu0 0.0
        %3815 = vmatmul.mubr.f32.gmra.mrb[0].mxu0 %v3712
        %v3816 = vpop.f32.mrb[0].mxu0
        %v3817 = vadd.f32 %v3646, %v3816
        %v3818 = vpop.f32.mrb[0].mxu0
        %3819 = vmatprep.mubr.f32.mxu0 0.0
        %3820 = vmatmul.mubr.f32.gmra.mrb[0].mxu0 %v3714
        %v3821 = vpop.f32.mrb[0].mxu0
        %v3822 = vadd.f32 %v3647, %v3821
        %v3823 = vpop.f32.mrb[0].mxu0
        %3824 = vmatprep.mubr.f32.mxu0 0.0
        %3825 = vmatmul.mubr.f32.gmra.mrb[0].mxu0 %v3716
        %v3826 = vpop.f32.mrb[0].mxu0
        %v3827 = vadd.f32 %v3648, %v3826
        %v3828 = vpop.f32.mrb[0].mxu0
        %3829 = vmatprep.mubr.f32.mxu0 0.0
        %3830 = vmatmul.mubr.f32.gmra.mrb[0].mxu0 %v3718
        %v3831 = vpop.f32.mrb[0].mxu0
        %v3832 = vadd.f32 %v3649, %v3831
        %v3833 = vpop.f32.mrb[0].mxu0
        %3834 = vmatprep.mubr.f32.mxu0 0.0
        %3835 = vmatmul.mubr.f32.gmra.mrb[0].mxu0 %v3720
        %v3836 = vpop.f32.mrb[0].mxu0
        %v3837 = vadd.f32 %v3650, %v3836
        %v3838 = vpop.f32.mrb[0].mxu0
        %3839 = vmatprep.mubr.f32.mxu0 0.0
        %3840 = vmatmul.mubr.f32.gmra.mrb[0].mxu0 %v3722
        %v3841 = vpop.f32.mrb[0].mxu0
        %v3842 = vadd.f32 %v3651, %v3841
        %v3843 = vpop.f32.mrb[0].mxu0
        %3844 = vmatprep.mubr.f32.mxu0 0.0
        %3845 = vmatmul.mubr.f32.gmra.mrb[0].mxu0 %v3724
        %v3846 = vpop.f32.mrb[0].mxu0
        %v3847 = vadd.f32 %v3652, %v3846
        %v3848 = vpop.f32.mrb[0].mxu0
        %3849 = vmatprep.mubr.f32.mxu0 0.0
        %3850 = vmatmul.mubr.f32.gmra.mrb[0].mxu0 %v3726
        %v3851 = vpop.f32.mrb[0].mxu0
        %v3852 = vadd.f32 %v3653, %v3851
        %v3853 = vpop.f32.mrb[0].mxu0
        %3854 = vmatprep.mubr.f32.mxu0 0.0
        %3855 = vmatmul.mubr.f32.gmra.mrb[0].mxu0 %v3728
        %v3856 = vpop.f32.mrb[0].mxu0
        %v3857 = vadd.f32 %v3654, %v3856
        %v3858 = vpop.f32.mrb[0].mxu0
        %3859 = vmatprep.mubr.f32.mxu0 0.0
        %3860 = vmatmul.mubr.f32.gmra.mrb[0].mxu0 %v3730
        %v3861 = vpop.f32.mrb[0].mxu0
        %v3862 = vadd.f32 %v3655, %v3861
        %v3863 = vpop.f32.mrb[0].mxu0
        %3864 = vmatprep.mubr.f32.mxu0 0.0
        %3865 = vmatmul.mubr.f32.gmra.mrb[0].mxu0 %v3732
        %v3866 = vpop.f32.mrb[0].mxu0
        %v3867 = vadd.f32 %v3656, %v3866
        %v3868 = vpop.f32.mrb[0].mxu0
        %3869 = vmatprep.mubr.f32.mxu0 0.0
        %3870 = vmatmul.mubr.f32.gmra.mrb[0].mxu0 %v3734
        %v3871 = vpop.f32.mrb[0].mxu0
        %v3872 = vadd.f32 %v3657, %v3871
        %v3873 = vpop.f32.mrb[0].mxu0
        %3874 = vmatprep.mubr.f32.mxu0 0.0
        %3875 = vmatmul.mubr.f32.gmra.mrb[0].mxu0 %v3736
        %v3876 = vpop.f32.mrb[0].mxu0
        %v3877 = vadd.f32 %v3658, %v3876
        %v3878 = vpop.f32.mrb[0].mxu0
        %3879 = vmatprep.mubr.f32.mxu0 0.0
        %3880 = vmatmul.mubr.f32.gmra.mrb[0].mxu0 %v3738
        %v3881 = vpop.f32.mrb[0].mxu0
        %v3882 = vadd.f32 %v3659, %v3881
        %v3883 = vpop.f32.mrb[0].mxu0
        %3884 = vdwg.mxu0
        %3885 = vmax.xlane.f32.xlu0 %v3807
        %v3886 = vpop.xlane.xlu0 %3885
        %3887 = vmax.xlane.f32.xlu0 %v3812
        %v3888 = vpop.xlane.xlu0 %3887
        %3889 = vmax.xlane.f32.xlu0 %v3817
        %v3890 = vpop.xlane.xlu0 %3889
        %3891 = vmax.xlane.f32.xlu0 %v3822
        %v3892 = vpop.xlane.xlu0 %3891
        %3893 = vmax.xlane.f32.xlu0 %v3827
        %v3894 = vpop.xlane.xlu0 %3893
        %3895 = vmax.xlane.f32.xlu0 %v3832
        %v3896 = vpop.xlane.xlu0 %3895
        %3897 = vmax.xlane.f32.xlu0 %v3837
        %v3898 = vpop.xlane.xlu0 %3897
        %3899 = vmax.xlane.f32.xlu0 %v3842
        %v3900 = vpop.xlane.xlu0 %3899
        %3901 = vmax.xlane.f32.xlu0 %v3847
        %v3902 = vpop.xlane.xlu0 %3901
        %3903 = vmax.xlane.f32.xlu0 %v3852
        %v3904 = vpop.xlane.xlu0 %3903
        %3905 = vmax.xlane.f32.xlu0 %v3857
        %v3906 = vpop.xlane.xlu0 %3905
        %3907 = vmax.xlane.f32.xlu0 %v3862
        %v3908 = vpop.xlane.xlu0 %3907
        %3909 = vmax.xlane.f32.xlu0 %v3867
        %v3910 = vpop.xlane.xlu0 %3909
        %3911 = vmax.xlane.f32.xlu0 %v3872
        %v3912 = vpop.xlane.xlu0 %3911
        %3913 = vmax.xlane.f32.xlu0 %v3877
        %v3914 = vpop.xlane.xlu0 %3913
        %3915 = vmax.xlane.f32.xlu0 %v3882
        %v3916 = vpop.xlane.xlu0 %3915
        %v3917 = vsub.f32 %v3807, %v3886
        %v3918 = vsub.f32 %v3812, %v3888
        %v3919 = vsub.f32 %v3817, %v3890
        %v3920 = vsub.f32 %v3822, %v3892
        %v3921 = vsub.f32 %v3827, %v3894
        %v3922 = vsub.f32 %v3832, %v3896
        %v3923 = vsub.f32 %v3837, %v3898
        %v3924 = vsub.f32 %v3842, %v3900
        %v3925 = vsub.f32 %v3847, %v3902
        %v3926 = vsub.f32 %v3852, %v3904
        %v3927 = vsub.f32 %v3857, %v3906
        %v3928 = vsub.f32 %v3862, %v3908
        %v3929 = vsub.f32 %v3867, %v3910
        %v3930 = vsub.f32 %v3872, %v3912
        %v3931 = vsub.f32 %v3877, %v3914
        %v3932 = vsub.f32 %v3882, %v3916
        %v3933 = vmul.f32 %v3917, 1.442695
        %v3934 = vpow.pop %v3933
        %v3935 = vmul.f32 %v3918, 1.442695
        %v3936 = vpow.pop %v3935
        %v3937 = vmul.f32 %v3919, 1.442695
        %v3938 = vpow.pop %v3937
        %v3939 = vmul.f32 %v3920, 1.442695
        %v3940 = vpow.pop %v3939
        %v3941 = vmul.f32 %v3921, 1.442695
        %v3942 = vpow.pop %v3941
        %v3943 = vmul.f32 %v3922, 1.442695
        %v3944 = vpow.pop %v3943
        %v3945 = vmul.f32 %v3923, 1.442695
        %v3946 = vpow.pop %v3945
        %v3947 = vmul.f32 %v3924, 1.442695
        %v3948 = vpow.pop %v3947
        %v3949 = vmul.f32 %v3925, 1.442695
        %v3950 = vpow.pop %v3949
        %v3951 = vmul.f32 %v3926, 1.442695
        %v3952 = vpow.pop %v3951
        %v3953 = vmul.f32 %v3927, 1.442695
        %v3954 = vpow.pop %v3953
        %v3955 = vmul.f32 %v3928, 1.442695
        %v3956 = vpow.pop %v3955
        %v3957 = vmul.f32 %v3929, 1.442695
        %v3958 = vpow.pop %v3957
        %v3959 = vmul.f32 %v3930, 1.442695
        %v3960 = vpow.pop %v3959
        %v3961 = vmul.f32 %v3931, 1.442695
        %v3962 = vpow.pop %v3961
        %v3963 = vmul.f32 %v3932, 1.442695
        %v3964 = vpow.pop %v3963
        %3965 = vadd.xlane.f32.xlu0 %v3934
        %v3966 = vpop.xlane.xlu0 %3965
        %3967 = vadd.xlane.f32.xlu0 %v3936
        %v3968 = vpop.xlane.xlu0 %3967
        %3969 = vadd.xlane.f32.xlu0 %v3938
        %v3970 = vpop.xlane.xlu0 %3969
        %3971 = vadd.xlane.f32.xlu0 %v3940
        %v3972 = vpop.xlane.xlu0 %3971
        %3973 = vadd.xlane.f32.xlu0 %v3942
        %v3974 = vpop.xlane.xlu0 %3973
        %3975 = vadd.xlane.f32.xlu0 %v3944
        %v3976 = vpop.xlane.xlu0 %3975
        %3977 = vadd.xlane.f32.xlu0 %v3946
        %v3978 = vpop.xlane.xlu0 %3977
        %3979 = vadd.xlane.f32.xlu0 %v3948
        %v3980 = vpop.xlane.xlu0 %3979
        %3981 = vadd.xlane.f32.xlu0 %v3950
        %v3982 = vpop.xlane.xlu0 %3981
        %3983 = vadd.xlane.f32.xlu0 %v3952
        %v3984 = vpop.xlane.xlu0 %3983
        %3985 = vadd.xlane.f32.xlu0 %v3954
        %v3986 = vpop.xlane.xlu0 %3985
        %3987 = vadd.xlane.f32.xlu0 %v3956
        %v3988 = vpop.xlane.xlu0 %3987
        %3989 = vadd.xlane.f32.xlu0 %v3958
        %v3990 = vpop.xlane.xlu0 %3989
        %3991 = vadd.xlane.f32.xlu0 %v3960
        %v3992 = vpop.xlane.xlu0 %3991
        %3993 = vadd.xlane.f32.xlu0 %v3962
        %v3994 = vpop.xlane.xlu0 %3993
        %3995 = vadd.xlane.f32.xlu0 %v3964
        %v3996 = vpop.xlane.xlu0 %3995
        %v3997 = vrcp.pop %v3966
        %v3998 = vrcp.pop %v3968
        %v3999 = vrcp.pop %v3970
        %v4000 = vrcp.pop %v3972
        %v4001 = vrcp.pop %v3974
        %v4002 = vrcp.pop %v3976
        %v4003 = vrcp.pop %v3978
        %v4004 = vrcp.pop %v3980
        %v4005 = vrcp.pop %v3982
        %v4006 = vrcp.pop %v3984
        %v4007 = vrcp.pop %v3986
        %v4008 = vrcp.pop %v3988
        %v4009 = vrcp.pop %v3990
        %v4010 = vrcp.pop %v3992
        %v4011 = vrcp.pop %v3994
        %v4012 = vrcp.pop %v3996
        %s4013 = scalar_lea.vmem [#allocation11], 384
        %v4014 = vld [vmem:[%s4013] sm:$0xff]
        %v4015 = vld [vmem:[%s4013 + $0x8] sm:$0xff]
        %v4016 = vld [vmem:[%s4013 + $0x10] sm:$0xff]
        %v4017 = vld [vmem:[%s4013 + $0x18] sm:$0xff]
        %v4018 = vld [vmem:[%s4013 + $0x20] sm:$0xff]
        %v4019 = vld [vmem:[%s4013 + $0x28] sm:$0xff]
        %v4020 = vld [vmem:[%s4013 + $0x30] sm:$0xff]
        %v4021 = vld [vmem:[%s4013 + $0x38] sm:$0xff]
        %v4022 = vld [vmem:[%s4013 + $0x40] sm:$0xff]
        %v4023 = vld [vmem:[%s4013 + $0x48] sm:$0xff]
        %v4024 = vld [vmem:[%s4013 + $0x50] sm:$0xff]
        %v4025 = vld [vmem:[%s4013 + $0x58] sm:$0xff]
        %v4026 = vld [vmem:[%s4013 + $0x60] sm:$0xff]
        %v4027 = vld [vmem:[%s4013 + $0x68] sm:$0xff]
        %v4028 = vld [vmem:[%s4013 + $0x70] sm:$0xff]
        %v4029 = vld [vmem:[%s4013 + $0x78] sm:$0xff]
        %v4030 = vmul.f32 %v3934, %v4014
        %v4031 = vmul.f32 %v3936, %v4015
        %v4032 = vmul.f32 %v3938, %v4016
        %v4033 = vmul.f32 %v3940, %v4017
        %v4034 = vmul.f32 %v3942, %v4018
        %v4035 = vmul.f32 %v3944, %v4019
        %v4036 = vmul.f32 %v3946, %v4020
        %v4037 = vmul.f32 %v3948, %v4021
        %v4038 = vmul.f32 %v3950, %v4022
        %v4039 = vmul.f32 %v3952, %v4023
        %v4040 = vmul.f32 %v3954, %v4024
        %v4041 = vmul.f32 %v3956, %v4025
        %v4042 = vmul.f32 %v3958, %v4026
        %v4043 = vmul.f32 %v3960, %v4027
        %v4044 = vmul.f32 %v3962, %v4028
        %v4045 = vmul.f32 %v3964, %v4029
        %4046 = vmatprep.subr.mxu0 0.0
        %4047 = vmatpush1.xpose.msra.mxu0 %v3640
        %4048 = vmatprep.subr.mxu0 0.0
        %4049 = vmatpush1.xpose.msra.mxu0 %v3641
        %4050 = vmatprep.subr.mxu0 0.0
        %4051 = vmatpush1.xpose.msra.mxu0 %v3642
        %4052 = vmatprep.subr.mxu0 0.0
        %4053 = vmatpush1.xpose.msra.mxu0 %v3643
        %4054 = vmatprep.subr.mxu0 0.0
        %4055 = vmatpush1.xpose.msra.mxu0 0.0
        %4056 = vmatprep.subr.mxu0 0.0
        %4057 = vmatpush1.xpose.msra.mxu0 0.0
        %4058 = vmatprep.subr.mxu0 0.0
        %4059 = vmatpush1.xpose.msra.mxu0 0.0
        %4060 = vmatprep.subr.mxu0 0.0
        %4061 = vmatpush1.xpose.msra.mxu0 0.0
        %4062 = vmatprep.subr.mxu0 0.0
        %4063 = vmatpush1.xpose.msra.mxu0 0.0
        %4064 = vmatprep.subr.mxu0 0.0
        %4065 = vmatpush1.xpose.msra.mxu0 0.0
        %4066 = vmatprep.subr.mxu0 0.0
        %4067 = vmatpush1.xpose.msra.mxu0 0.0
        %4068 = vmatprep.subr.mxu0 0.0
        %4069 = vmatpush1.xpose.msra.mxu0 0.0
        %4070 = vmatprep.subr.mxu0 0.0
        %4071 = vmatpush1.xpose.msra.mxu0 0.0
        %4072 = vmatprep.subr.mxu0 0.0
        %4073 = vmatpush1.xpose.msra.mxu0 0.0
        %4074 = vmatprep.subr.mxu0 0.0
        %4075 = vmatpush1.xpose.msra.mxu0 0.0
        %4076 = vmatprep.subr.mxu0 0.0
        %4077 = vmatpush1.xpose.msra.mxu0 0.0
        %4078 = vmatprep.subr.mxu0 0.0
        %4079 = vmatpush1.xpose.msra.mxu0 0.0
        %4080 = vmatprep.subr.mxu0 0.0
        %4081 = vmatpush1.xpose.msra.mxu0 0.0
        %4082 = vmatprep.subr.mxu0 0.0
        %4083 = vmatpush1.xpose.msra.mxu0 0.0
        %4084 = vmatprep.subr.mxu0 0.0
        %4085 = vmatpush1.xpose.msra.mxu0 0.0
        %4086 = vmatprep.subr.mxu0 0.0
        %4087 = vmatpush1.xpose.msra.mxu0 0.0
        %4088 = vmatprep.subr.mxu0 0.0
        %4089 = vmatpush1.xpose.msra.mxu0 0.0
        %4090 = vmatprep.subr.mxu0 0.0
        %4091 = vmatpush1.xpose.msra.mxu0 0.0
        %4092 = vmatprep.subr.mxu0 0.0
        %4093 = vmatpush1.xpose.msra.mxu0 0.0
        %4094 = vmatprep.subr.mxu0 0.0
        %4095 = vmatpush1.xpose.msra.mxu0 0.0
        %4096 = vmatprep.subr.mxu0 0.0
        %4097 = vmatpush1.xpose.msra.mxu0 0.0
        %4098 = vmatprep.subr.mxu0 0.0
        %4099 = vmatpush1.xpose.msra.mxu0 0.0
        %4100 = vmatprep.subr.mxu0 0.0
        %4101 = vmatpush1.xpose.msra.mxu0 0.0
        %4102 = vmatprep.subr.mxu0 0.0
        %4103 = vmatpush1.xpose.msra.mxu0 0.0
        %4104 = vmatprep.subr.mxu0 0.0
        %4105 = vmatpush1.xpose.msra.mxu0 0.0
        %4106 = vmatprep.subr.mxu0 0.0
        %4107 = vmatpush1.xpose.msra.mxu0 0.0
        %4108 = vmatprep.subr.mxu0 0.0
        %4109 = vmatpush1.xpose.msra.mxu0 0.0
        %4110 = vmatprep.mubr.f32.mxu0 0.0
        %4111 = vmatmul.mubr.f32.gmra.mrb[0].mxu0 %v4030
        %v4112 = vpop.f32.mrb[0].mxu0
        %v4113 = vadd.f32 0.0, %v4112
        %v4114 = vpop.f32.mrb[0].mxu0
        %4115 = vmatprep.mubr.f32.mxu0 0.0
        %4116 = vmatmul.mubr.f32.gmra.mrb[0].mxu0 %v4031
        %v4117 = vpop.f32.mrb[0].mxu0
        %v4118 = vadd.f32 0.0, %v4117
        %v4119 = vpop.f32.mrb[0].mxu0
        %4120 = vmatprep.mubr.f32.mxu0 0.0
        %4121 = vmatmul.mubr.f32.gmra.mrb[0].mxu0 %v4032
        %v4122 = vpop.f32.mrb[0].mxu0
        %v4123 = vadd.f32 0.0, %v4122
        %v4124 = vpop.f32.mrb[0].mxu0
        %4125 = vmatprep.mubr.f32.mxu0 0.0
        %4126 = vmatmul.mubr.f32.gmra.mrb[0].mxu0 %v4033
        %v4127 = vpop.f32.mrb[0].mxu0
        %v4128 = vadd.f32 0.0, %v4127
        %v4129 = vpop.f32.mrb[0].mxu0
        %4130 = vmatprep.mubr.f32.mxu0 0.0
        %4131 = vmatmul.mubr.f32.gmra.mrb[0].mxu0 %v4034
        %v4132 = vpop.f32.mrb[0].mxu0
        %v4133 = vadd.f32 0.0, %v4132
        %v4134 = vpop.f32.mrb[0].mxu0
        %4135 = vmatprep.mubr.f32.mxu0 0.0
        %4136 = vmatmul.mubr.f32.gmra.mrb[0].mxu0 %v4035
        %v4137 = vpop.f32.mrb[0].mxu0
        %v4138 = vadd.f32 0.0, %v4137
        %v4139 = vpop.f32.mrb[0].mxu0
        %4140 = vmatprep.mubr.f32.mxu0 0.0
        %4141 = vmatmul.mubr.f32.gmra.mrb[0].mxu0 %v4036
        %v4142 = vpop.f32.mrb[0].mxu0
        %v4143 = vadd.f32 0.0, %v4142
        %v4144 = vpop.f32.mrb[0].mxu0
        %4145 = vmatprep.mubr.f32.mxu0 0.0
        %4146 = vmatmul.mubr.f32.gmra.mrb[0].mxu0 %v4037
        %v4147 = vpop.f32.mrb[0].mxu0
        %v4148 = vadd.f32 0.0, %v4147
        %v4149 = vpop.f32.mrb[0].mxu0
        %4150 = vmatprep.mubr.f32.mxu0 0.0
        %4151 = vmatmul.mubr.f32.gmra.mrb[0].mxu0 %v4038
        %v4152 = vpop.f32.mrb[0].mxu0
        %v4153 = vadd.f32 0.0, %v4152
        %v4154 = vpop.f32.mrb[0].mxu0
        %4155 = vmatprep.mubr.f32.mxu0 0.0
        %4156 = vmatmul.mubr.f32.gmra.mrb[0].mxu0 %v4039
        %v4157 = vpop.f32.mrb[0].mxu0
        %v4158 = vadd.f32 0.0, %v4157
        %v4159 = vpop.f32.mrb[0].mxu0
        %4160 = vmatprep.mubr.f32.mxu0 0.0
        %4161 = vmatmul.mubr.f32.gmra.mrb[0].mxu0 %v4040
        %v4162 = vpop.f32.mrb[0].mxu0
        %v4163 = vadd.f32 0.0, %v4162
        %v4164 = vpop.f32.mrb[0].mxu0
        %4165 = vmatprep.mubr.f32.mxu0 0.0
        %4166 = vmatmul.mubr.f32.gmra.mrb[0].mxu0 %v4041
        %v4167 = vpop.f32.mrb[0].mxu0
        %v4168 = vadd.f32 0.0, %v4167
        %v4169 = vpop.f32.mrb[0].mxu0
        %4170 = vmatprep.mubr.f32.mxu0 0.0
        %4171 = vmatmul.mubr.f32.gmra.mrb[0].mxu0 %v4042
        %v4172 = vpop.f32.mrb[0].mxu0
        %v4173 = vadd.f32 0.0, %v4172
        %v4174 = vpop.f32.mrb[0].mxu0
        %4175 = vmatprep.mubr.f32.mxu0 0.0
        %4176 = vmatmul.mubr.f32.gmra.mrb[0].mxu0 %v4043
        %v4177 = vpop.f32.mrb[0].mxu0
        %v4178 = vadd.f32 0.0, %v4177
        %v4179 = vpop.f32.mrb[0].mxu0
        %4180 = vmatprep.mubr.f32.mxu0 0.0
        %4181 = vmatmul.mubr.f32.gmra.mrb[0].mxu0 %v4044
        %v4182 = vpop.f32.mrb[0].mxu0
        %v4183 = vadd.f32 0.0, %v4182
        %v4184 = vpop.f32.mrb[0].mxu0
        %4185 = vmatprep.mubr.f32.mxu0 0.0
        %4186 = vmatmul.mubr.f32.gmra.mrb[0].mxu0 %v4045
        %v4187 = vpop.f32.mrb[0].mxu0
        %v4188 = vadd.f32 0.0, %v4187
        %v4189 = vpop.f32.mrb[0].mxu0
        %4190 = vdwg.mxu0
        %v4191 = vmul.f32 %v4113, %v3997
        %v4192 = vmul.f32 %v4118, %v3998
        %v4193 = vmul.f32 %v4123, %v3999
        %v4194 = vmul.f32 %v4128, %v4000
        %v4195 = vmul.f32 %v4133, %v4001
        %v4196 = vmul.f32 %v4138, %v4002
        %v4197 = vmul.f32 %v4143, %v4003
        %v4198 = vmul.f32 %v4148, %v4004
        %v4199 = vmul.f32 %v4153, %v4005
        %v4200 = vmul.f32 %v4158, %v4006
        %v4201 = vmul.f32 %v4163, %v4007
        %v4202 = vmul.f32 %v4168, %v4008
        %v4203 = vmul.f32 %v4173, %v4009
        %v4204 = vmul.f32 %v4178, %v4010
        %v4205 = vmul.f32 %v4183, %v4011
        %v4206 = vmul.f32 %v4188, %v4012
        %s4207 = scalar_lea.vmem [#allocation10], 96
        %v4208 = vld [vmem:[%s4207] sm:$0xff]
        %v4209 = vld [vmem:[%s4207 + $0x8] sm:$0xff]
        %v4210 = vld [vmem:[%s4207 + $0x10] sm:$0xff]
        %v4211 = vld [vmem:[%s4207 + $0x18] sm:$0xff]
        %v4213 = vsel %vm1226, %v4191, 0
        %v4216 = vsel %vm1226, %v4192, 0
        %v4219 = vsel %vm1226, %v4193, 0
        %v4222 = vsel %vm1226, %v4194, 0
        %v4225 = vsel %vm1226, %v4195, 0
        %v4228 = vsel %vm1226, %v4196, 0
        %v4231 = vsel %vm1226, %v4197, 0
        %v4234 = vsel %vm1226, %v4198, 0
        %v4237 = vsel %vm1226, %v4199, 0
        %v4240 = vsel %vm1226, %v4200, 0
        %v4243 = vsel %vm1226, %v4201, 0
        %v4246 = vsel %vm1226, %v4202, 0
        %v4249 = vsel %vm1226, %v4203, 0
        %v4252 = vsel %vm1226, %v4204, 0
        %v4255 = vsel %vm1226, %v4205, 0
        %v4258 = vsel %vm1226, %v4206, 0
        %4260 = vmatprep.subr.mxu0 0.0
        %4261 = vmatpush1.msra.mxu0 %v4208
        %4262 = vmatprep.subr.mxu0 0.0
        %4263 = vmatpush1.msra.mxu0 %v4209
        %4264 = vmatprep.subr.mxu0 0.0
        %4265 = vmatpush1.msra.mxu0 %v4210
        %4266 = vmatprep.subr.mxu0 0.0
        %4267 = vmatpush1.msra.mxu0 %v4211
        %4268 = vmatprep.subr.mxu0 0.0
        %4269 = vmatpush1.msra.mxu0 0.0
        %4270 = vmatprep.subr.mxu0 0.0
        %4271 = vmatpush1.msra.mxu0 0.0
        %4272 = vmatprep.subr.mxu0 0.0
        %4273 = vmatpush1.msra.mxu0 0.0
        %4274 = vmatprep.subr.mxu0 0.0
        %4275 = vmatpush1.msra.mxu0 0.0
        %4276 = vmatprep.subr.mxu0 0.0
        %4277 = vmatpush1.msra.mxu0 0.0
        %4278 = vmatprep.subr.mxu0 0.0
        %4279 = vmatpush1.msra.mxu0 0.0
        %4280 = vmatprep.subr.mxu0 0.0
        %4281 = vmatpush1.msra.mxu0 0.0
        %4282 = vmatprep.subr.mxu0 0.0
        %4283 = vmatpush1.msra.mxu0 0.0
        %4284 = vmatprep.subr.mxu0 0.0
        %4285 = vmatpush1.msra.mxu0 0.0
        %4286 = vmatprep.subr.mxu0 0.0
        %4287 = vmatpush1.msra.mxu0 0.0
        %4288 = vmatprep.subr.mxu0 0.0
        %4289 = vmatpush1.msra.mxu0 0.0
        %4290 = vmatprep.subr.mxu0 0.0
        %4291 = vmatpush1.msra.mxu0 0.0
        %4292 = vmatprep.subr.mxu0 0.0
        %4293 = vmatpush1.msra.mxu0 0.0
        %4294 = vmatprep.subr.mxu0 0.0
        %4295 = vmatpush1.msra.mxu0 0.0
        %4296 = vmatprep.subr.mxu0 0.0
        %4297 = vmatpush1.msra.mxu0 0.0
        %4298 = vmatprep.subr.mxu0 0.0
        %4299 = vmatpush1.msra.mxu0 0.0
        %4300 = vmatprep.subr.mxu0 0.0
        %4301 = vmatpush1.msra.mxu0 0.0
        %4302 = vmatprep.subr.mxu0 0.0
        %4303 = vmatpush1.msra.mxu0 0.0
        %4304 = vmatprep.subr.mxu0 0.0
        %4305 = vmatpush1.msra.mxu0 0.0
        %4306 = vmatprep.subr.mxu0 0.0
        %4307 = vmatpush1.msra.mxu0 0.0
        %4308 = vmatprep.subr.mxu0 0.0
        %4309 = vmatpush1.msra.mxu0 0.0
        %4310 = vmatprep.subr.mxu0 0.0
        %4311 = vmatpush1.msra.mxu0 0.0
        %4312 = vmatprep.subr.mxu0 0.0
        %4313 = vmatpush1.msra.mxu0 0.0
        %4314 = vmatprep.subr.mxu0 0.0
        %4315 = vmatpush1.msra.mxu0 0.0
        %4316 = vmatprep.subr.mxu0 0.0
        %4317 = vmatpush1.msra.mxu0 0.0
        %4318 = vmatprep.subr.mxu0 0.0
        %4319 = vmatpush1.msra.mxu0 0.0
        %4320 = vmatprep.subr.mxu0 0.0
        %4321 = vmatpush1.msra.mxu0 0.0
        %4322 = vmatprep.subr.mxu0 0.0
        %4323 = vmatpush1.msra.mxu0 0.0
        %4324 = vmatprep.mubr.f32.mxu0 0.0
        %4325 = vmatmul.mubr.f32.gmra.mrb[0].mxu0 %v4213
        %v4326 = vpop.f32.mrb[0].mxu0
        %v4327 = vadd.f32 0.0, %v4326
        %v4328 = vpop.f32.mrb[0].mxu0
        %4329 = vmatprep.mubr.f32.mxu0 0.0
        %4330 = vmatmul.mubr.f32.gmra.mrb[0].mxu0 %v4216
        %v4331 = vpop.f32.mrb[0].mxu0
        %v4332 = vadd.f32 0.0, %v4331
        %v4333 = vpop.f32.mrb[0].mxu0
        %4334 = vmatprep.mubr.f32.mxu0 0.0
        %4335 = vmatmul.mubr.f32.gmra.mrb[0].mxu0 %v4219
        %v4336 = vpop.f32.mrb[0].mxu0
        %v4337 = vadd.f32 0.0, %v4336
        %v4338 = vpop.f32.mrb[0].mxu0
        %4339 = vmatprep.mubr.f32.mxu0 0.0
        %4340 = vmatmul.mubr.f32.gmra.mrb[0].mxu0 %v4222
        %v4341 = vpop.f32.mrb[0].mxu0
        %v4342 = vadd.f32 0.0, %v4341
        %v4343 = vpop.f32.mrb[0].mxu0
        %4344 = vmatprep.mubr.f32.mxu0 0.0
        %4345 = vmatmul.mubr.f32.gmra.mrb[0].mxu0 %v4225
        %v4346 = vpop.f32.mrb[0].mxu0
        %v4347 = vadd.f32 0.0, %v4346
        %v4348 = vpop.f32.mrb[0].mxu0
        %4349 = vmatprep.mubr.f32.mxu0 0.0
        %4350 = vmatmul.mubr.f32.gmra.mrb[0].mxu0 %v4228
        %v4351 = vpop.f32.mrb[0].mxu0
        %v4352 = vadd.f32 0.0, %v4351
        %v4353 = vpop.f32.mrb[0].mxu0
        %4354 = vmatprep.mubr.f32.mxu0 0.0
        %4355 = vmatmul.mubr.f32.gmra.mrb[0].mxu0 %v4231
        %v4356 = vpop.f32.mrb[0].mxu0
        %v4357 = vadd.f32 0.0, %v4356
        %v4358 = vpop.f32.mrb[0].mxu0
        %4359 = vmatprep.mubr.f32.mxu0 0.0
        %4360 = vmatmul.mubr.f32.gmra.mrb[0].mxu0 %v4234
        %v4361 = vpop.f32.mrb[0].mxu0
        %v4362 = vadd.f32 0.0, %v4361
        %v4363 = vpop.f32.mrb[0].mxu0
        %4364 = vmatprep.mubr.f32.mxu0 0.0
        %4365 = vmatmul.mubr.f32.gmra.mrb[0].mxu0 %v4237
        %v4366 = vpop.f32.mrb[0].mxu0
        %v4367 = vadd.f32 0.0, %v4366
        %v4368 = vpop.f32.mrb[0].mxu0
        %4369 = vmatprep.mubr.f32.mxu0 0.0
        %4370 = vmatmul.mubr.f32.gmra.mrb[0].mxu0 %v4240
        %v4371 = vpop.f32.mrb[0].mxu0
        %v4372 = vadd.f32 0.0, %v4371
        %v4373 = vpop.f32.mrb[0].mxu0
        %4374 = vmatprep.mubr.f32.mxu0 0.0
        %4375 = vmatmul.mubr.f32.gmra.mrb[0].mxu0 %v4243
        %v4376 = vpop.f32.mrb[0].mxu0
        %v4377 = vadd.f32 0.0, %v4376
        %v4378 = vpop.f32.mrb[0].mxu0
        %4379 = vmatprep.mubr.f32.mxu0 0.0
        %4380 = vmatmul.mubr.f32.gmra.mrb[0].mxu0 %v4246
        %v4381 = vpop.f32.mrb[0].mxu0
        %v4382 = vadd.f32 0.0, %v4381
        %v4383 = vpop.f32.mrb[0].mxu0
        %4384 = vmatprep.mubr.f32.mxu0 0.0
        %4385 = vmatmul.mubr.f32.gmra.mrb[0].mxu0 %v4249
        %v4386 = vpop.f32.mrb[0].mxu0
        %v4387 = vadd.f32 0.0, %v4386
        %v4388 = vpop.f32.mrb[0].mxu0
        %4389 = vmatprep.mubr.f32.mxu0 0.0
        %4390 = vmatmul.mubr.f32.gmra.mrb[0].mxu0 %v4252
        %v4391 = vpop.f32.mrb[0].mxu0
        %v4392 = vadd.f32 0.0, %v4391
        %v4393 = vpop.f32.mrb[0].mxu0
        %4394 = vmatprep.mubr.f32.mxu0 0.0
        %4395 = vmatmul.mubr.f32.gmra.mrb[0].mxu0 %v4255
        %v4396 = vpop.f32.mrb[0].mxu0
        %v4397 = vadd.f32 0.0, %v4396
        %v4398 = vpop.f32.mrb[0].mxu0
        %4399 = vmatprep.mubr.f32.mxu0 0.0
        %4400 = vmatmul.mubr.f32.gmra.mrb[0].mxu0 %v4258
        %v4401 = vpop.f32.mrb[0].mxu0
        %v4402 = vadd.f32 0.0, %v4401
        %v4403 = vpop.f32.mrb[0].mxu0
        %4404 = vdwg.mxu0
        %v4405 = vld [vmem:[#allocation4] sm:$0xff]
        %v4406 = vld [vmem:[#allocation4 + $0x8] sm:$0xff]
        %v4407 = vld [vmem:[#allocation4 + $0x10] sm:$0xff]
        %v4408 = vld [vmem:[#allocation4 + $0x18] sm:$0xff]
        %v4409 = vld [vmem:[#allocation4 + $0x20] sm:$0xff]
        %v4410 = vld [vmem:[#allocation4 + $0x28] sm:$0xff]
        %v4411 = vld [vmem:[#allocation4 + $0x30] sm:$0xff]
        %v4412 = vld [vmem:[#allocation4 + $0x38] sm:$0xff]
        %v4413 = vld [vmem:[#allocation4 + $0x40] sm:$0xff]
        %v4414 = vld [vmem:[#allocation4 + $0x48] sm:$0xff]
        %v4415 = vld [vmem:[#allocation4 + $0x50] sm:$0xff]
        %v4416 = vld [vmem:[#allocation4 + $0x58] sm:$0xff]
        %v4417 = vld [vmem:[#allocation4 + $0x60] sm:$0xff]
        %v4418 = vld [vmem:[#allocation4 + $0x68] sm:$0xff]
        %v4419 = vld [vmem:[#allocation4 + $0x70] sm:$0xff]
        %v4420 = vld [vmem:[#allocation4 + $0x78] sm:$0xff]
        %v4421 = vadd.f32 %v4405, %v4327
        %v4422 = vadd.f32 %v4406, %v4332
        %v4423 = vadd.f32 %v4407, %v4337
        %v4424 = vadd.f32 %v4408, %v4342
        %v4425 = vadd.f32 %v4409, %v4347
        %v4426 = vadd.f32 %v4410, %v4352
        %v4427 = vadd.f32 %v4411, %v4357
        %v4428 = vadd.f32 %v4412, %v4362
        %v4429 = vadd.f32 %v4413, %v4367
        %v4430 = vadd.f32 %v4414, %v4372
        %v4431 = vadd.f32 %v4415, %v4377
        %v4432 = vadd.f32 %v4416, %v4382
        %v4433 = vadd.f32 %v4417, %v4387
        %v4434 = vadd.f32 %v4418, %v4392
        %v4435 = vadd.f32 %v4419, %v4397
        %v4436 = vadd.f32 %v4420, %v4402
        %4437 = vst [vmem:[#allocation4] sm:$0xff] %v4421
        %4438 = vst [vmem:[#allocation4 + $0x8] sm:$0xff] %v4422
        %4439 = vst [vmem:[#allocation4 + $0x10] sm:$0xff] %v4423
        %4440 = vst [vmem:[#allocation4 + $0x18] sm:$0xff] %v4424
        %4441 = vst [vmem:[#allocation4 + $0x20] sm:$0xff] %v4425
        %4442 = vst [vmem:[#allocation4 + $0x28] sm:$0xff] %v4426
        %4443 = vst [vmem:[#allocation4 + $0x30] sm:$0xff] %v4427
        %4444 = vst [vmem:[#allocation4 + $0x38] sm:$0xff] %v4428
        %4445 = vst [vmem:[#allocation4 + $0x40] sm:$0xff] %v4429
        %4446 = vst [vmem:[#allocation4 + $0x48] sm:$0xff] %v4430
        %4447 = vst [vmem:[#allocation4 + $0x50] sm:$0xff] %v4431
        %4448 = vst [vmem:[#allocation4 + $0x58] sm:$0xff] %v4432
        %4449 = vst [vmem:[#allocation4 + $0x60] sm:$0xff] %v4433
        %4450 = vst [vmem:[#allocation4 + $0x68] sm:$0xff] %v4434
        %4451 = vst [vmem:[#allocation4 + $0x70] sm:$0xff] %v4435
        %4452 = vst [vmem:[#allocation4 + $0x78] sm:$0xff] %v4436
        %v4453 = vld [vmem:[#allocation4] sm:$0xff]
        %v4454 = vld [vmem:[#allocation4 + $0x8] sm:$0xff]
        %v4455 = vld [vmem:[#allocation4 + $0x10] sm:$0xff]
        %v4456 = vld [vmem:[#allocation4 + $0x18] sm:$0xff]
        %v4457 = vld [vmem:[#allocation4 + $0x20] sm:$0xff]
        %v4458 = vld [vmem:[#allocation4 + $0x28] sm:$0xff]
        %v4459 = vld [vmem:[#allocation4 + $0x30] sm:$0xff]
        %v4460 = vld [vmem:[#allocation4 + $0x38] sm:$0xff]
        %v4461 = vld [vmem:[#allocation4 + $0x40] sm:$0xff]
        %v4462 = vld [vmem:[#allocation4 + $0x48] sm:$0xff]
        %v4463 = vld [vmem:[#allocation4 + $0x50] sm:$0xff]
        %v4464 = vld [vmem:[#allocation4 + $0x58] sm:$0xff]
        %v4465 = vld [vmem:[#allocation4 + $0x60] sm:$0xff]
        %v4466 = vld [vmem:[#allocation4 + $0x68] sm:$0xff]
        %v4467 = vld [vmem:[#allocation4 + $0x70] sm:$0xff]
        %v4468 = vld [vmem:[#allocation4 + $0x78] sm:$0xff]
        %v4469 = vld [vmem:[%s6] sm:$0x1]
        %v4471 = vlaneseq
        %v4472 = vshrl.u32 %v4471, 7
        %v4473 = vsub.s32 0, %v4472
        %v4474 = vrot.slane %v4469, %v4473
        %v4476 = vadd.f32 %v4453, %v4474
        %v4477 = vadd.f32 %v4454, %v4474
        %v4478 = vadd.f32 %v4455, %v4474
        %v4479 = vadd.f32 %v4456, %v4474
        %v4480 = vadd.f32 %v4457, %v4474
        %v4481 = vadd.f32 %v4458, %v4474
        %v4482 = vadd.f32 %v4459, %v4474
        %v4483 = vadd.f32 %v4460, %v4474
        %v4484 = vadd.f32 %v4461, %v4474
        %v4485 = vadd.f32 %v4462, %v4474
        %v4486 = vadd.f32 %v4463, %v4474
        %v4487 = vadd.f32 %v4464, %v4474
        %v4488 = vadd.f32 %v4465, %v4474
        %v4489 = vadd.f32 %v4466, %v4474
        %v4490 = vadd.f32 %v4467, %v4474
        %v4491 = vadd.f32 %v4468, %v4474
        %4492 = vst [vmem:[%s398] sm:$0xff] %v4476
        %4493 = vst [vmem:[%s398 + $0x8] sm:$0xff] %v4477
        %4494 = vst [vmem:[%s398 + $0x10] sm:$0xff] %v4478
        %4495 = vst [vmem:[%s398 + $0x18] sm:$0xff] %v4479
        %4496 = vst [vmem:[%s398 + $0x20] sm:$0xff] %v4480
        %4497 = vst [vmem:[%s398 + $0x28] sm:$0xff] %v4481
        %4498 = vst [vmem:[%s398 + $0x30] sm:$0xff] %v4482
        %4499 = vst [vmem:[%s398 + $0x38] sm:$0xff] %v4483
        %4500 = vst [vmem:[%s398 + $0x40] sm:$0xff] %v4484
        %4501 = vst [vmem:[%s398 + $0x48] sm:$0xff] %v4485
        %4502 = vst [vmem:[%s398 + $0x50] sm:$0xff] %v4486
        %4503 = vst [vmem:[%s398 + $0x58] sm:$0xff] %v4487
        %4504 = vst [vmem:[%s398 + $0x60] sm:$0xff] %v4488
        %4505 = vst [vmem:[%s398 + $0x68] sm:$0xff] %v4489
        %4506 = vst [vmem:[%s398 + $0x70] sm:$0xff] %v4490
        %4507 = vst [vmem:[%s398 + $0x78] sm:$0xff] %v4491
        %s4508 = sand.u32 %s228, 1
        %s4509 = scalar_lea.sflag [#allocation7], %s4508
        %s4510 = sand.u32 %s228, 1
        %s4511 = smul.addr %s4510, 128
        %s4512 = scalar_lea.vmem [#allocation14], %s4511
        // Predicated region
        $region77: #{tpu_custom_call.1} parent=55 // pred_check
          %p4513 = pneg %p238
        $region78: #{tpu_custom_call.1} parent=55 // pred_check_branch
          %4515 = sbr.rel (%p4513) target = $region80
        $region79: #{tpu_custom_call.1} parent=55 // pred_region
          %s4517 = ssub.s32 2048, 2048
          %4518 = vsyncadd %s4509, %s4517
          %s4519 = smul.addr %s26, 16
          %s4520 = smul.addr %s4519, 128
          %s4521 = scalar_lea.hbm %s9, %s4520
          %s4522 = sshll.u32 %s4512, 4
          %s4523 = int_to_ptr.vmem [resolvable:$true] %s4522
          %4528 = dma.vmem_to_hbm [thread:$0]  %s4523, 2048, %s4521, %s4509, 128, 128, 8
        $region80: #{tpu_custom_call.1} parent=55 // pred_fallthru
          _
      $region56: #{tpu_custom_call.1} parent=5 // pred_fallthru
        _
      %p4529 = scmp.le.s32.totalorder 2, %s21
      // Predicated region
      $region81: #{tpu_custom_call.1} parent=5 // pred_check
        %p4530 = pneg %p4529
      $region82: #{tpu_custom_call.1} parent=5 // pred_check_branch
        %4532 = sbr.rel (%p4530) target = $region84
      $region83: #{tpu_custom_call.1} parent=5 // pred_region
        %s4533 = ssub.s32 %s21, 2
        // Predicated region
        $region85: #{tpu_custom_call.1} parent=83 // pred_check
          %p4534 = pneg %p244
        $region86: #{tpu_custom_call.1} parent=83 // pred_check_branch
          %4536 = sbr.rel (%p4534) target = $region88
        $region87: #{tpu_custom_call.1} parent=83 // pred_region
          %s4537 = sand.u32 %s229, 1
          %s4538 = scalar_lea.sflag [#allocation7], %s4537
          %s4539 = sand.u32 %s229, 1
          %s4540 = smul.addr %s4539, 128
          %s4541 = scalar_lea.vmem [#allocation14], %s4540
          %4542 = dma.done %s4538, 2048
        $region88: #{tpu_custom_call.1} parent=83 // pred_fallthru
          _
      $region84: #{tpu_custom_call.1} parent=5 // pred_fallthru
        _
    $region6: #{tpu_custom_call.1} parent=1 // loop_footer
      %s25 = sadd.s32 1, %s21
    $region7: #{tpu_custom_call.1} parent=1 // loop_footer_branch
      %20 = sbr.rel target = $region3
    $region8: #{tpu_custom_call.1} parent=1 // loop_exit
      _
    %4543 = vsyncpa [#allocation6], 1
    %s4544 = scalar_lea.sflag [#allocation6], 1
    %4545 = vsyncpa %s4544, 1
    %4546 = vsyncpa [#allocation9], 1
    %4547 = vsyncpa [#allocation12], 1
    %4548 = vsyncpa [#allocation7], 1
    %s4549 = scalar_lea.sflag [#allocation7], 1
    %4550 = vsyncpa %s4549, 1

</llo_original>
